<compile_context>
chip_gen: v5e
topology: v5e:2x2
jax: 0.10.0
libtpu: 0.0.40
codegen_flags: <defaults>
</compile_context>

<pallas_src>
import functools

import jax
import jax.numpy as jnp
from jax.experimental import pallas as pl
from jax.experimental.pallas import tpu as pltpu

_BN_EPS = 1e-5
_VMEM_LIMIT = 32 * 1024 * 1024   # safe on v5e/v6e (128 MiB) and v7x (64 MiB)


def _cparams(sems):
    return pltpu.CompilerParams(dimension_semantics=sems,
                                vmem_limit_bytes=_VMEM_LIMIT)


def _pick_tile(n, cap, align):
    """Largest legal tile <= cap: either the full dim or an aligned divisor."""
    if n <= cap:
        return n                                  # full dimension: always legal
    t = (cap // align) * align
    while t >= align and n % t:
        t -= align
    return t if (t >= align and n % t == 0) else n


# ----------------------------- Pallas kernels ------------------------------

def _matmul_kernel(a_ref, b_ref, o_ref):
    # a: (tm, K) bf16, b: (K, tn) bf16 -> o: (tm, tn) bf16 (fp32 MXU accum).
    o_ref[...] = jnp.dot(a_ref[...], b_ref[...],
                         preferred_element_type=jnp.float32).astype(o_ref.dtype)


def _bn_stats_kernel(z_ref, s1_ref, s2_ref):
    # z: (tr, cols) fp32 lane-dense view -> per-tile column sum / sum-of-squares.
    z = z_ref[...]
    s1_ref[...] = jnp.sum(z, axis=0, keepdims=True)[None]       # (1, 1, cols)
    s2_ref[...] = jnp.sum(z * z, axis=0, keepdims=True)[None]   # (1, 1, cols)


def _bn_apply_relu_kernel(z_ref, scale_ref, shift_ref, o_ref):
    # Lane-dense (rows, Wo*C) view; scale/shift pre-folded (gamma*rstd, ...).
    y = z_ref[...] * scale_ref[...] + shift_ref[...]
    o_ref[...] = jnp.maximum(y, 0.0).astype(o_ref.dtype)


def _bias_tanh_kernel(z_ref, b_ref, o_ref):
    o_ref[...] = jnp.tanh(z_ref[...] + b_ref[...]).astype(o_ref.dtype)


# ----------------------------- Pallas wrappers ------------------------------

def _pallas_matmul(x, w, *, tile_m_cap=512, tile_n_cap=512):
    """(M, K) bf16 @ (K, N) bf16 -> (M, N) bf16, fp32 accumulation, tiled grid."""
    m, k = x.shape
    _, n = w.shape
    tm = _pick_tile(m, tile_m_cap, 8)
    tn = _pick_tile(n, tile_n_cap, 128)
    cost = pl.CostEstimate(flops=2 * m * k * n, transcendentals=0,
                           bytes_accessed=2 * (m * k + k * n + m * n))
    return pl.pallas_call(
        _matmul_kernel,
        out_shape=jax.ShapeDtypeStruct((m, n), jnp.bfloat16),
        grid=(m // tm, n // tn),
        in_specs=[pl.BlockSpec((tm, k), lambda i, j: (i, 0)),
                  pl.BlockSpec((k, tn), lambda i, j: (0, j))],
        out_specs=pl.BlockSpec((tm, tn), lambda i, j: (i, j)),
        compiler_params=_cparams(("parallel", "parallel")),
        cost_estimate=cost,
    )(x, w)


def _bn_partial_stats(z2, *, tile_r_cap=512):
    """Per-tile column sums / sums-of-squares of a lane-dense fp32 view."""
    rows, cols = z2.shape
    tr = _pick_tile(rows, tile_r_cap, 8)
    mt = rows // tr
    cost = pl.CostEstimate(flops=3 * rows * cols, transcendentals=0,
                           bytes_accessed=4 * rows * cols + 8 * mt * cols)
    return pl.pallas_call(
        _bn_stats_kernel,
        out_shape=(jax.ShapeDtypeStruct((mt, 1, cols), jnp.float32),
                   jax.ShapeDtypeStruct((mt, 1, cols), jnp.float32)),
        grid=(mt,),
        in_specs=[pl.BlockSpec((tr, cols), lambda i: (i, 0))],
        out_specs=(pl.BlockSpec((1, 1, cols), lambda i: (i, 0, 0)),
                   pl.BlockSpec((1, 1, cols), lambda i: (i, 0, 0))),
        compiler_params=_cparams(("parallel",)),
        cost_estimate=cost,
    )(z2)


def _batch_norm_relu(z, gamma, beta, *, tile_r_cap=256):
    """relu((z - mean) * rstd * gamma + beta), batch stats, lane-dense view."""
    n, h, w, c = z.shape
    rows, cols = n * h, w * c
    z2 = z.reshape(rows, cols)

    # ---- stats: one lane-dense Pallas pass + tiny jnp finalize -------------
    s1, s2 = _bn_partial_stats(z2)
    count = n * h * w
    s1c = jnp.sum(s1, axis=(0, 1)).reshape(w, c).sum(axis=0)        # (C,)
    s2c = jnp.sum(s2, axis=(0, 1)).reshape(w, c).sum(axis=0)        # (C,)
    mean = s1c / count
    var = jnp.maximum(s2c / count - mean * mean, 0.0)               # biased var
    rstd = jax.lax.rsqrt(var + _BN_EPS)

    # ---- normalize + affine + relu, lane-dense ------------------------------
    scale = (gamma * rstd).astype(jnp.float32)
    shift = (beta - mean * gamma * rstd).astype(jnp.float32)
    scale_row = jnp.tile(scale, w).reshape(1, cols)
    shift_row = jnp.tile(shift, w).reshape(1, cols)
    tr = _pick_tile(rows, tile_r_cap, 8)
    cost = pl.CostEstimate(flops=3 * rows * cols, transcendentals=0,
                           bytes_accessed=4 * rows * cols + 2 * rows * cols)
    out = pl.pallas_call(
        _bn_apply_relu_kernel,
        out_shape=jax.ShapeDtypeStruct((rows, cols), jnp.bfloat16),
        grid=(rows // tr,),
        in_specs=[pl.BlockSpec((tr, cols), lambda i: (i, 0)),
                  pl.BlockSpec((1, cols), lambda i: (0, 0)),
                  pl.BlockSpec((1, cols), lambda i: (0, 0))],
        out_specs=pl.BlockSpec((tr, cols), lambda i: (i, 0)),
        compiler_params=_cparams(("parallel",)),
        cost_estimate=cost,
    )(z2, scale_row, shift_row)
    return out.reshape(n, h, w, c)


def _bias_tanh(z, bias, *, tile_r_cap=256):
    n, h, w, c = z.shape
    rows, cols = n * h, w * c
    z2 = z.reshape(rows, cols)
    bias_row = jnp.tile(bias.astype(jnp.float32), w).reshape(1, cols)
    tr = _pick_tile(rows, tile_r_cap, 8)
    cost = pl.CostEstimate(flops=rows * cols, transcendentals=rows * cols,
                           bytes_accessed=8 * rows * cols)
    out = pl.pallas_call(
        _bias_tanh_kernel,
        out_shape=jax.ShapeDtypeStruct((rows, cols), jnp.float32),
        grid=(rows // tr,),
        in_specs=[pl.BlockSpec((tr, cols), lambda i: (i, 0)),
                  pl.BlockSpec((1, cols), lambda i: (0, 0))],
        out_specs=pl.BlockSpec((tr, cols), lambda i: (i, 0)),
        compiler_params=_cparams(("parallel",)),
        cost_estimate=cost,
    )(z2, bias_row)
    return out.reshape(n, h, w, c)


# ------------------------- JAX glue (data plumbing) -------------------------

def _col2im(y, n, hin, win, k, stride, pad, cout):
    """Overlap-add of per-input-pixel k*k*Cout contributions (ConvTranspose)."""
    ho = (hin - 1) * stride - 2 * pad + k
    wo = (win - 1) * stride - 2 * pad + k
    fh = (hin - 1) * stride + k
    fw = (win - 1) * stride + k
    yr = y.reshape(n, hin, win, k, k, cout).astype(jnp.float32)
    out = jnp.zeros((n, fh, fw, cout), jnp.float32)
    for kh in range(k):                       # k*k static strided slice-adds
        for kw in range(k):
            out = out.at[:, kh:kh + (hin - 1) * stride + 1:stride,
                            kw:kw + (win - 1) * stride + 1:stride, :].add(
                yr[:, :, :, kh, kw, :])
    return out[:, pad:pad + ho, pad:pad + wo, :]


def _conv_transpose_layer(x, layer, cfg):
    cin, cout, k, stride, pad, last = cfg
    n, hin, win, _ = x.shape
    x_flat = x.reshape(n * hin * win, cin).astype(jnp.bfloat16)
    y = _pallas_matmul(x_flat, layer["w_mat"])            # (M_in, k*k*Cout) bf16
    z = _col2im(y, n, hin, win, k, stride, pad, cout)     # (N, Ho, Wo, Cout) f32
    if last:
        return _bias_tanh(z, layer["bias"])
    return _batch_norm_relu(z, layer["gamma"], layer["beta"])


# ----------------------------- parameter setup ------------------------------

def layer_specs(z_dim, img_channels, features_g):
    # (C_in, C_out, k, stride, padding, is_last) — mirrors Generator.__init__
    return (
        (z_dim,           features_g * 16, 4, 1, 0, False),
        (features_g * 16, features_g * 8,  4, 2, 1, False),
        (features_g * 8,  features_g * 4,  4, 2, 1, False),
        (features_g * 4,  features_g * 2,  4, 2, 1, False),
        (features_g * 2,  img_channels,    4, 2, 1, True),
    )


def init_generator_params(key, specs):
    params = []
    for (cin, cout, k, _s, _p, last) in specs:
        key, kw_, kg, kb = jax.random.split(key, 4)
        w = 0.02 * jax.random.normal(kw_, (cin, cout, k, k), jnp.float32)
        # PyTorch ConvTranspose2d weight (Cin, Cout, kh, kw) ->
        # matmul weight (Cin, kh*kw*Cout), stored bf16 for the MXU.
        w_mat = jnp.transpose(w, (0, 2, 3, 1)).reshape(cin, k * k * cout)
        layer = {"w_mat": w_mat.astype(jnp.bfloat16)}
        if last:
            layer["bias"] = 0.01 * jax.random.normal(kb, (cout,), jnp.float32)
        else:
            layer["gamma"] = 1.0 + 0.1 * jax.random.normal(kg, (cout,), jnp.float32)
            layer["beta"] = 0.1 * jax.random.normal(kb, (cout,), jnp.float32)
        params.append(layer)
    return params


def generator_forward(specs, params, x_nchw):
    x = jnp.transpose(x_nchw, (0, 2, 3, 1)).astype(jnp.float32)   # NCHW -> NHWC
    for layer, cfg in zip(params, specs):
        x = _conv_transpose_layer(x, layer, cfg)
    return jnp.transpose(x, (0, 3, 1, 2)).astype(jnp.float32)     # NHWC -> NCHW


# ---------------------------------- main ------------------------------------

if __name__ == "__main__":
    Z_DIM, IMG_CH, FEAT_G, BATCH = 32, 3, 8, 2

    specs = layer_specs(Z_DIM, IMG_CH, FEAT_G)
    key = jax.random.PRNGKey(0)
    kp, kx = jax.random.split(key)
    params = init_generator_params(kp, specs)
    x = jax.random.normal(kx, (BATCH, Z_DIM, 1, 1), jnp.float32)

    forward = jax.jit(functools.partial(generator_forward, specs))
    y = forward(params, x)
    jax.block_until_ready(y)

    assert y.shape == (BATCH, IMG_CH, 64, 64), y.shape
    assert bool(jnp.all(jnp.isfinite(y)))
    assert bool(jnp.all(jnp.abs(y) <= 1.0 + 1e-5))   # tanh range
    print("KERNEL_OK")
</pallas_src>

<mosaic_0001>
module attributes {stable_mosaic.version = 11 : i64} {
  func.func @_matmul_kernel(%arg0: i32, %arg1: i32, %arg2: memref<2x32xbf16, #tpu.memory_space<vmem>>, %arg3: memref<32x512xbf16, #tpu.memory_space<vmem>>, %arg4: memref<2x512xbf16, #tpu.memory_space<vmem>>) attributes {dimension_semantics = [#tpu.dimension_semantics<parallel>, #tpu.dimension_semantics<parallel>], iteration_bounds = array<i64: 1, 4>, scalar_prefetch = 0 : i64, scratch_operands = 0 : i64, tpu.core_type = #tpu.core_type<tc>, window_params = [{transform_indices = @transform_0, window_bounds = array<i64: 2, 32>}, {transform_indices = @transform_1, window_bounds = array<i64: 32, 512>}, {transform_indices = @transform_2, window_bounds = array<i64: 2, 512>}]} {
    %c0 = arith.constant 0 : index
    %c0_0 = arith.constant 0 : index
    %0 = vector.load %arg2[%c0, %c0_0] : memref<2x32xbf16, #tpu.memory_space<vmem>>, vector<2x32xbf16>
    %c0_1 = arith.constant 0 : index
    %c0_2 = arith.constant 0 : index
    %1 = vector.load %arg3[%c0_1, %c0_2] : memref<32x512xbf16, #tpu.memory_space<vmem>>, vector<32x512xbf16>
    %cst = arith.constant dense<0.000000e+00> : vector<2x512xf32>
    %2 = tpu.matmul %0, %1, %cst {dimension_numbers = #tpu.dot_dimension_numbers<[1], [0], [0], [1], [0, 0, 1, 1], [], []>} : vector<2x32xbf16>, vector<32x512xbf16>, vector<2x512xf32> -> vector<2x512xf32>
    %3 = arith.truncf %2 : vector<2x512xf32> to vector<2x512xbf16>
    %c0_3 = arith.constant 0 : index
    %c0_4 = arith.constant 0 : index
    %4 = vector.load %arg4[%c0_3, %c0_4] : memref<2x512xbf16, #tpu.memory_space<vmem>>, vector<2x512xbf16>
    tpu.vector_store %arg4[%c0_3, %c0_4], %3 {strides = array<i32>} : memref<2x512xbf16, #tpu.memory_space<vmem>>, vector<2x512xbf16>,
    return
  }
  func.func @transform_0(%arg0: i32, %arg1: i32) -> (i32, i32) {
    %c0_i32 = arith.constant 0 : i32
    %c0_i32_0 = arith.constant 0 : i32
    return %arg0, %c0_i32 : i32, i32
  }
  func.func @transform_1(%arg0: i32, %arg1: i32) -> (i32, i32) {
    %c0_i32 = arith.constant 0 : i32
    %c0_i32_0 = arith.constant 0 : i32
    return %c0_i32, %arg1 : i32, i32
  }
  func.func @transform_2(%arg0: i32, %arg1: i32) -> (i32, i32) {
    %c0_i32 = arith.constant 0 : i32
    return %arg0, %arg1 : i32, i32
  }
}

module attributes {stable_mosaic.version = 11 : i64} {
  func.func @_bn_stats_kernel(%arg0: i32, %arg1: memref<8x512xf32, #tpu.memory_space<vmem>>, %arg2: memref<1x1x512xf32, #tpu.memory_space<vmem>>, %arg3: memref<1x1x512xf32, #tpu.memory_space<vmem>>) attributes {dimension_semantics = [#tpu.dimension_semantics<parallel>], iteration_bounds = array<i64: 1>, scalar_prefetch = 0 : i64, scratch_operands = 0 : i64, tpu.core_type = #tpu.core_type<tc>, window_params = [{transform_indices = @transform_0, window_bounds = array<i64: 8, 512>}, {transform_indices = @transform_1, window_bounds = array<i64: 1, 1, 512>}, {transform_indices = @transform_2, window_bounds = array<i64: 1, 1, 512>}]} {
    %c0 = arith.constant 0 : index
    %c0_0 = arith.constant 0 : index
    %0 = vector.load %arg1[%c0, %c0_0] : memref<8x512xf32, #tpu.memory_space<vmem>>, vector<8x512xf32>
    %cst = arith.constant dense<0.000000e+00> : vector<512xf32>
    %1 = vector.multi_reduction <add>, %0, %cst [0] : vector<8x512xf32> to vector<512xf32>
    %2 = vector.shape_cast %1 : vector<512xf32> to vector<1x512xf32>
    %3 = vector.shape_cast %2 : vector<1x512xf32> to vector<1x1x512xf32>
    %c0_1 = arith.constant 0 : index
    %c0_2 = arith.constant 0 : index
    %c0_3 = arith.constant 0 : index
    %4 = vector.load %arg2[%c0_1, %c0_2, %c0_3] : memref<1x1x512xf32, #tpu.memory_space<vmem>>, vector<1x1x512xf32>
    tpu.vector_store %arg2[%c0_1, %c0_2, %c0_3], %3 {strides = array<i32>} : memref<1x1x512xf32, #tpu.memory_space<vmem>>, vector<1x1x512xf32>,
    %5 = arith.mulf %0, %0 : vector<8x512xf32>
    %cst_4 = arith.constant dense<0.000000e+00> : vector<512xf32>
    %6 = vector.multi_reduction <add>, %5, %cst_4 [0] : vector<8x512xf32> to vector<512xf32>
    %7 = vector.shape_cast %6 : vector<512xf32> to vector<1x512xf32>
    %8 = vector.shape_cast %7 : vector<1x512xf32> to vector<1x1x512xf32>
    %c0_5 = arith.constant 0 : index
    %c0_6 = arith.constant 0 : index
    %c0_7 = arith.constant 0 : index
    %9 = vector.load %arg3[%c0_5, %c0_6, %c0_7] : memref<1x1x512xf32, #tpu.memory_space<vmem>>, vector<1x1x512xf32>
    tpu.vector_store %arg3[%c0_5, %c0_6, %c0_7], %8 {strides = array<i32>} : memref<1x1x512xf32, #tpu.memory_space<vmem>>, vector<1x1x512xf32>,
    return
  }
  func.func @transform_0(%arg0: i32) -> (i32, i32) {
    %c0_i32 = arith.constant 0 : i32
    %c0_i32_0 = arith.constant 0 : i32
    return %arg0, %c0_i32 : i32, i32
  }
  func.func @transform_1(%arg0: i32) -> (i32, i32, i32) {
    %c0_i32 = arith.constant 0 : i32
    %c0_i32_0 = arith.constant 0 : i32
    %c0_i32_1 = arith.constant 0 : i32
    return %arg0, %c0_i32, %c0_i32_0 : i32, i32, i32
  }
  func.func @transform_2(%arg0: i32) -> (i32, i32, i32) {
    %c0_i32 = arith.constant 0 : i32
    %c0_i32_0 = arith.constant 0 : i32
    %c0_i32_1 = arith.constant 0 : i32
    return %arg0, %c0_i32, %c0_i32_0 : i32, i32, i32
  }
}

module attributes {stable_mosaic.version = 11 : i64} {
  func.func @_matmul_kernel(%arg0: i32, %arg1: i32, %arg2: memref<32x128xbf16, #tpu.memory_space<vmem>>, %arg3: memref<128x512xbf16, #tpu.memory_space<vmem>>, %arg4: memref<32x512xbf16, #tpu.memory_space<vmem>>) attributes {dimension_semantics = [#tpu.dimension_semantics<parallel>, #tpu.dimension_semantics<parallel>], iteration_bounds = array<i64: 1, 2>, scalar_prefetch = 0 : i64, scratch_operands = 0 : i64, tpu.core_type = #tpu.core_type<tc>, window_params = [{transform_indices = @transform_0, window_bounds = array<i64: 32, 128>}, {transform_indices = @transform_1, window_bounds = array<i64: 128, 512>}, {transform_indices = @transform_2, window_bounds = array<i64: 32, 512>}]} {
    %c0 = arith.constant 0 : index
    %c0_0 = arith.constant 0 : index
    %0 = vector.load %arg2[%c0, %c0_0] : memref<32x128xbf16, #tpu.memory_space<vmem>>, vector<32x128xbf16>
    %c0_1 = arith.constant 0 : index
    %c0_2 = arith.constant 0 : index
    %1 = vector.load %arg3[%c0_1, %c0_2] : memref<128x512xbf16, #tpu.memory_space<vmem>>, vector<128x512xbf16>
    %cst = arith.constant dense<0.000000e+00> : vector<32x512xf32>
    %2 = tpu.matmul %0, %1, %cst {dimension_numbers = #tpu.dot_dimension_numbers<[1], [0], [0], [1], [0, 0, 1, 1], [], []>} : vector<32x128xbf16>, vector<128x512xbf16>, vector<32x512xf32> -> vector<32x512xf32>
    %3 = arith.truncf %2 : vector<32x512xf32> to vector<32x512xbf16>
    %c0_3 = arith.constant 0 : index
    %c0_4 = arith.constant 0 : index
    %4 = vector.load %arg4[%c0_3, %c0_4] : memref<32x512xbf16, #tpu.memory_space<vmem>>, vector<32x512xbf16>
    tpu.vector_store %arg4[%c0_3, %c0_4], %3 {strides = array<i32>} : memref<32x512xbf16, #tpu.memory_space<vmem>>, vector<32x512xbf16>,
    return
  }
  func.func @transform_0(%arg0: i32, %arg1: i32) -> (i32, i32) {
    %c0_i32 = arith.constant 0 : i32
    %c0_i32_0 = arith.constant 0 : i32
    return %arg0, %c0_i32 : i32, i32
  }
  func.func @transform_1(%arg0: i32, %arg1: i32) -> (i32, i32) {
    %c0_i32 = arith.constant 0 : i32
    %c0_i32_0 = arith.constant 0 : i32
    return %c0_i32, %arg1 : i32, i32
  }
  func.func @transform_2(%arg0: i32, %arg1: i32) -> (i32, i32) {
    %c0_i32 = arith.constant 0 : i32
    return %arg0, %arg1 : i32, i32
  }
}

module attributes {stable_mosaic.version = 11 : i64} {
  func.func @_bn_apply_relu_kernel(%arg0: i32, %arg1: memref<8x512xf32, #tpu.memory_space<vmem>>, %arg2: memref<1x512xf32, #tpu.memory_space<vmem>>, %arg3: memref<1x512xf32, #tpu.memory_space<vmem>>, %arg4: memref<8x512xbf16, #tpu.memory_space<vmem>>) attributes {dimension_semantics = [#tpu.dimension_semantics<parallel>], iteration_bounds = array<i64: 1>, scalar_prefetch = 0 : i64, scratch_operands = 0 : i64, tpu.core_type = #tpu.core_type<tc>, window_params = [{transform_indices = @transform_0, window_bounds = array<i64: 8, 512>}, {pipeline_mode = #tpu.pipeline_mode<synchronous>, transform_indices = @transform_1, window_bounds = array<i64: 1, 512>}, {pipeline_mode = #tpu.pipeline_mode<synchronous>, transform_indices = @transform_2, window_bounds = array<i64: 1, 512>}, {transform_indices = @transform_3, window_bounds = array<i64: 8, 512>}]} {
    %c0 = arith.constant 0 : index
    %c0_0 = arith.constant 0 : index
    %0 = vector.load %arg1[%c0, %c0_0] : memref<8x512xf32, #tpu.memory_space<vmem>>, vector<8x512xf32>
    %c0_1 = arith.constant 0 : index
    %c0_2 = arith.constant 0 : index
    %1 = vector.load %arg2[%c0_1, %c0_2] : memref<1x512xf32, #tpu.memory_space<vmem>>, vector<1x512xf32>
    %2 = vector.broadcast %1 : vector<1x512xf32> to vector<8x512xf32>
    %3 = arith.mulf %0, %2 : vector<8x512xf32>
    %c0_3 = arith.constant 0 : index
    %c0_4 = arith.constant 0 : index
    %4 = vector.load %arg3[%c0_3, %c0_4] : memref<1x512xf32, #tpu.memory_space<vmem>>, vector<1x512xf32>
    %5 = vector.broadcast %4 : vector<1x512xf32> to vector<8x512xf32>
    %6 = arith.addf %3, %5 : vector<8x512xf32>
    %cst = arith.constant 0.000000e+00 : f32
    %7 = vector.broadcast %cst : f32 to vector<8x512xf32>
    %8 = arith.maximumf %6, %7 : vector<8x512xf32>
    %9 = arith.truncf %8 : vector<8x512xf32> to vector<8x512xbf16>
    %c0_5 = arith.constant 0 : index
    %c0_6 = arith.constant 0 : index
    %10 = vector.load %arg4[%c0_5, %c0_6] : memref<8x512xbf16, #tpu.memory_space<vmem>>, vector<8x512xbf16>
    tpu.vector_store %arg4[%c0_5, %c0_6], %9 {strides = array<i32>} : memref<8x512xbf16, #tpu.memory_space<vmem>>, vector<8x512xbf16>,
    return
  }
  func.func @transform_0(%arg0: i32) -> (i32, i32) {
    %c0_i32 = arith.constant 0 : i32
    %c0_i32_0 = arith.constant 0 : i32
    return %arg0, %c0_i32 : i32, i32
  }
  func.func @transform_1(%arg0: i32) -> (i32, i32) {
    %c0_i32 = arith.constant 0 : i32
    %c0_i32_0 = arith.constant 0 : i32
    %c0_i32_1 = arith.constant 0 : i32
    return %c0_i32, %c0_i32_0 : i32, i32
  }
  func.func @transform_2(%arg0: i32) -> (i32, i32) {
    %c0_i32 = arith.constant 0 : i32
    %c0_i32_0 = arith.constant 0 : i32
    %c0_i32_1 = arith.constant 0 : i32
    return %c0_i32, %c0_i32_0 : i32, i32
  }
  func.func @transform_3(%arg0: i32) -> (i32, i32) {
    %c0_i32 = arith.constant 0 : i32
    %c0_i32_0 = arith.constant 0 : i32
    return %arg0, %c0_i32 : i32, i32
  }
}

module attributes {stable_mosaic.version = 11 : i64} {
  func.func @_bn_stats_kernel(%arg0: i32, %arg1: memref<16x512xf32, #tpu.memory_space<vmem>>, %arg2: memref<1x1x512xf32, #tpu.memory_space<vmem>>, %arg3: memref<1x1x512xf32, #tpu.memory_space<vmem>>) attributes {dimension_semantics = [#tpu.dimension_semantics<parallel>], iteration_bounds = array<i64: 1>, scalar_prefetch = 0 : i64, scratch_operands = 0 : i64, tpu.core_type = #tpu.core_type<tc>, window_params = [{transform_indices = @transform_0, window_bounds = array<i64: 16, 512>}, {transform_indices = @transform_1, window_bounds = array<i64: 1, 1, 512>}, {transform_indices = @transform_2, window_bounds = array<i64: 1, 1, 512>}]} {
    %c0 = arith.constant 0 : index
    %c0_0 = arith.constant 0 : index
    %0 = vector.load %arg1[%c0, %c0_0] : memref<16x512xf32, #tpu.memory_space<vmem>>, vector<16x512xf32>
    %cst = arith.constant dense<0.000000e+00> : vector<512xf32>
    %1 = vector.multi_reduction <add>, %0, %cst [0] : vector<16x512xf32> to vector<512xf32>
    %2 = vector.shape_cast %1 : vector<512xf32> to vector<1x512xf32>
    %3 = vector.shape_cast %2 : vector<1x512xf32> to vector<1x1x512xf32>
    %c0_1 = arith.constant 0 : index
    %c0_2 = arith.constant 0 : index
    %c0_3 = arith.constant 0 : index
    %4 = vector.load %arg2[%c0_1, %c0_2, %c0_3] : memref<1x1x512xf32, #tpu.memory_space<vmem>>, vector<1x1x512xf32>
    tpu.vector_store %arg2[%c0_1, %c0_2, %c0_3], %3 {strides = array<i32>} : memref<1x1x512xf32, #tpu.memory_space<vmem>>, vector<1x1x512xf32>,
    %5 = arith.mulf %0, %0 : vector<16x512xf32>
    %cst_4 = arith.constant dense<0.000000e+00> : vector<512xf32>
    %6 = vector.multi_reduction <add>, %5, %cst_4 [0] : vector<16x512xf32> to vector<512xf32>
    %7 = vector.shape_cast %6 : vector<512xf32> to vector<1x512xf32>
    %8 = vector.shape_cast %7 : vector<1x512xf32> to vector<1x1x512xf32>
    %c0_5 = arith.constant 0 : index
    %c0_6 = arith.constant 0 : index
    %c0_7 = arith.constant 0 : index
    %9 = vector.load %arg3[%c0_5, %c0_6, %c0_7] : memref<1x1x512xf32, #tpu.memory_space<vmem>>, vector<1x1x512xf32>
    tpu.vector_store %arg3[%c0_5, %c0_6, %c0_7], %8 {strides = array<i32>} : memref<1x1x512xf32, #tpu.memory_space<vmem>>, vector<1x1x512xf32>,
    return
  }
  func.func @transform_0(%arg0: i32) -> (i32, i32) {
    %c0_i32 = arith.constant 0 : i32
    %c0_i32_0 = arith.constant 0 : i32
    return %arg0, %c0_i32 : i32, i32
  }
  func.func @transform_1(%arg0: i32) -> (i32, i32, i32) {
    %c0_i32 = arith.constant 0 : i32
    %c0_i32_0 = arith.constant 0 : i32
    %c0_i32_1 = arith.constant 0 : i32
    return %arg0, %c0_i32, %c0_i32_0 : i32, i32, i32
  }
  func.func @transform_2(%arg0: i32) -> (i32, i32, i32) {
    %c0_i32 = arith.constant 0 : i32
    %c0_i32_0 = arith.constant 0 : i32
    %c0_i32_1 = arith.constant 0 : i32
    return %arg0, %c0_i32, %c0_i32_0 : i32, i32, i32
  }
}

module attributes {stable_mosaic.version = 11 : i64} {
  func.func @_matmul_kernel(%arg0: i32, %arg1: i32, %arg2: memref<128x64xbf16, #tpu.memory_space<vmem>>, %arg3: memref<64x512xbf16, #tpu.memory_space<vmem>>, %arg4: memref<128x512xbf16, #tpu.memory_space<vmem>>) attributes {dimension_semantics = [#tpu.dimension_semantics<parallel>, #tpu.dimension_semantics<parallel>], iteration_bounds = array<i64: 1, 1>, scalar_prefetch = 0 : i64, scratch_operands = 0 : i64, tpu.core_type = #tpu.core_type<tc>, window_params = [{transform_indices = @transform_0, window_bounds = array<i64: 128, 64>}, {transform_indices = @transform_1, window_bounds = array<i64: 64, 512>}, {transform_indices = @transform_2, window_bounds = array<i64: 128, 512>}]} {
    %c0 = arith.constant 0 : index
    %c0_0 = arith.constant 0 : index
    %0 = vector.load %arg2[%c0, %c0_0] : memref<128x64xbf16, #tpu.memory_space<vmem>>, vector<128x64xbf16>
    %c0_1 = arith.constant 0 : index
    %c0_2 = arith.constant 0 : index
    %1 = vector.load %arg3[%c0_1, %c0_2] : memref<64x512xbf16, #tpu.memory_space<vmem>>, vector<64x512xbf16>
    %cst = arith.constant dense<0.000000e+00> : vector<128x512xf32>
    %2 = tpu.matmul %0, %1, %cst {dimension_numbers = #tpu.dot_dimension_numbers<[1], [0], [0], [1], [0, 0, 1, 1], [], []>} : vector<128x64xbf16>, vector<64x512xbf16>, vector<128x512xf32> -> vector<128x512xf32>
    %3 = arith.truncf %2 : vector<128x512xf32> to vector<128x512xbf16>
    %c0_3 = arith.constant 0 : index
    %c0_4 = arith.constant 0 : index
    %4 = vector.load %arg4[%c0_3, %c0_4] : memref<128x512xbf16, #tpu.memory_space<vmem>>, vector<128x512xbf16>
    tpu.vector_store %arg4[%c0_3, %c0_4], %3 {strides = array<i32>} : memref<128x512xbf16, #tpu.memory_space<vmem>>, vector<128x512xbf16>,
    return
  }
  func.func @transform_0(%arg0: i32, %arg1: i32) -> (i32, i32) {
    %c0_i32 = arith.constant 0 : i32
    %c0_i32_0 = arith.constant 0 : i32
    return %arg0, %c0_i32 : i32, i32
  }
  func.func @transform_1(%arg0: i32, %arg1: i32) -> (i32, i32) {
    %c0_i32 = arith.constant 0 : i32
    %c0_i32_0 = arith.constant 0 : i32
    return %c0_i32, %arg1 : i32, i32
  }
  func.func @transform_2(%arg0: i32, %arg1: i32) -> (i32, i32) {
    %c0_i32 = arith.constant 0 : i32
    return %arg0, %arg1 : i32, i32
  }
}

module attributes {stable_mosaic.version = 11 : i64} {
  func.func @_bn_apply_relu_kernel(%arg0: i32, %arg1: memref<16x512xf32, #tpu.memory_space<vmem>>, %arg2: memref<1x512xf32, #tpu.memory_space<vmem>>, %arg3: memref<1x512xf32, #tpu.memory_space<vmem>>, %arg4: memref<16x512xbf16, #tpu.memory_space<vmem>>) attributes {dimension_semantics = [#tpu.dimension_semantics<parallel>], iteration_bounds = array<i64: 1>, scalar_prefetch = 0 : i64, scratch_operands = 0 : i64, tpu.core_type = #tpu.core_type<tc>, window_params = [{transform_indices = @transform_0, window_bounds = array<i64: 16, 512>}, {pipeline_mode = #tpu.pipeline_mode<synchronous>, transform_indices = @transform_1, window_bounds = array<i64: 1, 512>}, {pipeline_mode = #tpu.pipeline_mode<synchronous>, transform_indices = @transform_2, window_bounds = array<i64: 1, 512>}, {transform_indices = @transform_3, window_bounds = array<i64: 16, 512>}]} {
    %c0 = arith.constant 0 : index
    %c0_0 = arith.constant 0 : index
    %0 = vector.load %arg1[%c0, %c0_0] : memref<16x512xf32, #tpu.memory_space<vmem>>, vector<16x512xf32>
    %c0_1 = arith.constant 0 : index
    %c0_2 = arith.constant 0 : index
    %1 = vector.load %arg2[%c0_1, %c0_2] : memref<1x512xf32, #tpu.memory_space<vmem>>, vector<1x512xf32>
    %2 = vector.broadcast %1 : vector<1x512xf32> to vector<16x512xf32>
    %3 = arith.mulf %0, %2 : vector<16x512xf32>
    %c0_3 = arith.constant 0 : index
    %c0_4 = arith.constant 0 : index
    %4 = vector.load %arg3[%c0_3, %c0_4] : memref<1x512xf32, #tpu.memory_space<vmem>>, vector<1x512xf32>
    %5 = vector.broadcast %4 : vector<1x512xf32> to vector<16x512xf32>
    %6 = arith.addf %3, %5 : vector<16x512xf32>
    %cst = arith.constant 0.000000e+00 : f32
    %7 = vector.broadcast %cst : f32 to vector<16x512xf32>
    %8 = arith.maximumf %6, %7 : vector<16x512xf32>
    %9 = arith.truncf %8 : vector<16x512xf32> to vector<16x512xbf16>
    %c0_5 = arith.constant 0 : index
    %c0_6 = arith.constant 0 : index
    %10 = vector.load %arg4[%c0_5, %c0_6] : memref<16x512xbf16, #tpu.memory_space<vmem>>, vector<16x512xbf16>
    tpu.vector_store %arg4[%c0_5, %c0_6], %9 {strides = array<i32>} : memref<16x512xbf16, #tpu.memory_space<vmem>>, vector<16x512xbf16>,
    return
  }
  func.func @transform_0(%arg0: i32) -> (i32, i32) {
    %c0_i32 = arith.constant 0 : i32
    %c0_i32_0 = arith.constant 0 : i32
    return %arg0, %c0_i32 : i32, i32
  }
  func.func @transform_1(%arg0: i32) -> (i32, i32) {
    %c0_i32 = arith.constant 0 : i32
    %c0_i32_0 = arith.constant 0 : i32
    %c0_i32_1 = arith.constant 0 : i32
    return %c0_i32, %c0_i32_0 : i32, i32
  }
  func.func @transform_2(%arg0: i32) -> (i32, i32) {
    %c0_i32 = arith.constant 0 : i32
    %c0_i32_0 = arith.constant 0 : i32
    %c0_i32_1 = arith.constant 0 : i32
    return %c0_i32, %c0_i32_0 : i32, i32
  }
  func.func @transform_3(%arg0: i32) -> (i32, i32) {
    %c0_i32 = arith.constant 0 : i32
    %c0_i32_0 = arith.constant 0 : i32
    return %arg0, %c0_i32 : i32, i32
  }
}

module attributes {stable_mosaic.version = 11 : i64} {
  func.func @_bn_stats_kernel(%arg0: i32, %arg1: memref<32x512xf32, #tpu.memory_space<vmem>>, %arg2: memref<1x1x512xf32, #tpu.memory_space<vmem>>, %arg3: memref<1x1x512xf32, #tpu.memory_space<vmem>>) attributes {dimension_semantics = [#tpu.dimension_semantics<parallel>], iteration_bounds = array<i64: 1>, scalar_prefetch = 0 : i64, scratch_operands = 0 : i64, tpu.core_type = #tpu.core_type<tc>, window_params = [{transform_indices = @transform_0, window_bounds = array<i64: 32, 512>}, {transform_indices = @transform_1, window_bounds = array<i64: 1, 1, 512>}, {transform_indices = @transform_2, window_bounds = array<i64: 1, 1, 512>}]} {
    %c0 = arith.constant 0 : index
    %c0_0 = arith.constant 0 : index
    %0 = vector.load %arg1[%c0, %c0_0] : memref<32x512xf32, #tpu.memory_space<vmem>>, vector<32x512xf32>
    %cst = arith.constant dense<0.000000e+00> : vector<512xf32>
    %1 = vector.multi_reduction <add>, %0, %cst [0] : vector<32x512xf32> to vector<512xf32>
    %2 = vector.shape_cast %1 : vector<512xf32> to vector<1x512xf32>
    %3 = vector.shape_cast %2 : vector<1x512xf32> to vector<1x1x512xf32>
    %c0_1 = arith.constant 0 : index
    %c0_2 = arith.constant 0 : index
    %c0_3 = arith.constant 0 : index
    %4 = vector.load %arg2[%c0_1, %c0_2, %c0_3] : memref<1x1x512xf32, #tpu.memory_space<vmem>>, vector<1x1x512xf32>
    tpu.vector_store %arg2[%c0_1, %c0_2, %c0_3], %3 {strides = array<i32>} : memref<1x1x512xf32, #tpu.memory_space<vmem>>, vector<1x1x512xf32>,
    %5 = arith.mulf %0, %0 : vector<32x512xf32>
    %cst_4 = arith.constant dense<0.000000e+00> : vector<512xf32>
    %6 = vector.multi_reduction <add>, %5, %cst_4 [0] : vector<32x512xf32> to vector<512xf32>
    %7 = vector.shape_cast %6 : vector<512xf32> to vector<1x512xf32>
    %8 = vector.shape_cast %7 : vector<1x512xf32> to vector<1x1x512xf32>
    %c0_5 = arith.constant 0 : index
    %c0_6 = arith.constant 0 : index
    %c0_7 = arith.constant 0 : index
    %9 = vector.load %arg3[%c0_5, %c0_6, %c0_7] : memref<1x1x512xf32, #tpu.memory_space<vmem>>, vector<1x1x512xf32>
    tpu.vector_store %arg3[%c0_5, %c0_6, %c0_7], %8 {strides = array<i32>} : memref<1x1x512xf32, #tpu.memory_space<vmem>>, vector<1x1x512xf32>,
    return
  }
  func.func @transform_0(%arg0: i32) -> (i32, i32) {
    %c0_i32 = arith.constant 0 : i32
    %c0_i32_0 = arith.constant 0 : i32
    return %arg0, %c0_i32 : i32, i32
  }
  func.func @transform_1(%arg0: i32) -> (i32, i32, i32) {
    %c0_i32 = arith.constant 0 : i32
    %c0_i32_0 = arith.constant 0 : i32
    %c0_i32_1 = arith.constant 0 : i32
    return %arg0, %c0_i32, %c0_i32_0 : i32, i32, i32
  }
  func.func @transform_2(%arg0: i32) -> (i32, i32, i32) {
    %c0_i32 = arith.constant 0 : i32
    %c0_i32_0 = arith.constant 0 : i32
    %c0_i32_1 = arith.constant 0 : i32
    return %arg0, %c0_i32, %c0_i32_0 : i32, i32, i32
  }
}

module attributes {stable_mosaic.version = 11 : i64} {
  func.func @_bn_apply_relu_kernel(%arg0: i32, %arg1: memref<32x512xf32, #tpu.memory_space<vmem>>, %arg2: memref<1x512xf32, #tpu.memory_space<vmem>>, %arg3: memref<1x512xf32, #tpu.memory_space<vmem>>, %arg4: memref<32x512xbf16, #tpu.memory_space<vmem>>) attributes {dimension_semantics = [#tpu.dimension_semantics<parallel>], iteration_bounds = array<i64: 1>, scalar_prefetch = 0 : i64, scratch_operands = 0 : i64, tpu.core_type = #tpu.core_type<tc>, window_params = [{transform_indices = @transform_0, window_bounds = array<i64: 32, 512>}, {pipeline_mode = #tpu.pipeline_mode<synchronous>, transform_indices = @transform_1, window_bounds = array<i64: 1, 512>}, {pipeline_mode = #tpu.pipeline_mode<synchronous>, transform_indices = @transform_2, window_bounds = array<i64: 1, 512>}, {transform_indices = @transform_3, window_bounds = array<i64: 32, 512>}]} {
    %c0 = arith.constant 0 : index
    %c0_0 = arith.constant 0 : index
    %0 = vector.load %arg1[%c0, %c0_0] : memref<32x512xf32, #tpu.memory_space<vmem>>, vector<32x512xf32>
    %c0_1 = arith.constant 0 : index
    %c0_2 = arith.constant 0 : index
    %1 = vector.load %arg2[%c0_1, %c0_2] : memref<1x512xf32, #tpu.memory_space<vmem>>, vector<1x512xf32>
    %2 = vector.broadcast %1 : vector<1x512xf32> to vector<32x512xf32>
    %3 = arith.mulf %0, %2 : vector<32x512xf32>
    %c0_3 = arith.constant 0 : index
    %c0_4 = arith.constant 0 : index
    %4 = vector.load %arg3[%c0_3, %c0_4] : memref<1x512xf32, #tpu.memory_space<vmem>>, vector<1x512xf32>
    %5 = vector.broadcast %4 : vector<1x512xf32> to vector<32x512xf32>
    %6 = arith.addf %3, %5 : vector<32x512xf32>
    %cst = arith.constant 0.000000e+00 : f32
    %7 = vector.broadcast %cst : f32 to vector<32x512xf32>
    %8 = arith.maximumf %6, %7 : vector<32x512xf32>
    %9 = arith.truncf %8 : vector<32x512xf32> to vector<32x512xbf16>
    %c0_5 = arith.constant 0 : index
    %c0_6 = arith.constant 0 : index
    %10 = vector.load %arg4[%c0_5, %c0_6] : memref<32x512xbf16, #tpu.memory_space<vmem>>, vector<32x512xbf16>
    tpu.vector_store %arg4[%c0_5, %c0_6], %9 {strides = array<i32>} : memref<32x512xbf16, #tpu.memory_space<vmem>>, vector<32x512xbf16>,
    return
  }
  func.func @transform_0(%arg0: i32) -> (i32, i32) {
    %c0_i32 = arith.constant 0 : i32
    %c0_i32_0 = arith.constant 0 : i32
    return %arg0, %c0_i32 : i32, i32
  }
  func.func @transform_1(%arg0: i32) -> (i32, i32) {
    %c0_i32 = arith.constant 0 : i32
    %c0_i32_0 = arith.constant 0 : i32
    %c0_i32_1 = arith.constant 0 : i32
    return %c0_i32, %c0_i32_0 : i32, i32
  }
  func.func @transform_2(%arg0: i32) -> (i32, i32) {
    %c0_i32 = arith.constant 0 : i32
    %c0_i32_0 = arith.constant 0 : i32
    %c0_i32_1 = arith.constant 0 : i32
    return %c0_i32, %c0_i32_0 : i32, i32
  }
  func.func @transform_3(%arg0: i32) -> (i32, i32) {
    %c0_i32 = arith.constant 0 : i32
    %c0_i32_0 = arith.constant 0 : i32
    return %arg0, %c0_i32 : i32, i32
  }
}

module attributes {stable_mosaic.version = 11 : i64} {
  func.func @_matmul_kernel(%arg0: i32, %arg1: i32, %arg2: memref<512x32xbf16, #tpu.memory_space<vmem>>, %arg3: memref<32x256xbf16, #tpu.memory_space<vmem>>, %arg4: memref<512x256xbf16, #tpu.memory_space<vmem>>) attributes {dimension_semantics = [#tpu.dimension_semantics<parallel>, #tpu.dimension_semantics<parallel>], iteration_bounds = array<i64: 1, 1>, scalar_prefetch = 0 : i64, scratch_operands = 0 : i64, tpu.core_type = #tpu.core_type<tc>, window_params = [{transform_indices = @transform_0, window_bounds = array<i64: 512, 32>}, {transform_indices = @transform_1, window_bounds = array<i64: 32, 256>}, {transform_indices = @transform_2, window_bounds = array<i64: 512, 256>}]} {
    %c0 = arith.constant 0 : index
    %c0_0 = arith.constant 0 : index
    %0 = vector.load %arg2[%c0, %c0_0] : memref<512x32xbf16, #tpu.memory_space<vmem>>, vector<512x32xbf16>
    %c0_1 = arith.constant 0 : index
    %c0_2 = arith.constant 0 : index
    %1 = vector.load %arg3[%c0_1, %c0_2] : memref<32x256xbf16, #tpu.memory_space<vmem>>, vector<32x256xbf16>
    %cst = arith.constant dense<0.000000e+00> : vector<512x256xf32>
    %2 = tpu.matmul %0, %1, %cst {dimension_numbers = #tpu.dot_dimension_numbers<[1], [0], [0], [1], [0, 0, 1, 1], [], []>} : vector<512x32xbf16>, vector<32x256xbf16>, vector<512x256xf32> -> vector<512x256xf32>
    %3 = arith.truncf %2 : vector<512x256xf32> to vector<512x256xbf16>
    %c0_3 = arith.constant 0 : index
    %c0_4 = arith.constant 0 : index
    %4 = vector.load %arg4[%c0_3, %c0_4] : memref<512x256xbf16, #tpu.memory_space<vmem>>, vector<512x256xbf16>
    tpu.vector_store %arg4[%c0_3, %c0_4], %3 {strides = array<i32>} : memref<512x256xbf16, #tpu.memory_space<vmem>>, vector<512x256xbf16>,
    return
  }
  func.func @transform_0(%arg0: i32, %arg1: i32) -> (i32, i32) {
    %c0_i32 = arith.constant 0 : i32
    %c0_i32_0 = arith.constant 0 : i32
    return %arg0, %c0_i32 : i32, i32
  }
  func.func @transform_1(%arg0: i32, %arg1: i32) -> (i32, i32) {
    %c0_i32 = arith.constant 0 : i32
    %c0_i32_0 = arith.constant 0 : i32
    return %c0_i32, %arg1 : i32, i32
  }
  func.func @transform_2(%arg0: i32, %arg1: i32) -> (i32, i32) {
    %c0_i32 = arith.constant 0 : i32
    return %arg0, %arg1 : i32, i32
  }
}

module attributes {stable_mosaic.version = 11 : i64} {
  func.func @_bn_stats_kernel(%arg0: i32, %arg1: memref<64x512xf32, #tpu.memory_space<vmem>>, %arg2: memref<1x1x512xf32, #tpu.memory_space<vmem>>, %arg3: memref<1x1x512xf32, #tpu.memory_space<vmem>>) attributes {dimension_semantics = [#tpu.dimension_semantics<parallel>], iteration_bounds = array<i64: 1>, scalar_prefetch = 0 : i64, scratch_operands = 0 : i64, tpu.core_type = #tpu.core_type<tc>, window_params = [{transform_indices = @transform_0, window_bounds = array<i64: 64, 512>}, {transform_indices = @transform_1, window_bounds = array<i64: 1, 1, 512>}, {transform_indices = @transform_2, window_bounds = array<i64: 1, 1, 512>}]} {
    %c0 = arith.constant 0 : index
    %c0_0 = arith.constant 0 : index
    %0 = vector.load %arg1[%c0, %c0_0] : memref<64x512xf32, #tpu.memory_space<vmem>>, vector<64x512xf32>
    %cst = arith.constant dense<0.000000e+00> : vector<512xf32>
    %1 = vector.multi_reduction <add>, %0, %cst [0] : vector<64x512xf32> to vector<512xf32>
    %2 = vector.shape_cast %1 : vector<512xf32> to vector<1x512xf32>
    %3 = vector.shape_cast %2 : vector<1x512xf32> to vector<1x1x512xf32>
    %c0_1 = arith.constant 0 : index
    %c0_2 = arith.constant 0 : index
    %c0_3 = arith.constant 0 : index
    %4 = vector.load %arg2[%c0_1, %c0_2, %c0_3] : memref<1x1x512xf32, #tpu.memory_space<vmem>>, vector<1x1x512xf32>
    tpu.vector_store %arg2[%c0_1, %c0_2, %c0_3], %3 {strides = array<i32>} : memref<1x1x512xf32, #tpu.memory_space<vmem>>, vector<1x1x512xf32>,
    %5 = arith.mulf %0, %0 : vector<64x512xf32>
    %cst_4 = arith.constant dense<0.000000e+00> : vector<512xf32>
    %6 = vector.multi_reduction <add>, %5, %cst_4 [0] : vector<64x512xf32> to vector<512xf32>
    %7 = vector.shape_cast %6 : vector<512xf32> to vector<1x512xf32>
    %8 = vector.shape_cast %7 : vector<1x512xf32> to vector<1x1x512xf32>
    %c0_5 = arith.constant 0 : index
    %c0_6 = arith.constant 0 : index
    %c0_7 = arith.constant 0 : index
    %9 = vector.load %arg3[%c0_5, %c0_6, %c0_7] : memref<1x1x512xf32, #tpu.memory_space<vmem>>, vector<1x1x512xf32>
    tpu.vector_store %arg3[%c0_5, %c0_6, %c0_7], %8 {strides = array<i32>} : memref<1x1x512xf32, #tpu.memory_space<vmem>>, vector<1x1x512xf32>,
    return
  }
  func.func @transform_0(%arg0: i32) -> (i32, i32) {
    %c0_i32 = arith.constant 0 : i32
    %c0_i32_0 = arith.constant 0 : i32
    return %arg0, %c0_i32 : i32, i32
  }
  func.func @transform_1(%arg0: i32) -> (i32, i32, i32) {
    %c0_i32 = arith.constant 0 : i32
    %c0_i32_0 = arith.constant 0 : i32
    %c0_i32_1 = arith.constant 0 : i32
    return %arg0, %c0_i32, %c0_i32_0 : i32, i32, i32
  }
  func.func @transform_2(%arg0: i32) -> (i32, i32, i32) {
    %c0_i32 = arith.constant 0 : i32
    %c0_i32_0 = arith.constant 0 : i32
    %c0_i32_1 = arith.constant 0 : i32
    return %arg0, %c0_i32, %c0_i32_0 : i32, i32, i32
  }
}

module attributes {stable_mosaic.version = 11 : i64} {
  func.func @_bn_apply_relu_kernel(%arg0: i32, %arg1: memref<64x512xf32, #tpu.memory_space<vmem>>, %arg2: memref<1x512xf32, #tpu.memory_space<vmem>>, %arg3: memref<1x512xf32, #tpu.memory_space<vmem>>, %arg4: memref<64x512xbf16, #tpu.memory_space<vmem>>) attributes {dimension_semantics = [#tpu.dimension_semantics<parallel>], iteration_bounds = array<i64: 1>, scalar_prefetch = 0 : i64, scratch_operands = 0 : i64, tpu.core_type = #tpu.core_type<tc>, window_params = [{transform_indices = @transform_0, window_bounds = array<i64: 64, 512>}, {pipeline_mode = #tpu.pipeline_mode<synchronous>, transform_indices = @transform_1, window_bounds = array<i64: 1, 512>}, {pipeline_mode = #tpu.pipeline_mode<synchronous>, transform_indices = @transform_2, window_bounds = array<i64: 1, 512>}, {transform_indices = @transform_3, window_bounds = array<i64: 64, 512>}]} {
    %c0 = arith.constant 0 : index
    %c0_0 = arith.constant 0 : index
    %0 = vector.load %arg1[%c0, %c0_0] : memref<64x512xf32, #tpu.memory_space<vmem>>, vector<64x512xf32>
    %c0_1 = arith.constant 0 : index
    %c0_2 = arith.constant 0 : index
    %1 = vector.load %arg2[%c0_1, %c0_2] : memref<1x512xf32, #tpu.memory_space<vmem>>, vector<1x512xf32>
    %2 = vector.broadcast %1 : vector<1x512xf32> to vector<64x512xf32>
    %3 = arith.mulf %0, %2 : vector<64x512xf32>
    %c0_3 = arith.constant 0 : index
    %c0_4 = arith.constant 0 : index
    %4 = vector.load %arg3[%c0_3, %c0_4] : memref<1x512xf32, #tpu.memory_space<vmem>>, vector<1x512xf32>
    %5 = vector.broadcast %4 : vector<1x512xf32> to vector<64x512xf32>
    %6 = arith.addf %3, %5 : vector<64x512xf32>
    %cst = arith.constant 0.000000e+00 : f32
    %7 = vector.broadcast %cst : f32 to vector<64x512xf32>
    %8 = arith.maximumf %6, %7 : vector<64x512xf32>
    %9 = arith.truncf %8 : vector<64x512xf32> to vector<64x512xbf16>
    %c0_5 = arith.constant 0 : index
    %c0_6 = arith.constant 0 : index
    %10 = vector.load %arg4[%c0_5, %c0_6] : memref<64x512xbf16, #tpu.memory_space<vmem>>, vector<64x512xbf16>
    tpu.vector_store %arg4[%c0_5, %c0_6], %9 {strides = array<i32>} : memref<64x512xbf16, #tpu.memory_space<vmem>>, vector<64x512xbf16>,
    return
  }
  func.func @transform_0(%arg0: i32) -> (i32, i32) {
    %c0_i32 = arith.constant 0 : i32
    %c0_i32_0 = arith.constant 0 : i32
    return %arg0, %c0_i32 : i32, i32
  }
  func.func @transform_1(%arg0: i32) -> (i32, i32) {
    %c0_i32 = arith.constant 0 : i32
    %c0_i32_0 = arith.constant 0 : i32
    %c0_i32_1 = arith.constant 0 : i32
    return %c0_i32, %c0_i32_0 : i32, i32
  }
  func.func @transform_2(%arg0: i32) -> (i32, i32) {
    %c0_i32 = arith.constant 0 : i32
    %c0_i32_0 = arith.constant 0 : i32
    %c0_i32_1 = arith.constant 0 : i32
    return %c0_i32, %c0_i32_0 : i32, i32
  }
  func.func @transform_3(%arg0: i32) -> (i32, i32) {
    %c0_i32 = arith.constant 0 : i32
    %c0_i32_0 = arith.constant 0 : i32
    return %arg0, %c0_i32 : i32, i32
  }
}

module attributes {stable_mosaic.version = 11 : i64} {
  func.func @_matmul_kernel(%arg0: i32, %arg1: i32, %arg2: memref<512x16xbf16, #tpu.memory_space<vmem>>, %arg3: memref<16x48xbf16, #tpu.memory_space<vmem>>, %arg4: memref<512x48xbf16, #tpu.memory_space<vmem>>) attributes {dimension_semantics = [#tpu.dimension_semantics<parallel>, #tpu.dimension_semantics<parallel>], iteration_bounds = array<i64: 4, 1>, scalar_prefetch = 0 : i64, scratch_operands = 0 : i64, tpu.core_type = #tpu.core_type<tc>, window_params = [{transform_indices = @transform_0, window_bounds = array<i64: 512, 16>}, {transform_indices = @transform_1, window_bounds = array<i64: 16, 48>}, {transform_indices = @transform_2, window_bounds = array<i64: 512, 48>}]} {
    %c0 = arith.constant 0 : index
    %c0_0 = arith.constant 0 : index
    %0 = vector.load %arg2[%c0, %c0_0] : memref<512x16xbf16, #tpu.memory_space<vmem>>, vector<512x16xbf16>
    %c0_1 = arith.constant 0 : index
    %c0_2 = arith.constant 0 : index
    %1 = vector.load %arg3[%c0_1, %c0_2] : memref<16x48xbf16, #tpu.memory_space<vmem>>, vector<16x48xbf16>
    %cst = arith.constant dense<0.000000e+00> : vector<512x48xf32>
    %2 = tpu.matmul %0, %1, %cst {dimension_numbers = #tpu.dot_dimension_numbers<[1], [0], [0], [1], [0, 0, 1, 1], [], []>} : vector<512x16xbf16>, vector<16x48xbf16>, vector<512x48xf32> -> vector<512x48xf32>
    %3 = arith.truncf %2 : vector<512x48xf32> to vector<512x48xbf16>
    %c0_3 = arith.constant 0 : index
    %c0_4 = arith.constant 0 : index
    %4 = vector.load %arg4[%c0_3, %c0_4] : memref<512x48xbf16, #tpu.memory_space<vmem>>, vector<512x48xbf16>
    tpu.vector_store %arg4[%c0_3, %c0_4], %3 {strides = array<i32>} : memref<512x48xbf16, #tpu.memory_space<vmem>>, vector<512x48xbf16>,
    return
  }
  func.func @transform_0(%arg0: i32, %arg1: i32) -> (i32, i32) {
    %c0_i32 = arith.constant 0 : i32
    %c0_i32_0 = arith.constant 0 : i32
    return %arg0, %c0_i32 : i32, i32
  }
  func.func @transform_1(%arg0: i32, %arg1: i32) -> (i32, i32) {
    %c0_i32 = arith.constant 0 : i32
    %c0_i32_0 = arith.constant 0 : i32
    return %c0_i32, %arg1 : i32, i32
  }
  func.func @transform_2(%arg0: i32, %arg1: i32) -> (i32, i32) {
    %c0_i32 = arith.constant 0 : i32
    return %arg0, %arg1 : i32, i32
  }
}

module attributes {stable_mosaic.version = 11 : i64} {
  func.func @_bias_tanh_kernel(%arg0: i32, %arg1: memref<128x192xf32, #tpu.memory_space<vmem>>, %arg2: memref<1x192xf32, #tpu.memory_space<vmem>>, %arg3: memref<128x192xf32, #tpu.memory_space<vmem>>) attributes {dimension_semantics = [#tpu.dimension_semantics<parallel>], iteration_bounds = array<i64: 1>, scalar_prefetch = 0 : i64, scratch_operands = 0 : i64, tpu.core_type = #tpu.core_type<tc>, window_params = [{transform_indices = @transform_0, window_bounds = array<i64: 128, 192>}, {pipeline_mode = #tpu.pipeline_mode<synchronous>, transform_indices = @transform_1, window_bounds = array<i64: 1, 192>}, {transform_indices = @transform_2, window_bounds = array<i64: 128, 192>}]} {
    %c0 = arith.constant 0 : index
    %c0_0 = arith.constant 0 : index
    %0 = vector.load %arg1[%c0, %c0_0] : memref<128x192xf32, #tpu.memory_space<vmem>>, vector<128x192xf32>
    %c0_1 = arith.constant 0 : index
    %c0_2 = arith.constant 0 : index
    %1 = vector.load %arg2[%c0_1, %c0_2] : memref<1x192xf32, #tpu.memory_space<vmem>>, vector<1x192xf32>
    %2 = vector.broadcast %1 : vector<1x192xf32> to vector<128x192xf32>
    %3 = arith.addf %0, %2 : vector<128x192xf32>
    %4 = math.tanh %3 : vector<128x192xf32>
    %c0_3 = arith.constant 0 : index
    %c0_4 = arith.constant 0 : index
    %5 = vector.load %arg3[%c0_3, %c0_4] : memref<128x192xf32, #tpu.memory_space<vmem>>, vector<128x192xf32>
    tpu.vector_store %arg3[%c0_3, %c0_4], %4 {strides = array<i32>} : memref<128x192xf32, #tpu.memory_space<vmem>>, vector<128x192xf32>,
    return
  }
  func.func @transform_0(%arg0: i32) -> (i32, i32) {
    %c0_i32 = arith.constant 0 : i32
    %c0_i32_0 = arith.constant 0 : i32
    return %arg0, %c0_i32 : i32, i32
  }
  func.func @transform_1(%arg0: i32) -> (i32, i32) {
    %c0_i32 = arith.constant 0 : i32
    %c0_i32_0 = arith.constant 0 : i32
    %c0_i32_1 = arith.constant 0 : i32
    return %c0_i32, %c0_i32_0 : i32, i32
  }
  func.func @transform_2(%arg0: i32) -> (i32, i32) {
    %c0_i32 = arith.constant 0 : i32
    %c0_i32_0 = arith.constant 0 : i32
    return %arg0, %c0_i32 : i32, i32
  }
}

</mosaic_0001>

<llo_original>
// kernel: generator_forward.14
$region0: #{generator_forward.14}
  #allocation0 [shape = 'u32[]', space=smem, size = 0x4, offset = 0x4, fixed_abs, tag = 'smem constant byte address 0x4 - core index']
  #allocation1 [shape = 'u32[72,128]{1,0:T(1,128)}', space=vmem, size = 0x9000, scoped, tag = 'internal scratch']
  %s0 = inlined_call_operand.vmem [shape: bf16[2,32], index: 0, kind: input, shape index: {}]
  %s1 = inlined_call_operand.hbm [shape: bf16[32,2048], index: 1, kind: input, shape index: {}]
  %s2 = inlined_call_operand.vmem [shape: bf16[2,2048], index: 2, kind: output, shape index: {}]
  %s3 = sld [smem:[#allocation0]]
  $region45: #{generator_forward.14} parent=0
    _
  %s5 = ssub.s32 1, %s3
  %s6 = scalar_select 0, %s5, %s3
  $region1: #{generator_forward.14} parent=0
    #allocation2 [shape = 'u8[65536]{0}', space=vmem, size = 0x10000, scoped, tag = 'input window, operand 1']
    #allocation3 [shape = 's32[2]{0}', space=sflag, size = 0x8, scoped, tag = 'scoped memory for generator_forward.14']
    %7 = vsyncpa [#allocation3], 0
    %s8 = scalar_lea.sflag [#allocation3], 1
    %9 = vsyncpa %s8, 0
    loop: start=0, step=1, limit=6
    $region2: #{generator_forward.14} parent=1 // loop_pre_header
      _
    $region3: #{generator_forward.14} parent=1 // loop_header
      %s11 = sphi 0, %s15
      %p12 = scmp.ge.s32.totalorder %s11, 6
      %s18 = sphi 0, %s30
      %s19 = sphi 0, %s26
      %s20 = sphi 0, %s18
      %s21 = sphi 0, %s19
      %s22 = sphi 0, %s20
      %s23 = sphi 0, %s21
      %s33 = sphi 0, %s35
      %s36 = sphi 0, %s33
      %s37 = sphi 0, %s36
      %s53 = sphi 0, %s37
      %s59 = sphi 0, %s61
      %s62 = sphi 0, %s59
      %s63 = sphi 0, %s62
      %s79 = sphi 0, %s63
      %s87 = sphi 0, %s89
      %s90 = sphi 0, %s87
      %s91 = sphi 0, %s90
      %s107 = sphi 0, %s91
    $region4: #{generator_forward.14} parent=1 // loop_header_branch
      %14 = sbr.rel (%p12) target = $region8
    $region5: #{generator_forward.14} parent=1 // loop_body
      %s16 = ssub.s32 %s11, 1
      %s17 = ssub.s32 %s11, 2
      %s24 = sadd.s32 1, %s19
      %p25 = scmp.ge.s32.totalorder %s24, 4
      %s26 = scalar_select %p25, 0, %s24
      %s27 = sadd.s32 1, %s18
      %s28 = scalar_select %p25, %s27, %s18
      %p29 = scmp.ge.s32.totalorder %s28, 1
      %s30 = scalar_select %p29, 0, %s28
      %s31 = ssub.s32 %s18, %s30
      %p32 = scmp.eq.s32.totalorder %s31, 0
      %s34 = sadd.s32 %s33, 1
      %s35 = scalar_select %p32, %s33, %s34
      %p38 = pneg %p32
      %p39 = scmp.eq.s32.totalorder %s11, 3
      %p40 = por %p38, %p39
      %p41 = scmp.ne.s32.totalorder %s33, %s36
      %p42 = scmp.eq.s32.totalorder %s11, 0
      %p43 = por %p41, %p42
      %p44 = scmp.ne.s32.totalorder %s33, %s36
      %p45 = scmp.eq.s32.totalorder %s16, 3
      %p46 = por %p44, %p45
      %p47 = scmp.ne.s32.totalorder %s36, %s37
      %p48 = scmp.eq.s32.totalorder %s16, 0
      %p49 = por %p47, %p48
      %p50 = scmp.ne.s32.totalorder %s36, %s37
      %p51 = scmp.eq.s32.totalorder %s17, 3
      %p52 = por %p50, %p51
      %p54 = scmp.ne.s32.totalorder %s37, %s53
      %p55 = scmp.eq.s32.totalorder %s17, 0
      %p56 = por %p54, %p55
      %s57 = ssub.s32 %s19, %s26
      %p58 = scmp.eq.s32.totalorder %s57, 0
      %s60 = sadd.s32 %s59, 1
      %s61 = scalar_select %p58, %s59, %s60
      %p64 = pneg %p58
      %p65 = scmp.eq.s32.totalorder %s11, 3
      %p66 = por %p64, %p65
      %p67 = scmp.ne.s32.totalorder %s59, %s62
      %p68 = scmp.eq.s32.totalorder %s11, 0
      %p69 = por %p67, %p68
      %p70 = scmp.ne.s32.totalorder %s59, %s62
      %p71 = scmp.eq.s32.totalorder %s16, 3
      %p72 = por %p70, %p71
      %p73 = scmp.ne.s32.totalorder %s62, %s63
      %p74 = scmp.eq.s32.totalorder %s16, 0
      %p75 = por %p73, %p74
      %p76 = scmp.ne.s32.totalorder %s62, %s63
      %p77 = scmp.eq.s32.totalorder %s17, 3
      %p78 = por %p76, %p77
      %p80 = scmp.ne.s32.totalorder %s63, %s79
      %p81 = scmp.eq.s32.totalorder %s17, 0
      %p82 = por %p80, %p81
      %s83 = ssub.s32 %s18, %s30
      %s84 = ssub.s32 %s19, %s26
      %s85 = sor.u32 %s83, %s84
      %p86 = scmp.eq.s32.totalorder %s85, 0
      %s88 = sadd.s32 %s87, 1
      %s89 = scalar_select %p86, %s87, %s88
      %p92 = pneg %p86
      %p93 = scmp.eq.s32.totalorder %s11, 3
      %p94 = por %p92, %p93
      %p95 = scmp.ne.s32.totalorder %s87, %s90
      %p96 = scmp.eq.s32.totalorder %s11, 0
      %p97 = por %p95, %p96
      %p98 = scmp.ne.s32.totalorder %s87, %s90
      %p99 = scmp.eq.s32.totalorder %s16, 3
      %p100 = por %p98, %p99
      %p101 = scmp.ne.s32.totalorder %s90, %s91
      %p102 = scmp.eq.s32.totalorder %s16, 0
      %p103 = por %p101, %p102
      %p104 = scmp.ne.s32.totalorder %s90, %s91
      %p105 = scmp.eq.s32.totalorder %s17, 3
      %p106 = por %p104, %p105
      %p108 = scmp.ne.s32.totalorder %s91, %s107
      %p109 = scmp.eq.s32.totalorder %s17, 0
      %p110 = por %p108, %p109
      %p111 = scmp.le.s32.totalorder 1, %s11
      %p112 = scmp.lt.s32.totalorder %s11, 5
      %p113 = pnand %p111, %p112
      %p114 = pneg %p113
      // Predicated region
      $region9: #{generator_forward.14} parent=5 // pred_check
        _
      $region10: #{generator_forward.14} parent=5 // pred_check_branch
        %116 = sbr.rel (%p113) target = $region12
      $region11: #{generator_forward.14} parent=5 // pred_region
        %s117 = ssub.s32 %s11, 1
        // Predicated region
        $region13: #{generator_forward.14} parent=11 // pred_check
          %p118 = pneg %p49
        $region14: #{generator_forward.14} parent=11 // pred_check_branch
          %120 = sbr.rel (%p118) target = $region16
        $region15: #{generator_forward.14} parent=11 // pred_region
          %p121 = scmp.lt.s32.totalorder %s20, 0
          %s122 = scalar_select %p121, %s20, 0
          %s123 = scalar_lea.vmem %s0, %s122
        $region16: #{generator_forward.14} parent=11 // pred_fallthru
          _
      $region12: #{generator_forward.14} parent=5 // pred_fallthru
        _
      %p124 = scmp.lt.s32.totalorder %s11, 4
      // Predicated region
      $region17: #{generator_forward.14} parent=5 // pred_check
        %p125 = pneg %p124
      $region18: #{generator_forward.14} parent=5 // pred_check_branch
        %127 = sbr.rel (%p125) target = $region20
      $region19: #{generator_forward.14} parent=5 // pred_region
        // Predicated region
        $region21: #{generator_forward.14} parent=19 // pred_check
          %p128 = pneg %p69
        $region22: #{generator_forward.14} parent=19 // pred_check_branch
          %130 = sbr.rel (%p128) target = $region24
        $region23: #{generator_forward.14} parent=19 // pred_region
          %s131 = sand.u32 %s59, 1
          %s132 = scalar_lea.sflag [#allocation3], %s131
          %s133 = sand.u32 %s59, 1
          %s134 = smul.addr %s133, 64
          %s135 = scalar_lea.vmem [#allocation2], %s134
          %s136 = smul.u32 4, %s19
          %138 = vsyncadd %s132, 0
          %s139 = smul.addr %s136, 4
          %s140 = scalar_lea.hbm %s1, %s139
          %s141 = sshll.u32 %s140, 4
          %s142 = int_to_ptr.hbm [resolvable:$true] %s141
          %s143 = sshll.u32 %s135, 4
          %s144 = int_to_ptr.vmem [resolvable:$true] %s143
          %149 = dma.hbm_to_vmem [thread:$0]  %s142, 1024, %s144, %s132, 1024, 256, 16
        $region24: #{generator_forward.14} parent=19 // pred_fallthru
          _
      $region20: #{generator_forward.14} parent=5 // pred_fallthru
        _
      %p150 = scmp.le.s32.totalorder 1, %s11
      %p151 = scmp.lt.s32.totalorder %s11, 5
      %p152 = pnand %p150, %p151
      %p153 = pneg %p152
      // Predicated region
      $region25: #{generator_forward.14} parent=5 // pred_check
        _
      $region26: #{generator_forward.14} parent=5 // pred_check_branch
        %155 = sbr.rel (%p152) target = $region28
      $region27: #{generator_forward.14} parent=5 // pred_region
        %s156 = ssub.s32 %s11, 1
        %s157 = sand.u32 %s62, 1
        %s158 = scalar_lea.sflag [#allocation3], %s157
        %s159 = sand.u32 %s62, 1
        %s160 = smul.addr %s159, 64
        %s161 = scalar_lea.vmem [#allocation2], %s160
        // Predicated region
        $region29: #{generator_forward.14} parent=27 // pred_check
          %p162 = pneg %p75
        $region30: #{generator_forward.14} parent=27 // pred_check_branch
          %164 = sbr.rel (%p162) target = $region32
        $region31: #{generator_forward.14} parent=27 // pred_region
          %166 = dma.done %s158, 1024
        $region32: #{generator_forward.14} parent=27 // pred_fallthru
          _
        %p167 = scmp.lt.s32.totalorder %s20, 0
        %s168 = scalar_select %p167, %s20, 0
        %s169 = scalar_lea.vmem %s0, %s168
        %p170 = pneg %p49
        %p171 = pneg %p46
        %s172 = sand.u32 %s62, 1
        %s173 = scalar_lea.sflag [#allocation3], %s172
        %s174 = sand.u32 %s62, 1
        %s175 = smul.addr %s174, 64
        %s176 = scalar_lea.vmem [#allocation2], %s175
        %p177 = pneg %p75
        %p178 = pneg %p72
        %p179 = pneg %p103
        %p180 = pneg %p100
        %s181 = smul.u32 4, %s21
        %p182 = scmp.lt.s32.totalorder %s20, 0
        %s183 = scalar_select %p182, %s20, 0
        %p184 = scmp.lt.s32.totalorder %s181, 15
        %s185 = scalar_select %p184, %s181, 15
        %s186 = smul.addr %s183, 16
        %s187 = sadd.s32 %s185, %s186
        %s188 = scalar_lea.vmem %s2, %s187
        %p189 = scmp.lt.s32.totalorder %s20, 0
        %s190 = scalar_select %p189, %s20, 0
        %s191 = scalar_lea.vmem %s0, %s190
        %s192 = smul.u32 4, %s21
        %s193 = smul.u32 4, %s21
        %p194 = scmp.lt.s32.totalorder %s20, 0
        %s195 = scalar_select %p194, %s20, 0
        %p196 = scmp.lt.s32.totalorder %s193, 15
        %s197 = scalar_select %p196, %s193, 15
        %s198 = smul.addr %s195, 16
        %s199 = sadd.s32 %s197, %s198
        %s200 = scalar_lea.vmem %s2, %s199
        %s201 = smul.u32 4, %s21
        %v203 = vld [vmem:[%s191] sm:$0x1]
        %v204 = vld [vmem:[%s161] sm:$0xff]
        %v205 = vld [vmem:[%s161 + $0x8] sm:$0xff]
        %v206 = vld [vmem:[%s161 + $0x10] sm:$0xff]
        %v207 = vld [vmem:[%s161 + $0x18] sm:$0xff]
        %v208 = vld [vmem:[%s161 + $0x20] sm:$0xff]
        %v209 = vld [vmem:[%s161 + $0x28] sm:$0xff]
        %v210 = vld [vmem:[%s161 + $0x30] sm:$0xff]
        %v211 = vld [vmem:[%s161 + $0x38] sm:$0xff]
        %v220 = vunpack.c.l.b16 %v204
        %v221 = vunpack.c.h.b16 %v204
        %v222 = vunpack.c.l.b16 %v205
        %v223 = vunpack.c.h.b16 %v205
        %v224 = vunpack.c.l.b16 %v206
        %v225 = vunpack.c.h.b16 %v206
        %v226 = vunpack.c.l.b16 %v207
        %v227 = vunpack.c.h.b16 %v207
        %v228 = vunpack.c.l.b16 %v208
        %v229 = vunpack.c.h.b16 %v208
        %v230 = vunpack.c.l.b16 %v209
        %v231 = vunpack.c.h.b16 %v209
        %v232 = vunpack.c.l.b16 %v210
        %v233 = vunpack.c.h.b16 %v210
        %v234 = vunpack.c.l.b16 %v211
        %v235 = vunpack.c.h.b16 %v211
        %v236 = vpack.c.b16 %v224, %v220
        %v237 = vpack.c.b16 %v225, %v221
        %v238 = vpack.c.b16 %v226, %v222
        %v239 = vpack.c.b16 %v227, %v223
        %v240 = vpack.c.b16 %v232, %v228
        %v241 = vpack.c.b16 %v233, %v229
        %v242 = vpack.c.b16 %v234, %v230
        %v243 = vpack.c.b16 %v235, %v231
        %vm252 = vcmask 261120
        %v254 = vsel %vm252, %v203, 0
        %256 = vmatpush.bf16.msra.mxu0 0
        %257 = vmatpush.bf16.msra.mxu0 0
        %258 = vmatpush.bf16.msra.mxu0 0
        %259 = vmatpush.bf16.msra.mxu0 0
        %260 = vmatpush.bf16.msra.mxu0 0
        %261 = vmatpush.bf16.msra.mxu0 0
        %262 = vmatpush.bf16.msra.mxu0 %v240
        %263 = vmatpush.bf16.msra.mxu0 %v236
        %264 = vmatmul.bf16.gmra.mxu0 %v254
        %v265 = vpop.f32.mrf.mxu0
        %v266 = vadd.f32 0.0, %v265
        %v267 = vpop.f32.mrf.mxu0
        %268 = vdwg.mxu0
        %269 = vmatpush.bf16.msra.mxu0 0
        %270 = vmatpush.bf16.msra.mxu0 0
        %271 = vmatpush.bf16.msra.mxu0 0
        %272 = vmatpush.bf16.msra.mxu0 0
        %273 = vmatpush.bf16.msra.mxu0 0
        %274 = vmatpush.bf16.msra.mxu0 0
        %275 = vmatpush.bf16.msra.mxu0 %v241
        %276 = vmatpush.bf16.msra.mxu0 %v237
        %277 = vmatmul.bf16.gmra.mxu0 %v254
        %v278 = vpop.f32.mrf.mxu0
        %v279 = vadd.f32 0.0, %v278
        %v280 = vpop.f32.mrf.mxu0
        %281 = vdwg.mxu0
        %282 = vmatpush.bf16.msra.mxu0 0
        %283 = vmatpush.bf16.msra.mxu0 0
        %284 = vmatpush.bf16.msra.mxu0 0
        %285 = vmatpush.bf16.msra.mxu0 0
        %286 = vmatpush.bf16.msra.mxu0 0
        %287 = vmatpush.bf16.msra.mxu0 0
        %288 = vmatpush.bf16.msra.mxu0 %v242
        %289 = vmatpush.bf16.msra.mxu0 %v238
        %290 = vmatmul.bf16.gmra.mxu0 %v254
        %v291 = vpop.f32.mrf.mxu0
        %v292 = vadd.f32 0.0, %v291
        %v293 = vpop.f32.mrf.mxu0
        %294 = vdwg.mxu0
        %295 = vmatpush.bf16.msra.mxu0 0
        %296 = vmatpush.bf16.msra.mxu0 0
        %297 = vmatpush.bf16.msra.mxu0 0
        %298 = vmatpush.bf16.msra.mxu0 0
        %299 = vmatpush.bf16.msra.mxu0 0
        %300 = vmatpush.bf16.msra.mxu0 0
        %301 = vmatpush.bf16.msra.mxu0 %v243
        %302 = vmatpush.bf16.msra.mxu0 %v239
        %303 = vmatmul.bf16.gmra.mxu0 %v254
        %v304 = vpop.f32.mrf.mxu0
        %v305 = vadd.f32 0.0, %v304
        %v306 = vpop.f32.mrf.mxu0
        %307 = vdwg.mxu0
        %v308 = vpack.c.bf16 %v279, %v266
        %v309 = vpack.c.bf16 %v305, %v292
        %v312 = vrot.slane %v308, 3
        %v313 = vrot.slane %v309, 6
        %v314 = vrot.slane %v309, 1
        %vm315 = vcmask 1040384
        %v318 = vsel %vm315, %v308, %v312
        %vm319 = vcmask 1042434
        %v322 = vsel %vm319, %v313, %v314
        %vm323 = vcmask 1041408
        %v324 = vsel %vm323, %v318, %v322
        %326 = vst [vmem:[%s200] sm:$0xf] %v324
        %s327 = smul.u32 4, %s21
        %p328 = scmp.lt.s32.totalorder %s20, 0
        %s329 = scalar_select %p328, %s20, 0
        %p330 = scmp.lt.s32.totalorder %s327, 15
        %s331 = scalar_select %p330, %s327, 15
        %s332 = smul.addr %s329, 16
        %s333 = sadd.s32 %s331, %s332
        %s334 = scalar_lea.vmem %s2, %s333
        // Predicated region
        $region33: #{generator_forward.14} parent=27 // pred_check
          %p335 = pneg %p100
        $region34: #{generator_forward.14} parent=27 // pred_check_branch
          %337 = sbr.rel (%p335) target = $region36
        $region35: #{generator_forward.14} parent=27 // pred_region
          %s338 = smul.u32 4, %s21
        $region36: #{generator_forward.14} parent=27 // pred_fallthru
          _
      $region28: #{generator_forward.14} parent=5 // pred_fallthru
        _
      %p339 = scmp.le.s32.totalorder 2, %s11
      // Predicated region
      $region37: #{generator_forward.14} parent=5 // pred_check
        %p340 = pneg %p339
      $region38: #{generator_forward.14} parent=5 // pred_check_branch
        %342 = sbr.rel (%p340) target = $region40
      $region39: #{generator_forward.14} parent=5 // pred_region
        %s343 = ssub.s32 %s11, 2
        // Predicated region
        $region41: #{generator_forward.14} parent=39 // pred_check
          %p344 = pneg %p106
        $region42: #{generator_forward.14} parent=39 // pred_check_branch
          %346 = sbr.rel (%p344) target = $region44
        $region43: #{generator_forward.14} parent=39 // pred_region
          %s347 = smul.u32 4, %s23
          %p348 = scmp.lt.s32.totalorder %s22, 0
          %s349 = scalar_select %p348, %s22, 0
          %p350 = scmp.lt.s32.totalorder %s347, 15
          %s351 = scalar_select %p350, %s347, 15
          %s352 = smul.addr %s349, 16
          %s353 = sadd.s32 %s351, %s352
          %s354 = scalar_lea.vmem %s2, %s353
        $region44: #{generator_forward.14} parent=39 // pred_fallthru
          _
      $region40: #{generator_forward.14} parent=5 // pred_fallthru
        _
    $region6: #{generator_forward.14} parent=1 // loop_footer
      %s15 = sadd.s32 1, %s11
    $region7: #{generator_forward.14} parent=1 // loop_footer_branch
      %10 = sbr.rel target = $region3
    $region8: #{generator_forward.14} parent=1 // loop_exit
      _
    %355 = vsyncpa [#allocation3], 1
    %s356 = scalar_lea.sflag [#allocation3], 1
    %357 = vsyncpa %s356, 1

// kernel: tile.48
$region0: #{tile.48}
  #allocation0 [shape = 's32[1]{0}', space=sflag, size = 0x4, scoped, tag = 'scoped memory for tile.48']
  %s0 = inlined_call_operand.vmem [shape: f32[128], index: 0, kind: input, shape index: {}]
  %s1 = inlined_call_operand.vmem [shape: f32[4,128], index: 1, kind: output, shape index: {}]
  // Predicated region
  $region2: #{tile.48} parent=0 // pred_check
    _
  $region3: #{tile.48} parent=0 // pred_check_branch
    %3 = sbr.rel (0) target = $region5
  $region4: #{tile.48} parent=0 // pred_region
    _
  $region5: #{tile.48} parent=0 // pred_fallthru
    _
  %v4 = vld [vmem:[%s0] ss:$0 sm:$0xff]
  %5 = vst [vmem:[%s1] sm:$0xf] %v4

// kernel: generator_forward.15
$region0: #{generator_forward.15}
  #allocation0 [shape = 'u32[]', space=smem, size = 0x4, offset = 0x4, fixed_abs, tag = 'smem constant byte address 0x4 - core index']
  #allocation1 [shape = 'u32[72,128]{1,0:T(1,128)}', space=vmem, size = 0x9000, scoped, tag = 'internal scratch']
  %s0 = inlined_call_operand.vmem [shape: f32[8,512], index: 0, kind: input, shape index: {}]
  %s1 = inlined_call_operand.vmem [shape: f32[1,1,512], index: 1, kind: output, shape index: {0}]
  %s2 = inlined_call_operand.vmem [shape: f32[1,1,512], index: 2, kind: output, shape index: {1}]
  %3 = xla_tuple %s1, %s2
  %s4 = sld [smem:[#allocation0]]
  $region22: #{generator_forward.15} parent=0
    _
  %s6 = ssub.s32 1, %s4
  %s7 = scalar_select 0, %s6, %s4
  // Predicated region
  $region2: #{generator_forward.15} parent=0 // pred_check
    _
  $region3: #{generator_forward.15} parent=0 // pred_check_branch
    %9 = sbr.rel (0) target = $region5
  $region4: #{generator_forward.15} parent=0 // pred_region
    _
  $region5: #{generator_forward.15} parent=0 // pred_fallthru
    _
  %v10 = vld [vmem:[%s0] sm:$0xff]
  %v11 = vld [vmem:[%s0 + $0x8] sm:$0xff]
  %v12 = vld [vmem:[%s0 + $0x10] sm:$0xff]
  %v13 = vld [vmem:[%s0 + $0x18] sm:$0xff]
  %v14 = vrot.slane %v10, 4
  %v15 = vadd.f32 %v10, %v14
  %v16 = vrot.slane %v15, 2
  %v17 = vadd.f32 %v15, %v16
  %v18 = vrot.slane %v17, 1
  %v19 = vadd.f32 %v17, %v18
  %v20 = vrot.slane %v11, 4
  %v21 = vadd.f32 %v11, %v20
  %v22 = vrot.slane %v21, 2
  %v23 = vadd.f32 %v21, %v22
  %v24 = vrot.slane %v23, 1
  %v25 = vadd.f32 %v23, %v24
  %v26 = vrot.slane %v12, 4
  %v27 = vadd.f32 %v12, %v26
  %v28 = vrot.slane %v27, 2
  %v29 = vadd.f32 %v27, %v28
  %v30 = vrot.slane %v29, 1
  %v31 = vadd.f32 %v29, %v30
  %v32 = vrot.slane %v13, 4
  %v33 = vadd.f32 %v13, %v32
  %v34 = vrot.slane %v33, 2
  %v35 = vadd.f32 %v33, %v34
  %v36 = vrot.slane %v35, 1
  %v37 = vadd.f32 %v35, %v36
  %v42 = vrot.slane %v25, 7
  %v43 = vrot.slane %v31, 6
  %v44 = vrot.slane %v37, 5
  %vm45 = vcmask 1040384
  %v46 = vsel %vm45, %v19, %v42
  %vm47 = vcmask 1042434
  %v48 = vsel %vm47, %v43, %v44
  %vm49 = vcmask 1041408
  %v50 = vsel %vm49, %v46, %v48
  %v52 = vlaneseq
  %vm53 = vcmp.ge.s32.totalorder %v52, 0
  %vm54 = vcmp.lt.s32.totalorder %v52, 512
  %vm55 = vmand %vm53, %vm54
  %56 = vst.msk [vmem:[%s1] sm:$0xf] %vm55, %v50
  %v57 = vmul.f32 %v10, %v10
  %v58 = vmul.f32 %v11, %v11
  %v59 = vmul.f32 %v12, %v12
  %v60 = vmul.f32 %v13, %v13
  %v61 = vrot.slane %v57, 4
  %v62 = vadd.f32 %v57, %v61
  %v63 = vrot.slane %v62, 2
  %v64 = vadd.f32 %v62, %v63
  %v65 = vrot.slane %v64, 1
  %v66 = vadd.f32 %v64, %v65
  %v67 = vrot.slane %v58, 4
  %v68 = vadd.f32 %v58, %v67
  %v69 = vrot.slane %v68, 2
  %v70 = vadd.f32 %v68, %v69
  %v71 = vrot.slane %v70, 1
  %v72 = vadd.f32 %v70, %v71
  %v73 = vrot.slane %v59, 4
  %v74 = vadd.f32 %v59, %v73
  %v75 = vrot.slane %v74, 2
  %v76 = vadd.f32 %v74, %v75
  %v77 = vrot.slane %v76, 1
  %v78 = vadd.f32 %v76, %v77
  %v79 = vrot.slane %v60, 4
  %v80 = vadd.f32 %v60, %v79
  %v81 = vrot.slane %v80, 2
  %v82 = vadd.f32 %v80, %v81
  %v83 = vrot.slane %v82, 1
  %v84 = vadd.f32 %v82, %v83
  %v89 = vrot.slane %v72, 7
  %v90 = vrot.slane %v78, 6
  %v91 = vrot.slane %v84, 5
  %v92 = vsel %vm45, %v66, %v89
  %v93 = vsel %vm47, %v90, %v91
  %v94 = vsel %vm49, %v92, %v93
  %96 = vst.msk [vmem:[%s2] sm:$0xf] %vm55, %v94
  // Predicated region
  $region6: #{generator_forward.15} parent=0 // pred_check
    _
  $region7: #{generator_forward.15} parent=0 // pred_check_branch
    %98 = sbr.rel (0) target = $region9
  $region8: #{generator_forward.15} parent=0 // pred_region
    _
  $region9: #{generator_forward.15} parent=0 // pred_fallthru
    _
  // Predicated region
  $region10: #{generator_forward.15} parent=0 // pred_check
    _
  $region11: #{generator_forward.15} parent=0 // pred_check_branch
    %100 = sbr.rel (0) target = $region13
  $region12: #{generator_forward.15} parent=0 // pred_region
    _
  $region13: #{generator_forward.15} parent=0 // pred_fallthru
    _
  // Predicated region
  $region14: #{generator_forward.15} parent=0 // pred_check
    _
  $region15: #{generator_forward.15} parent=0 // pred_check_branch
    %102 = sbr.rel (0) target = $region17
  $region16: #{generator_forward.15} parent=0 // pred_region
    _
  $region17: #{generator_forward.15} parent=0 // pred_fallthru
    _
  // Predicated region
  $region18: #{generator_forward.15} parent=0 // pred_check
    _
  $region19: #{generator_forward.15} parent=0 // pred_check_branch
    %104 = sbr.rel (0) target = $region21
  $region20: #{generator_forward.15} parent=0 // pred_region
    _
  $region21: #{generator_forward.15} parent=0 // pred_fallthru
    _

// kernel: generator_forward.16
$region0: #{generator_forward.16}
  #allocation0 [shape = 'u32[]', space=smem, size = 0x4, offset = 0x4, fixed_abs, tag = 'smem constant byte address 0x4 - core index']
  #allocation1 [shape = 'u32[72,128]{1,0:T(1,128)}', space=vmem, size = 0x9000, scoped, tag = 'internal scratch']
  %s0 = inlined_call_operand.vmem [shape: f32[8,512], index: 0, kind: input, shape index: {}]
  %s1 = inlined_call_operand.vmem [shape: f32[1,512], index: 1, kind: input, shape index: {}]
  %s2 = inlined_call_operand.vmem [shape: f32[1,512], index: 2, kind: input, shape index: {}]
  %s3 = inlined_call_operand.vmem [shape: bf16[8,512], index: 3, kind: output, shape index: {}]
  %s4 = sld [smem:[#allocation0]]
  $region22: #{generator_forward.16} parent=0
    _
  %s6 = ssub.s32 1, %s4
  %s7 = scalar_select 0, %s6, %s4
  // Predicated region
  $region2: #{generator_forward.16} parent=0 // pred_check
    _
  $region3: #{generator_forward.16} parent=0 // pred_check_branch
    %9 = sbr.rel (0) target = $region5
  $region4: #{generator_forward.16} parent=0 // pred_region
    _
  $region5: #{generator_forward.16} parent=0 // pred_fallthru
    _
  // Predicated region
  $region6: #{generator_forward.16} parent=0 // pred_check
    _
  $region7: #{generator_forward.16} parent=0 // pred_check_branch
    %11 = sbr.rel (0) target = $region9
  $region8: #{generator_forward.16} parent=0 // pred_region
    _
  $region9: #{generator_forward.16} parent=0 // pred_fallthru
    _
  // Predicated region
  $region10: #{generator_forward.16} parent=0 // pred_check
    _
  $region11: #{generator_forward.16} parent=0 // pred_check_branch
    %13 = sbr.rel (0) target = $region13
  $region12: #{generator_forward.16} parent=0 // pred_region
    _
  $region13: #{generator_forward.16} parent=0 // pred_fallthru
    _
  %v14 = vld [vmem:[%s0] sm:$0xff]
  %v15 = vld [vmem:[%s0 + $0x8] sm:$0xff]
  %v16 = vld [vmem:[%s0 + $0x10] sm:$0xff]
  %v17 = vld [vmem:[%s0 + $0x18] sm:$0xff]
  %v18 = vld [vmem:[%s1] sm:$0xf]
  %v20 = vperm.slane %v18, 0
  %v21 = vperm.slane %v18, 1
  %v22 = vperm.slane %v18, 2
  %v23 = vperm.slane %v18, 3
  %v28 = vmul.f32 %v14, %v20
  %v29 = vmul.f32 %v15, %v21
  %v30 = vmul.f32 %v16, %v22
  %v31 = vmul.f32 %v17, %v23
  %v32 = vld [vmem:[%s2] sm:$0xf]
  %v34 = vperm.slane %v32, 0
  %v35 = vperm.slane %v32, 1
  %v36 = vperm.slane %v32, 2
  %v37 = vperm.slane %v32, 3
  %v42 = vadd.f32 %v28, %v34
  %v43 = vadd.f32 %v29, %v35
  %v44 = vadd.f32 %v30, %v36
  %v45 = vadd.f32 %v31, %v37
  %v46 = vmax.f32 %v42, 0.0
  %v47 = vmax.f32 %v43, 0.0
  %v48 = vmax.f32 %v44, 0.0
  %v49 = vmax.f32 %v45, 0.0
  %v50 = vpack.c.bf16 %v47, %v46
  %v51 = vpack.c.bf16 %v49, %v48
  %52 = vst [vmem:[%s3] sm:$0xff] %v50
  %53 = vst [vmem:[%s3 + $0x8] sm:$0xff] %v51
  // Predicated region
  $region14: #{generator_forward.16} parent=0 // pred_check
    _
  $region15: #{generator_forward.16} parent=0 // pred_check_branch
    %55 = sbr.rel (0) target = $region17
  $region16: #{generator_forward.16} parent=0 // pred_region
    _
  $region17: #{generator_forward.16} parent=0 // pred_fallthru
    _
  // Predicated region
  $region18: #{generator_forward.16} parent=0 // pred_check
    _
  $region19: #{generator_forward.16} parent=0 // pred_check_branch
    %57 = sbr.rel (0) target = $region21
  $region20: #{generator_forward.16} parent=0 // pred_region
    _
  $region21: #{generator_forward.16} parent=0 // pred_fallthru
    _

// kernel: generator_forward.17
$region0: #{generator_forward.17}
  #allocation0 [shape = 'u32[]', space=smem, size = 0x4, offset = 0x4, fixed_abs, tag = 'smem constant byte address 0x4 - core index']
  #allocation1 [shape = 'u32[72,128]{1,0:T(1,128)}', space=vmem, size = 0x9000, scoped, tag = 'internal scratch']
  %s0 = inlined_call_operand.vmem [shape: bf16[32,128], index: 0, kind: input, shape index: {}]
  %s1 = inlined_call_operand.hbm [shape: bf16[128,1024], index: 1, kind: input, shape index: {}]
  %s2 = inlined_call_operand.vmem [shape: bf16[32,1024], index: 2, kind: output, shape index: {}]
  %s3 = sld [smem:[#allocation0]]
  $region64: #{generator_forward.17} parent=0
    _
  %s5 = ssub.s32 1, %s3
  %s6 = scalar_select 0, %s5, %s3
  $region1: #{generator_forward.17} parent=0
    #allocation2 [shape = 'u8[262144]{0}', space=vmem, size = 0x40000, scoped, tag = 'input window, operand 1']
    #allocation3 [shape = 's32[2]{0}', space=sflag, size = 0x8, scoped, tag = 'scoped memory for generator_forward.17']
    #allocation4 [shape = 'u8[65536]{0}', space=vmem, size = 0x10000, scoped, tag = 'output window, operand 0']
    %7 = vsyncpa [#allocation3], 0
    %s8 = scalar_lea.sflag [#allocation3], 1
    %9 = vsyncpa %s8, 0
    loop: start=0, step=1, limit=4
    $region2: #{generator_forward.17} parent=1 // loop_pre_header
      _
    $region3: #{generator_forward.17} parent=1 // loop_header
      %s11 = sphi 0, %s15
      %p12 = scmp.ge.s32.totalorder %s11, 4
      %s18 = sphi 0, %s30
      %s19 = sphi 0, %s26
      %s20 = sphi 0, %s18
      %s21 = sphi 0, %s19
      %s22 = sphi 0, %s20
      %s23 = sphi 0, %s21
      %s33 = sphi 0, %s35
      %s36 = sphi 0, %s33
      %s37 = sphi 0, %s36
      %s53 = sphi 0, %s37
      %s59 = sphi 0, %s61
      %s62 = sphi 0, %s59
      %s63 = sphi 0, %s62
      %s79 = sphi 0, %s63
      %s87 = sphi 0, %s89
      %s90 = sphi 0, %s87
      %s91 = sphi 0, %s90
      %s107 = sphi 0, %s91
    $region4: #{generator_forward.17} parent=1 // loop_header_branch
      %14 = sbr.rel (%p12) target = $region8
    $region5: #{generator_forward.17} parent=1 // loop_body
      %s16 = ssub.s32 %s11, 1
      %s17 = ssub.s32 %s11, 2
      %s24 = sadd.s32 1, %s19
      %p25 = scmp.ge.s32.totalorder %s24, 2
      %s26 = scalar_select %p25, 0, %s24
      %s27 = sadd.s32 1, %s18
      %s28 = scalar_select %p25, %s27, %s18
      %p29 = scmp.ge.s32.totalorder %s28, 1
      %s30 = scalar_select %p29, 0, %s28
      %s31 = ssub.s32 %s18, %s30
      %p32 = scmp.eq.s32.totalorder %s31, 0
      %s34 = sadd.s32 %s33, 1
      %s35 = scalar_select %p32, %s33, %s34
      %p38 = pneg %p32
      %p39 = scmp.eq.s32.totalorder %s11, 1
      %p40 = por %p38, %p39
      %p41 = scmp.ne.s32.totalorder %s33, %s36
      %p42 = scmp.eq.s32.totalorder %s11, 0
      %p43 = por %p41, %p42
      %p44 = scmp.ne.s32.totalorder %s33, %s36
      %p45 = scmp.eq.s32.totalorder %s16, 1
      %p46 = por %p44, %p45
      %p47 = scmp.ne.s32.totalorder %s36, %s37
      %p48 = scmp.eq.s32.totalorder %s16, 0
      %p49 = por %p47, %p48
      %p50 = scmp.ne.s32.totalorder %s36, %s37
      %p51 = scmp.eq.s32.totalorder %s17, 1
      %p52 = por %p50, %p51
      %p54 = scmp.ne.s32.totalorder %s37, %s53
      %p55 = scmp.eq.s32.totalorder %s17, 0
      %p56 = por %p54, %p55
      %s57 = ssub.s32 %s19, %s26
      %p58 = scmp.eq.s32.totalorder %s57, 0
      %s60 = sadd.s32 %s59, 1
      %s61 = scalar_select %p58, %s59, %s60
      %p64 = pneg %p58
      %p65 = scmp.eq.s32.totalorder %s11, 1
      %p66 = por %p64, %p65
      %p67 = scmp.ne.s32.totalorder %s59, %s62
      %p68 = scmp.eq.s32.totalorder %s11, 0
      %p69 = por %p67, %p68
      %p70 = scmp.ne.s32.totalorder %s59, %s62
      %p71 = scmp.eq.s32.totalorder %s16, 1
      %p72 = por %p70, %p71
      %p73 = scmp.ne.s32.totalorder %s62, %s63
      %p74 = scmp.eq.s32.totalorder %s16, 0
      %p75 = por %p73, %p74
      %p76 = scmp.ne.s32.totalorder %s62, %s63
      %p77 = scmp.eq.s32.totalorder %s17, 1
      %p78 = por %p76, %p77
      %p80 = scmp.ne.s32.totalorder %s63, %s79
      %p81 = scmp.eq.s32.totalorder %s17, 0
      %p82 = por %p80, %p81
      %s83 = ssub.s32 %s18, %s30
      %s84 = ssub.s32 %s19, %s26
      %s85 = sor.u32 %s83, %s84
      %p86 = scmp.eq.s32.totalorder %s85, 0
      %s88 = sadd.s32 %s87, 1
      %s89 = scalar_select %p86, %s87, %s88
      %p92 = pneg %p86
      %p93 = scmp.eq.s32.totalorder %s11, 1
      %p94 = por %p92, %p93
      %p95 = scmp.ne.s32.totalorder %s87, %s90
      %p96 = scmp.eq.s32.totalorder %s11, 0
      %p97 = por %p95, %p96
      %p98 = scmp.ne.s32.totalorder %s87, %s90
      %p99 = scmp.eq.s32.totalorder %s16, 1
      %p100 = por %p98, %p99
      %p101 = scmp.ne.s32.totalorder %s90, %s91
      %p102 = scmp.eq.s32.totalorder %s16, 0
      %p103 = por %p101, %p102
      %p104 = scmp.ne.s32.totalorder %s90, %s91
      %p105 = scmp.eq.s32.totalorder %s17, 1
      %p106 = por %p104, %p105
      %p108 = scmp.ne.s32.totalorder %s91, %s107
      %p109 = scmp.eq.s32.totalorder %s17, 0
      %p110 = por %p108, %p109
      %p111 = scmp.le.s32.totalorder 1, %s11
      %p112 = scmp.lt.s32.totalorder %s11, 3
      %p113 = pnand %p111, %p112
      %p114 = pneg %p113
      // Predicated region
      $region9: #{generator_forward.17} parent=5 // pred_check
        _
      $region10: #{generator_forward.17} parent=5 // pred_check_branch
        %116 = sbr.rel (%p113) target = $region12
      $region11: #{generator_forward.17} parent=5 // pred_region
        %s117 = ssub.s32 %s11, 1
        // Predicated region
        $region13: #{generator_forward.17} parent=11 // pred_check
          %p118 = pneg %p49
        $region14: #{generator_forward.17} parent=11 // pred_check_branch
          %120 = sbr.rel (%p118) target = $region16
        $region15: #{generator_forward.17} parent=11 // pred_region
          %s121 = smul.u32 4, %s20
          %p122 = scmp.lt.s32.totalorder %s121, 3
          %s123 = scalar_select %p122, %s121, 3
          %s124 = smul.addr %s123, 4
          %s125 = scalar_lea.vmem %s0, %s124
          %s126 = smul.u32 4, %s20
        $region16: #{generator_forward.17} parent=11 // pred_fallthru
          _
      $region12: #{generator_forward.17} parent=5 // pred_fallthru
        _
      %p127 = scmp.lt.s32.totalorder %s11, 2
      // Predicated region
      $region17: #{generator_forward.17} parent=5 // pred_check
        %p128 = pneg %p127
      $region18: #{generator_forward.17} parent=5 // pred_check_branch
        %130 = sbr.rel (%p128) target = $region20
      $region19: #{generator_forward.17} parent=5 // pred_region
        // Predicated region
        $region21: #{generator_forward.17} parent=19 // pred_check
          %p131 = pneg %p69
        $region22: #{generator_forward.17} parent=19 // pred_check_branch
          %133 = sbr.rel (%p131) target = $region24
        $region23: #{generator_forward.17} parent=19 // pred_region
          %s134 = sand.u32 %s59, 1
          %s135 = scalar_lea.sflag [#allocation3], %s134
          %s136 = sand.u32 %s59, 1
          %s137 = smul.addr %s136, 256
          %s138 = scalar_lea.vmem [#allocation2], %s137
          %s139 = smul.u32 4, %s19
          %141 = vsyncadd %s135, 0
          %s142 = smul.addr %s139, 4
          %s143 = scalar_lea.hbm %s1, %s142
          %s144 = sshll.u32 %s143, 4
          %s145 = int_to_ptr.hbm [resolvable:$true] %s144
          %s146 = sshll.u32 %s138, 4
          %s147 = int_to_ptr.vmem [resolvable:$true] %s146
          %152 = dma.hbm_to_vmem [thread:$0]  %s145, 4096, %s147, %s135, 512, 256, 16
        $region24: #{generator_forward.17} parent=19 // pred_fallthru
          _
      $region20: #{generator_forward.17} parent=5 // pred_fallthru
        _
      %p153 = scmp.le.s32.totalorder 1, %s11
      %p154 = scmp.lt.s32.totalorder %s11, 3
      %p155 = pnand %p153, %p154
      %p156 = pneg %p155
      // Predicated region
      $region25: #{generator_forward.17} parent=5 // pred_check
        _
      $region26: #{generator_forward.17} parent=5 // pred_check_branch
        %158 = sbr.rel (%p155) target = $region28
      $region27: #{generator_forward.17} parent=5 // pred_region
        %s159 = ssub.s32 %s11, 1
        %s160 = sand.u32 %s62, 1
        %s161 = scalar_lea.sflag [#allocation3], %s160
        %s162 = sand.u32 %s62, 1
        %s163 = smul.addr %s162, 256
        %s164 = scalar_lea.vmem [#allocation2], %s163
        // Predicated region
        $region29: #{generator_forward.17} parent=27 // pred_check
          %p165 = pneg %p75
        $region30: #{generator_forward.17} parent=27 // pred_check_branch
          %167 = sbr.rel (%p165) target = $region32
        $region31: #{generator_forward.17} parent=27 // pred_region
          %169 = dma.done %s161, 4096
        $region32: #{generator_forward.17} parent=27 // pred_fallthru
          _
        %s170 = smul.u32 4, %s20
        %p171 = scmp.lt.s32.totalorder %s170, 3
        %s172 = scalar_select %p171, %s170, 3
        %s173 = smul.addr %s172, 4
        %s174 = scalar_lea.vmem %s0, %s173
        %p175 = pneg %p49
        %p176 = pneg %p46
        %s177 = sand.u32 %s62, 1
        %s178 = scalar_lea.sflag [#allocation3], %s177
        %s179 = sand.u32 %s62, 1
        %s180 = smul.addr %s179, 256
        %s181 = scalar_lea.vmem [#allocation2], %s180
        %p182 = pneg %p75
        %p183 = pneg %p72
        %p184 = pneg %p103
        %p185 = pneg %p100
        %s186 = sand.u32 %s90, 1
        %s187 = sand.u32 %s90, 1
        %s188 = smul.addr %s187, 64
        %s189 = scalar_lea.vmem [#allocation4], %s188
        %s190 = smul.u32 4, %s20
        %p191 = scmp.lt.s32.totalorder %s190, 3
        %s192 = scalar_select %p191, %s190, 3
        %s193 = smul.addr %s192, 4
        %s194 = scalar_lea.vmem %s0, %s193
        %s195 = smul.u32 4, %s20
        %s196 = smul.u32 4, %s21
        %s197 = smul.u32 4, %s20
        %s198 = smul.u32 4, %s21
        %v199 = vld [vmem:[%s194] sm:$0xf]
        %v200 = vld [vmem:[%s194 + $0x4] sm:$0xf]
        %v201 = vld [vmem:[%s194 + $0x8] sm:$0xf]
        %v202 = vld [vmem:[%s194 + $0xc] sm:$0xf]
        %v203 = vld [vmem:[%s164] sm:$0xff]
        %v204 = vld [vmem:[%s164 + $0x8] sm:$0xff]
        %v205 = vld [vmem:[%s164 + $0x10] sm:$0xff]
        %v206 = vld [vmem:[%s164 + $0x18] sm:$0xff]
        %v207 = vld [vmem:[%s164 + $0x20] sm:$0xff]
        %v208 = vld [vmem:[%s164 + $0x28] sm:$0xff]
        %v209 = vld [vmem:[%s164 + $0x30] sm:$0xff]
        %v210 = vld [vmem:[%s164 + $0x38] sm:$0xff]
        %v211 = vld [vmem:[%s164 + $0x40] sm:$0xff]
        %v212 = vld [vmem:[%s164 + $0x48] sm:$0xff]
        %v213 = vld [vmem:[%s164 + $0x50] sm:$0xff]
        %v214 = vld [vmem:[%s164 + $0x58] sm:$0xff]
        %v215 = vld [vmem:[%s164 + $0x60] sm:$0xff]
        %v216 = vld [vmem:[%s164 + $0x68] sm:$0xff]
        %v217 = vld [vmem:[%s164 + $0x70] sm:$0xff]
        %v218 = vld [vmem:[%s164 + $0x78] sm:$0xff]
        %v219 = vld [vmem:[%s164 + $0x80] sm:$0xff]
        %v220 = vld [vmem:[%s164 + $0x88] sm:$0xff]
        %v221 = vld [vmem:[%s164 + $0x90] sm:$0xff]
        %v222 = vld [vmem:[%s164 + $0x98] sm:$0xff]
        %v223 = vld [vmem:[%s164 + $0xa0] sm:$0xff]
        %v224 = vld [vmem:[%s164 + $0xa8] sm:$0xff]
        %v225 = vld [vmem:[%s164 + $0xb0] sm:$0xff]
        %v226 = vld [vmem:[%s164 + $0xb8] sm:$0xff]
        %v227 = vld [vmem:[%s164 + $0xc0] sm:$0xff]
        %v228 = vld [vmem:[%s164 + $0xc8] sm:$0xff]
        %v229 = vld [vmem:[%s164 + $0xd0] sm:$0xff]
        %v230 = vld [vmem:[%s164 + $0xd8] sm:$0xff]
        %v231 = vld [vmem:[%s164 + $0xe0] sm:$0xff]
        %v232 = vld [vmem:[%s164 + $0xe8] sm:$0xff]
        %v233 = vld [vmem:[%s164 + $0xf0] sm:$0xff]
        %v234 = vld [vmem:[%s164 + $0xf8] sm:$0xff]
        %v239 = vunpack.c.l.b16 %v199
        %v240 = vunpack.c.l.b16 %v200
        %v241 = vunpack.c.l.b16 %v201
        %v242 = vunpack.c.l.b16 %v202
        %v243 = vpack.c.b16 %v240, %v239
        %v244 = vpack.c.b16 %v242, %v241
        %v279 = vunpack.c.l.b16 %v203
        %v280 = vunpack.c.h.b16 %v203
        %v281 = vunpack.c.l.b16 %v204
        %v282 = vunpack.c.h.b16 %v204
        %v283 = vunpack.c.l.b16 %v205
        %v284 = vunpack.c.h.b16 %v205
        %v285 = vunpack.c.l.b16 %v206
        %v286 = vunpack.c.h.b16 %v206
        %v287 = vunpack.c.l.b16 %v207
        %v288 = vunpack.c.h.b16 %v207
        %v289 = vunpack.c.l.b16 %v208
        %v290 = vunpack.c.h.b16 %v208
        %v291 = vunpack.c.l.b16 %v209
        %v292 = vunpack.c.h.b16 %v209
        %v293 = vunpack.c.l.b16 %v210
        %v294 = vunpack.c.h.b16 %v210
        %v295 = vunpack.c.l.b16 %v211
        %v296 = vunpack.c.h.b16 %v211
        %v297 = vunpack.c.l.b16 %v212
        %v298 = vunpack.c.h.b16 %v212
        %v299 = vunpack.c.l.b16 %v213
        %v300 = vunpack.c.h.b16 %v213
        %v301 = vunpack.c.l.b16 %v214
        %v302 = vunpack.c.h.b16 %v214
        %v303 = vunpack.c.l.b16 %v215
        %v304 = vunpack.c.h.b16 %v215
        %v305 = vunpack.c.l.b16 %v216
        %v306 = vunpack.c.h.b16 %v216
        %v307 = vunpack.c.l.b16 %v217
        %v308 = vunpack.c.h.b16 %v217
        %v309 = vunpack.c.l.b16 %v218
        %v310 = vunpack.c.h.b16 %v218
        %v311 = vunpack.c.l.b16 %v219
        %v312 = vunpack.c.h.b16 %v219
        %v313 = vunpack.c.l.b16 %v220
        %v314 = vunpack.c.h.b16 %v220
        %v315 = vunpack.c.l.b16 %v221
        %v316 = vunpack.c.h.b16 %v221
        %v317 = vunpack.c.l.b16 %v222
        %v318 = vunpack.c.h.b16 %v222
        %v319 = vunpack.c.l.b16 %v223
        %v320 = vunpack.c.h.b16 %v223
        %v321 = vunpack.c.l.b16 %v224
        %v322 = vunpack.c.h.b16 %v224
        %v323 = vunpack.c.l.b16 %v225
        %v324 = vunpack.c.h.b16 %v225
        %v325 = vunpack.c.l.b16 %v226
        %v326 = vunpack.c.h.b16 %v226
        %v327 = vunpack.c.l.b16 %v227
        %v328 = vunpack.c.h.b16 %v227
        %v329 = vunpack.c.l.b16 %v228
        %v330 = vunpack.c.h.b16 %v228
        %v331 = vunpack.c.l.b16 %v229
        %v332 = vunpack.c.h.b16 %v229
        %v333 = vunpack.c.l.b16 %v230
        %v334 = vunpack.c.h.b16 %v230
        %v335 = vunpack.c.l.b16 %v231
        %v336 = vunpack.c.h.b16 %v231
        %v337 = vunpack.c.l.b16 %v232
        %v338 = vunpack.c.h.b16 %v232
        %v339 = vunpack.c.l.b16 %v233
        %v340 = vunpack.c.h.b16 %v233
        %v341 = vunpack.c.l.b16 %v234
        %v342 = vunpack.c.h.b16 %v234
        %v343 = vpack.c.b16 %v283, %v279
        %v344 = vpack.c.b16 %v284, %v280
        %v345 = vpack.c.b16 %v285, %v281
        %v346 = vpack.c.b16 %v286, %v282
        %v347 = vpack.c.b16 %v291, %v287
        %v348 = vpack.c.b16 %v292, %v288
        %v349 = vpack.c.b16 %v293, %v289
        %v350 = vpack.c.b16 %v294, %v290
        %v351 = vpack.c.b16 %v299, %v295
        %v352 = vpack.c.b16 %v300, %v296
        %v353 = vpack.c.b16 %v301, %v297
        %v354 = vpack.c.b16 %v302, %v298
        %v355 = vpack.c.b16 %v307, %v303
        %v356 = vpack.c.b16 %v308, %v304
        %v357 = vpack.c.b16 %v309, %v305
        %v358 = vpack.c.b16 %v310, %v306
        %v359 = vpack.c.b16 %v315, %v311
        %v360 = vpack.c.b16 %v316, %v312
        %v361 = vpack.c.b16 %v317, %v313
        %v362 = vpack.c.b16 %v318, %v314
        %v363 = vpack.c.b16 %v323, %v319
        %v364 = vpack.c.b16 %v324, %v320
        %v365 = vpack.c.b16 %v325, %v321
        %v366 = vpack.c.b16 %v326, %v322
        %v367 = vpack.c.b16 %v331, %v327
        %v368 = vpack.c.b16 %v332, %v328
        %v369 = vpack.c.b16 %v333, %v329
        %v370 = vpack.c.b16 %v334, %v330
        %v371 = vpack.c.b16 %v339, %v335
        %v372 = vpack.c.b16 %v340, %v336
        %v373 = vpack.c.b16 %v341, %v337
        %v374 = vpack.c.b16 %v342, %v338
        %407 = vmatpush.bf16.msra.mxu0 %v371
        %408 = vmatpush.bf16.msra.mxu0 %v367
        %409 = vmatpush.bf16.msra.mxu0 %v363
        %410 = vmatpush.bf16.msra.mxu0 %v359
        %411 = vmatpush.bf16.msra.mxu0 %v355
        %412 = vmatpush.bf16.msra.mxu0 %v351
        %413 = vmatpush.bf16.msra.mxu0 %v347
        %414 = vmatpush.bf16.msra.mxu0 %v343
        %415 = vmatmul.bf16.gmra.mxu0 %v243
        %v416 = vpop.f32.mrf.mxu0
        %v417 = vadd.f32 0.0, %v416
        %v418 = vpop.f32.mrf.mxu0
        %v419 = vadd.f32 0.0, %v418
        %420 = vmatmul.bf16.gmra.mxu0 %v244
        %v421 = vpop.f32.mrf.mxu0
        %v422 = vadd.f32 0.0, %v421
        %v423 = vpop.f32.mrf.mxu0
        %v424 = vadd.f32 0.0, %v423
        %425 = vdwg.mxu0
        %426 = vmatpush.bf16.msra.mxu0 %v372
        %427 = vmatpush.bf16.msra.mxu0 %v368
        %428 = vmatpush.bf16.msra.mxu0 %v364
        %429 = vmatpush.bf16.msra.mxu0 %v360
        %430 = vmatpush.bf16.msra.mxu0 %v356
        %431 = vmatpush.bf16.msra.mxu0 %v352
        %432 = vmatpush.bf16.msra.mxu0 %v348
        %433 = vmatpush.bf16.msra.mxu0 %v344
        %434 = vmatmul.bf16.gmra.mxu0 %v243
        %v435 = vpop.f32.mrf.mxu0
        %v436 = vadd.f32 0.0, %v435
        %v437 = vpop.f32.mrf.mxu0
        %v438 = vadd.f32 0.0, %v437
        %439 = vmatmul.bf16.gmra.mxu0 %v244
        %v440 = vpop.f32.mrf.mxu0
        %v441 = vadd.f32 0.0, %v440
        %v442 = vpop.f32.mrf.mxu0
        %v443 = vadd.f32 0.0, %v442
        %444 = vdwg.mxu0
        %445 = vmatpush.bf16.msra.mxu0 %v373
        %446 = vmatpush.bf16.msra.mxu0 %v369
        %447 = vmatpush.bf16.msra.mxu0 %v365
        %448 = vmatpush.bf16.msra.mxu0 %v361
        %449 = vmatpush.bf16.msra.mxu0 %v357
        %450 = vmatpush.bf16.msra.mxu0 %v353
        %451 = vmatpush.bf16.msra.mxu0 %v349
        %452 = vmatpush.bf16.msra.mxu0 %v345
        %453 = vmatmul.bf16.gmra.mxu0 %v243
        %v454 = vpop.f32.mrf.mxu0
        %v455 = vadd.f32 0.0, %v454
        %v456 = vpop.f32.mrf.mxu0
        %v457 = vadd.f32 0.0, %v456
        %458 = vmatmul.bf16.gmra.mxu0 %v244
        %v459 = vpop.f32.mrf.mxu0
        %v460 = vadd.f32 0.0, %v459
        %v461 = vpop.f32.mrf.mxu0
        %v462 = vadd.f32 0.0, %v461
        %463 = vdwg.mxu0
        %464 = vmatpush.bf16.msra.mxu0 %v374
        %465 = vmatpush.bf16.msra.mxu0 %v370
        %466 = vmatpush.bf16.msra.mxu0 %v366
        %467 = vmatpush.bf16.msra.mxu0 %v362
        %468 = vmatpush.bf16.msra.mxu0 %v358
        %469 = vmatpush.bf16.msra.mxu0 %v354
        %470 = vmatpush.bf16.msra.mxu0 %v350
        %471 = vmatpush.bf16.msra.mxu0 %v346
        %472 = vmatmul.bf16.gmra.mxu0 %v243
        %v473 = vpop.f32.mrf.mxu0
        %v474 = vadd.f32 0.0, %v473
        %v475 = vpop.f32.mrf.mxu0
        %v476 = vadd.f32 0.0, %v475
        %477 = vmatmul.bf16.gmra.mxu0 %v244
        %v478 = vpop.f32.mrf.mxu0
        %v479 = vadd.f32 0.0, %v478
        %v480 = vpop.f32.mrf.mxu0
        %v481 = vadd.f32 0.0, %v480
        %482 = vdwg.mxu0
        %v483 = vpack.c.bf16 %v436, %v417
        %v484 = vpack.c.bf16 %v474, %v455
        %v485 = vpack.c.bf16 %v438, %v419
        %v486 = vpack.c.bf16 %v476, %v457
        %v487 = vpack.c.bf16 %v441, %v422
        %v488 = vpack.c.bf16 %v479, %v460
        %v489 = vpack.c.bf16 %v443, %v424
        %v490 = vpack.c.bf16 %v481, %v462
        %491 = vst [vmem:[%s189] sm:$0xff] %v483
        %492 = vst [vmem:[%s189 + $0x8] sm:$0xff] %v484
        %493 = vst [vmem:[%s189 + $0x10] sm:$0xff] %v485
        %494 = vst [vmem:[%s189 + $0x18] sm:$0xff] %v486
        %495 = vst [vmem:[%s189 + $0x20] sm:$0xff] %v487
        %496 = vst [vmem:[%s189 + $0x28] sm:$0xff] %v488
        %497 = vst [vmem:[%s189 + $0x30] sm:$0xff] %v489
        %498 = vst [vmem:[%s189 + $0x38] sm:$0xff] %v490
        %s499 = sand.u32 %s90, 1
        %s500 = sand.u32 %s90, 1
        %s501 = smul.addr %s500, 64
        %s502 = scalar_lea.vmem [#allocation4], %s501
        // Predicated region
        $region33: #{generator_forward.17} parent=27 // pred_check
          %p503 = pneg %p100
        $region34: #{generator_forward.17} parent=27 // pred_check_branch
          %505 = sbr.rel (%p503) target = $region36
        $region35: #{generator_forward.17} parent=27 // pred_region
          %s506 = smul.u32 4, %s20
          %s507 = smul.u32 4, %s21
          %s508 = smul.addr %s506, 8
          %s509 = sadd.s32 %s507, %s508
          %s510 = smul.addr %s509, 4
          %s511 = scalar_lea.vmem %s2, %s510
          // Predicated region
          $region37: #{generator_forward.17} parent=35 // pred_check
            _
          $region38: #{generator_forward.17} parent=35 // pred_check_branch
            %513 = sbr.rel (0) target = $region40
          $region39: #{generator_forward.17} parent=35 // pred_region
            // Predicated region
            $region41: #{generator_forward.17} parent=39 // pred_check
              _
            $region42: #{generator_forward.17} parent=39 // pred_check_branch
              %515 = sbr.rel (0) target = $region44
            $region43: #{generator_forward.17} parent=39 // pred_region
              loop: start=0, step=1, limit=1
              $region45: #{generator_forward.17} parent=43 // loop_pre_header
                _
              $region46: #{generator_forward.17} parent=43 // loop_header
                %s517 = sphi 0, %s521
                %p518 = scmp.ge.s32.totalorder %s517, 1
                %s522 = sphi %s502, %s502
                %s523 = sphi %s511, %s511
              $region47: #{generator_forward.17} parent=43 // loop_header_branch
                %520 = sbr.rel (%p518) target = $region51
              $region48: #{generator_forward.17} parent=43 // loop_body
                %v524 = vld [vmem:[%s522] sm:$0xff]
                %525 = vst [vmem:[%s523] sm:$0xff] %v524
                %v526 = vld [vmem:[%s522 + $0x8] sm:$0xff]
                %527 = vst [vmem:[%s523 + $0x8] sm:$0xff] %v526
                %v528 = vld [vmem:[%s522 + $0x10] sm:$0xff]
                %529 = vst [vmem:[%s523 + $0x20] sm:$0xff] %v528
                %v530 = vld [vmem:[%s522 + $0x18] sm:$0xff]
                %531 = vst [vmem:[%s523 + $0x28] sm:$0xff] %v530
                %v532 = vld [vmem:[%s522 + $0x20] sm:$0xff]
                %533 = vst [vmem:[%s523 + $0x40] sm:$0xff] %v532
                %v534 = vld [vmem:[%s522 + $0x28] sm:$0xff]
                %535 = vst [vmem:[%s523 + $0x48] sm:$0xff] %v534
                %v536 = vld [vmem:[%s522 + $0x30] sm:$0xff]
                %537 = vst [vmem:[%s523 + $0x60] sm:$0xff] %v536
                %v538 = vld [vmem:[%s522 + $0x38] sm:$0xff]
                %539 = vst [vmem:[%s523 + $0x68] sm:$0xff] %v538
              $region49: #{generator_forward.17} parent=43 // loop_footer
                %s521 = sadd.s32 1, %s517
              $region50: #{generator_forward.17} parent=43 // loop_footer_branch
                %516 = sbr.rel target = $region46
              $region51: #{generator_forward.17} parent=43 // loop_exit
                _
            $region44: #{generator_forward.17} parent=39 // pred_fallthru
              _
            // Predicated region
            $region52: #{generator_forward.17} parent=39 // pred_check
              _
            $region53: #{generator_forward.17} parent=39 // pred_check_branch
              %541 = sbr.rel target = $region55
            $region54: #{generator_forward.17} parent=39 // pred_region
              _
            $region55: #{generator_forward.17} parent=39 // pred_fallthru
              _
          $region40: #{generator_forward.17} parent=35 // pred_fallthru
            _
          %542 = vnop
        $region36: #{generator_forward.17} parent=27 // pred_fallthru
          _
      $region28: #{generator_forward.17} parent=5 // pred_fallthru
        _
      %p543 = scmp.le.s32.totalorder 2, %s11
      // Predicated region
      $region56: #{generator_forward.17} parent=5 // pred_check
        %p544 = pneg %p543
      $region57: #{generator_forward.17} parent=5 // pred_check_branch
        %546 = sbr.rel (%p544) target = $region59
      $region58: #{generator_forward.17} parent=5 // pred_region
        %s547 = ssub.s32 %s11, 2
        // Predicated region
        $region60: #{generator_forward.17} parent=58 // pred_check
          %p548 = pneg %p106
        $region61: #{generator_forward.17} parent=58 // pred_check_branch
          %550 = sbr.rel (%p548) target = $region63
        $region62: #{generator_forward.17} parent=58 // pred_region
          %s551 = sand.u32 %s91, 1
          %s552 = sand.u32 %s91, 1
          %s553 = smul.addr %s552, 64
          %s554 = scalar_lea.vmem [#allocation4], %s553
        $region63: #{generator_forward.17} parent=58 // pred_fallthru
          _
      $region59: #{generator_forward.17} parent=5 // pred_fallthru
        _
    $region6: #{generator_forward.17} parent=1 // loop_footer
      %s15 = sadd.s32 1, %s11
    $region7: #{generator_forward.17} parent=1 // loop_footer_branch
      %10 = sbr.rel target = $region3
    $region8: #{generator_forward.17} parent=1 // loop_exit
      _
    %555 = vsyncpa [#allocation3], 1
    %s556 = scalar_lea.sflag [#allocation3], 1
    %557 = vsyncpa %s556, 1

// kernel: tile.58
$region0: #{tile.58}
  #allocation0 [shape = 's32[1]{0}', space=sflag, size = 0x4, scoped, tag = 'scoped memory for tile.58']
  %s0 = inlined_call_operand.vmem [shape: f32[64], index: 0, kind: input, shape index: {}]
  %s1 = inlined_call_operand.vmem [shape: f32[8,64], index: 1, kind: output, shape index: {}]
  // Predicated region
  $region2: #{tile.58} parent=0 // pred_check
    _
  $region3: #{tile.58} parent=0 // pred_check_branch
    %3 = sbr.rel (0) target = $region5
  $region4: #{tile.58} parent=0 // pred_region
    _
  $region5: #{tile.58} parent=0 // pred_fallthru
    _
  %v4 = vld [vmem:[%s0] ss:$0 sm:$0xff]
  %5 = vst [vmem:[%s1] sm:$0xff] %v4

// kernel: tile.59
$region0: #{tile.59}
  %s0 = inlined_call_operand.vmem [shape: f32[8,64], index: 0, kind: input, shape index: {}]
  %s1 = inlined_call_operand.vmem [shape: f32[1,512], index: 1, kind: output, shape index: {}]
  $region1: #{tile.59} parent=0
    #allocation0 [shape = 'u8[16384]{0}', space=vmem, size = 0x4000, scoped, tag = 'scoped mem for output reshape']
    %v2 = vld [vmem:[%s0] ss:$2 sm:$0xf]
    %vm3 = vcmask 523264
    %4 = vst.msk [vmem:[#allocation0] ss:$8 sm:$0xf] %vm3, %v2
    %s5 = scalar_lea.vmem %s0, 1
    %v6 = vld [vmem:[%s5] ss:$2 sm:$0xf]
    %7 = vrot.lane.b32.xlu0 %v6, 64
    %v8 = vpop.permute.xlu0 %7
    %vm9 = vcmask 1048064
    %10 = vst.msk [vmem:[#allocation0] ss:$8 sm:$0xf] %vm9, %v8
    %s12 = ssub.s32 2, 1
    %v13 = vld [vmem:[#allocation0] sm:%s12]
    %s15 = ssub.s32 2, 1
    %16 = vst [vmem:[%s1] sm:%s15] %v13
    %s17 = scalar_lea.vmem [#allocation0], 8
    %v18 = vld [vmem:[%s17] sm:%s12]
    %s20 = ssub.s32 2, 1
    %s21 = scalar_lea.vmem %s1, 1
    %22 = vst [vmem:[%s21] sm:%s20] %v18
    %s23 = scalar_lea.vmem [#allocation0], 16
    %v24 = vld [vmem:[%s23] sm:%s12]
    %s26 = ssub.s32 2, 1
    %s27 = scalar_lea.vmem %s1, 2
    %28 = vst [vmem:[%s27] sm:%s26] %v24
    %s29 = scalar_lea.vmem [#allocation0], 24
    %v30 = vld [vmem:[%s29] sm:%s12]
    %s32 = ssub.s32 2, 1
    %s33 = scalar_lea.vmem %s1, 3
    %34 = vst [vmem:[%s33] sm:%s32] %v30

// kernel: generator_forward.18
$region0: #{generator_forward.18}
  #allocation0 [shape = 'u32[]', space=smem, size = 0x4, offset = 0x4, fixed_abs, tag = 'smem constant byte address 0x4 - core index']
  #allocation1 [shape = 'u32[72,128]{1,0:T(1,128)}', space=vmem, size = 0x9000, scoped, tag = 'internal scratch']
  %s0 = inlined_call_operand.vmem [shape: f32[16,512], index: 0, kind: input, shape index: {}]
  %s1 = inlined_call_operand.vmem [shape: f32[1,1,512], index: 1, kind: output, shape index: {0}]
  %s2 = inlined_call_operand.vmem [shape: f32[1,1,512], index: 2, kind: output, shape index: {1}]
  %3 = xla_tuple %s1, %s2
  %s4 = sld [smem:[#allocation0]]
  $region22: #{generator_forward.18} parent=0
    _
  %s6 = ssub.s32 1, %s4
  %s7 = scalar_select 0, %s6, %s4
  // Predicated region
  $region2: #{generator_forward.18} parent=0 // pred_check
    _
  $region3: #{generator_forward.18} parent=0 // pred_check_branch
    %9 = sbr.rel (0) target = $region5
  $region4: #{generator_forward.18} parent=0 // pred_region
    _
  $region5: #{generator_forward.18} parent=0 // pred_fallthru
    _
  %v10 = vld [vmem:[%s0] sm:$0xff]
  %v11 = vld [vmem:[%s0 + $0x8] sm:$0xff]
  %v12 = vld [vmem:[%s0 + $0x10] sm:$0xff]
  %v13 = vld [vmem:[%s0 + $0x18] sm:$0xff]
  %v14 = vld [vmem:[%s0 + $0x20] sm:$0xff]
  %v15 = vld [vmem:[%s0 + $0x28] sm:$0xff]
  %v16 = vld [vmem:[%s0 + $0x30] sm:$0xff]
  %v17 = vld [vmem:[%s0 + $0x38] sm:$0xff]
  %v18 = vadd.f32 %v10, %v14
  %v19 = vrot.slane %v18, 4
  %v20 = vadd.f32 %v18, %v19
  %v21 = vrot.slane %v20, 2
  %v22 = vadd.f32 %v20, %v21
  %v23 = vrot.slane %v22, 1
  %v24 = vadd.f32 %v22, %v23
  %v25 = vadd.f32 %v11, %v15
  %v26 = vrot.slane %v25, 4
  %v27 = vadd.f32 %v25, %v26
  %v28 = vrot.slane %v27, 2
  %v29 = vadd.f32 %v27, %v28
  %v30 = vrot.slane %v29, 1
  %v31 = vadd.f32 %v29, %v30
  %v32 = vadd.f32 %v12, %v16
  %v33 = vrot.slane %v32, 4
  %v34 = vadd.f32 %v32, %v33
  %v35 = vrot.slane %v34, 2
  %v36 = vadd.f32 %v34, %v35
  %v37 = vrot.slane %v36, 1
  %v38 = vadd.f32 %v36, %v37
  %v39 = vadd.f32 %v13, %v17
  %v40 = vrot.slane %v39, 4
  %v41 = vadd.f32 %v39, %v40
  %v42 = vrot.slane %v41, 2
  %v43 = vadd.f32 %v41, %v42
  %v44 = vrot.slane %v43, 1
  %v45 = vadd.f32 %v43, %v44
  %v50 = vrot.slane %v31, 7
  %v51 = vrot.slane %v38, 6
  %v52 = vrot.slane %v45, 5
  %vm53 = vcmask 1040384
  %v54 = vsel %vm53, %v24, %v50
  %vm55 = vcmask 1042434
  %v56 = vsel %vm55, %v51, %v52
  %vm57 = vcmask 1041408
  %v58 = vsel %vm57, %v54, %v56
  %v60 = vlaneseq
  %vm61 = vcmp.ge.s32.totalorder %v60, 0
  %vm62 = vcmp.lt.s32.totalorder %v60, 512
  %vm63 = vmand %vm61, %vm62
  %64 = vst.msk [vmem:[%s1] sm:$0xf] %vm63, %v58
  %v65 = vmul.f32 %v10, %v10
  %v66 = vmul.f32 %v11, %v11
  %v67 = vmul.f32 %v12, %v12
  %v68 = vmul.f32 %v13, %v13
  %v69 = vmul.f32 %v14, %v14
  %v70 = vmul.f32 %v15, %v15
  %v71 = vmul.f32 %v16, %v16
  %v72 = vmul.f32 %v17, %v17
  %v73 = vadd.f32 %v65, %v69
  %v74 = vrot.slane %v73, 4
  %v75 = vadd.f32 %v73, %v74
  %v76 = vrot.slane %v75, 2
  %v77 = vadd.f32 %v75, %v76
  %v78 = vrot.slane %v77, 1
  %v79 = vadd.f32 %v77, %v78
  %v80 = vadd.f32 %v66, %v70
  %v81 = vrot.slane %v80, 4
  %v82 = vadd.f32 %v80, %v81
  %v83 = vrot.slane %v82, 2
  %v84 = vadd.f32 %v82, %v83
  %v85 = vrot.slane %v84, 1
  %v86 = vadd.f32 %v84, %v85
  %v87 = vadd.f32 %v67, %v71
  %v88 = vrot.slane %v87, 4
  %v89 = vadd.f32 %v87, %v88
  %v90 = vrot.slane %v89, 2
  %v91 = vadd.f32 %v89, %v90
  %v92 = vrot.slane %v91, 1
  %v93 = vadd.f32 %v91, %v92
  %v94 = vadd.f32 %v68, %v72
  %v95 = vrot.slane %v94, 4
  %v96 = vadd.f32 %v94, %v95
  %v97 = vrot.slane %v96, 2
  %v98 = vadd.f32 %v96, %v97
  %v99 = vrot.slane %v98, 1
  %v100 = vadd.f32 %v98, %v99
  %v105 = vrot.slane %v86, 7
  %v106 = vrot.slane %v93, 6
  %v107 = vrot.slane %v100, 5
  %v108 = vsel %vm53, %v79, %v105
  %v109 = vsel %vm55, %v106, %v107
  %v110 = vsel %vm57, %v108, %v109
  %112 = vst.msk [vmem:[%s2] sm:$0xf] %vm63, %v110
  // Predicated region
  $region6: #{generator_forward.18} parent=0 // pred_check
    _
  $region7: #{generator_forward.18} parent=0 // pred_check_branch
    %114 = sbr.rel (0) target = $region9
  $region8: #{generator_forward.18} parent=0 // pred_region
    _
  $region9: #{generator_forward.18} parent=0 // pred_fallthru
    _
  // Predicated region
  $region10: #{generator_forward.18} parent=0 // pred_check
    _
  $region11: #{generator_forward.18} parent=0 // pred_check_branch
    %116 = sbr.rel (0) target = $region13
  $region12: #{generator_forward.18} parent=0 // pred_region
    _
  $region13: #{generator_forward.18} parent=0 // pred_fallthru
    _
  // Predicated region
  $region14: #{generator_forward.18} parent=0 // pred_check
    _
  $region15: #{generator_forward.18} parent=0 // pred_check_branch
    %118 = sbr.rel (0) target = $region17
  $region16: #{generator_forward.18} parent=0 // pred_region
    _
  $region17: #{generator_forward.18} parent=0 // pred_fallthru
    _
  // Predicated region
  $region18: #{generator_forward.18} parent=0 // pred_check
    _
  $region19: #{generator_forward.18} parent=0 // pred_check_branch
    %120 = sbr.rel (0) target = $region21
  $region20: #{generator_forward.18} parent=0 // pred_region
    _
  $region21: #{generator_forward.18} parent=0 // pred_fallthru
    _

// kernel: generator_forward.20
$region0: #{generator_forward.20}
  #allocation0 [shape = 'u32[]', space=smem, size = 0x4, offset = 0x4, fixed_abs, tag = 'smem constant byte address 0x4 - core index']
  #allocation1 [shape = 'u32[72,128]{1,0:T(1,128)}', space=vmem, size = 0x9000, scoped, tag = 'internal scratch']
  %s0 = inlined_call_operand.vmem [shape: bf16[128,64], index: 0, kind: input, shape index: {}]
  %s1 = inlined_call_operand.vmem [shape: bf16[64,512], index: 1, kind: input, shape index: {}]
  %s2 = inlined_call_operand.vmem [shape: bf16[128,512], index: 2, kind: output, shape index: {}]
  %s3 = sld [smem:[#allocation0]]
  $region18: #{generator_forward.20} parent=0
    _
  %s5 = ssub.s32 1, %s3
  %s6 = scalar_select 0, %s5, %s3
  // Predicated region
  $region2: #{generator_forward.20} parent=0 // pred_check
    _
  $region3: #{generator_forward.20} parent=0 // pred_check_branch
    %8 = sbr.rel (0) target = $region5
  $region4: #{generator_forward.20} parent=0 // pred_region
    _
  $region5: #{generator_forward.20} parent=0 // pred_fallthru
    _
  // Predicated region
  $region6: #{generator_forward.20} parent=0 // pred_check
    _
  $region7: #{generator_forward.20} parent=0 // pred_check_branch
    %10 = sbr.rel (0) target = $region9
  $region8: #{generator_forward.20} parent=0 // pred_region
    _
  $region9: #{generator_forward.20} parent=0 // pred_fallthru
    _
  %v12 = vld [vmem:[%s0] sm:$0xf]
  %v13 = vld [vmem:[%s0 + $0x4] sm:$0xf]
  %v14 = vld [vmem:[%s0 + $0x8] sm:$0xf]
  %v15 = vld [vmem:[%s0 + $0xc] sm:$0xf]
  %v16 = vld [vmem:[%s0 + $0x10] sm:$0xf]
  %v17 = vld [vmem:[%s0 + $0x14] sm:$0xf]
  %v18 = vld [vmem:[%s0 + $0x18] sm:$0xf]
  %v19 = vld [vmem:[%s0 + $0x1c] sm:$0xf]
  %v20 = vld [vmem:[%s0 + $0x20] sm:$0xf]
  %v21 = vld [vmem:[%s0 + $0x24] sm:$0xf]
  %v22 = vld [vmem:[%s0 + $0x28] sm:$0xf]
  %v23 = vld [vmem:[%s0 + $0x2c] sm:$0xf]
  %v24 = vld [vmem:[%s0 + $0x30] sm:$0xf]
  %v25 = vld [vmem:[%s0 + $0x34] sm:$0xf]
  %v26 = vld [vmem:[%s0 + $0x38] sm:$0xf]
  %v27 = vld [vmem:[%s0 + $0x3c] sm:$0xf]
  %v28 = vld [vmem:[%s1] sm:$0xff]
  %v29 = vld [vmem:[%s1 + $0x8] sm:$0xff]
  %v30 = vld [vmem:[%s1 + $0x10] sm:$0xff]
  %v31 = vld [vmem:[%s1 + $0x18] sm:$0xff]
  %v32 = vld [vmem:[%s1 + $0x20] sm:$0xff]
  %v33 = vld [vmem:[%s1 + $0x28] sm:$0xff]
  %v34 = vld [vmem:[%s1 + $0x30] sm:$0xff]
  %v35 = vld [vmem:[%s1 + $0x38] sm:$0xff]
  %v36 = vld [vmem:[%s1 + $0x40] sm:$0xff]
  %v37 = vld [vmem:[%s1 + $0x48] sm:$0xff]
  %v38 = vld [vmem:[%s1 + $0x50] sm:$0xff]
  %v39 = vld [vmem:[%s1 + $0x58] sm:$0xff]
  %v40 = vld [vmem:[%s1 + $0x60] sm:$0xff]
  %v41 = vld [vmem:[%s1 + $0x68] sm:$0xff]
  %v42 = vld [vmem:[%s1 + $0x70] sm:$0xff]
  %v43 = vld [vmem:[%s1 + $0x78] sm:$0xff]
  %v60 = vunpack.c.l.b16 %v12
  %v61 = vunpack.c.l.b16 %v13
  %v62 = vunpack.c.l.b16 %v14
  %v63 = vunpack.c.l.b16 %v15
  %v64 = vunpack.c.l.b16 %v16
  %v65 = vunpack.c.l.b16 %v17
  %v66 = vunpack.c.l.b16 %v18
  %v67 = vunpack.c.l.b16 %v19
  %v68 = vunpack.c.l.b16 %v20
  %v69 = vunpack.c.l.b16 %v21
  %v70 = vunpack.c.l.b16 %v22
  %v71 = vunpack.c.l.b16 %v23
  %v72 = vunpack.c.l.b16 %v24
  %v73 = vunpack.c.l.b16 %v25
  %v74 = vunpack.c.l.b16 %v26
  %v75 = vunpack.c.l.b16 %v27
  %v76 = vpack.c.b16 %v61, %v60
  %v77 = vpack.c.b16 %v63, %v62
  %v78 = vpack.c.b16 %v65, %v64
  %v79 = vpack.c.b16 %v67, %v66
  %v80 = vpack.c.b16 %v69, %v68
  %v81 = vpack.c.b16 %v71, %v70
  %v82 = vpack.c.b16 %v73, %v72
  %v83 = vpack.c.b16 %v75, %v74
  %v100 = vunpack.c.l.b16 %v28
  %v101 = vunpack.c.h.b16 %v28
  %v102 = vunpack.c.l.b16 %v29
  %v103 = vunpack.c.h.b16 %v29
  %v104 = vunpack.c.l.b16 %v30
  %v105 = vunpack.c.h.b16 %v30
  %v106 = vunpack.c.l.b16 %v31
  %v107 = vunpack.c.h.b16 %v31
  %v108 = vunpack.c.l.b16 %v32
  %v109 = vunpack.c.h.b16 %v32
  %v110 = vunpack.c.l.b16 %v33
  %v111 = vunpack.c.h.b16 %v33
  %v112 = vunpack.c.l.b16 %v34
  %v113 = vunpack.c.h.b16 %v34
  %v114 = vunpack.c.l.b16 %v35
  %v115 = vunpack.c.h.b16 %v35
  %v116 = vunpack.c.l.b16 %v36
  %v117 = vunpack.c.h.b16 %v36
  %v118 = vunpack.c.l.b16 %v37
  %v119 = vunpack.c.h.b16 %v37
  %v120 = vunpack.c.l.b16 %v38
  %v121 = vunpack.c.h.b16 %v38
  %v122 = vunpack.c.l.b16 %v39
  %v123 = vunpack.c.h.b16 %v39
  %v124 = vunpack.c.l.b16 %v40
  %v125 = vunpack.c.h.b16 %v40
  %v126 = vunpack.c.l.b16 %v41
  %v127 = vunpack.c.h.b16 %v41
  %v128 = vunpack.c.l.b16 %v42
  %v129 = vunpack.c.h.b16 %v42
  %v130 = vunpack.c.l.b16 %v43
  %v131 = vunpack.c.h.b16 %v43
  %v132 = vpack.c.b16 %v104, %v100
  %v133 = vpack.c.b16 %v105, %v101
  %v134 = vpack.c.b16 %v106, %v102
  %v135 = vpack.c.b16 %v107, %v103
  %v136 = vpack.c.b16 %v112, %v108
  %v137 = vpack.c.b16 %v113, %v109
  %v138 = vpack.c.b16 %v114, %v110
  %v139 = vpack.c.b16 %v115, %v111
  %v140 = vpack.c.b16 %v120, %v116
  %v141 = vpack.c.b16 %v121, %v117
  %v142 = vpack.c.b16 %v122, %v118
  %v143 = vpack.c.b16 %v123, %v119
  %v144 = vpack.c.b16 %v128, %v124
  %v145 = vpack.c.b16 %v129, %v125
  %v146 = vpack.c.b16 %v130, %v126
  %v147 = vpack.c.b16 %v131, %v127
  %vm164 = vcmask 523264
  %v166 = vsel %vm164, %v76, 0
  %v169 = vsel %vm164, %v77, 0
  %v172 = vsel %vm164, %v78, 0
  %v175 = vsel %vm164, %v79, 0
  %v178 = vsel %vm164, %v80, 0
  %v181 = vsel %vm164, %v81, 0
  %v184 = vsel %vm164, %v82, 0
  %v187 = vsel %vm164, %v83, 0
  %189 = vmatpush.bf16.msra.mxu0 0
  %190 = vmatpush.bf16.msra.mxu0 0
  %191 = vmatpush.bf16.msra.mxu0 0
  %192 = vmatpush.bf16.msra.mxu0 0
  %193 = vmatpush.bf16.msra.mxu0 %v144
  %194 = vmatpush.bf16.msra.mxu0 %v140
  %195 = vmatpush.bf16.msra.mxu0 %v136
  %196 = vmatpush.bf16.msra.mxu0 %v132
  %197 = vmatmul.bf16.gmra.mxu0 %v166
  %v198 = vpop.f32.mrf.mxu0
  %v199 = vadd.f32 0.0, %v198
  %v200 = vpop.f32.mrf.mxu0
  %v201 = vadd.f32 0.0, %v200
  %202 = vmatmul.bf16.gmra.mxu0 %v169
  %v203 = vpop.f32.mrf.mxu0
  %v204 = vadd.f32 0.0, %v203
  %v205 = vpop.f32.mrf.mxu0
  %v206 = vadd.f32 0.0, %v205
  %207 = vmatmul.bf16.gmra.mxu0 %v172
  %v208 = vpop.f32.mrf.mxu0
  %v209 = vadd.f32 0.0, %v208
  %v210 = vpop.f32.mrf.mxu0
  %v211 = vadd.f32 0.0, %v210
  %212 = vmatmul.bf16.gmra.mxu0 %v175
  %v213 = vpop.f32.mrf.mxu0
  %v214 = vadd.f32 0.0, %v213
  %v215 = vpop.f32.mrf.mxu0
  %v216 = vadd.f32 0.0, %v215
  %217 = vmatmul.bf16.gmra.mxu0 %v178
  %v218 = vpop.f32.mrf.mxu0
  %v219 = vadd.f32 0.0, %v218
  %v220 = vpop.f32.mrf.mxu0
  %v221 = vadd.f32 0.0, %v220
  %222 = vmatmul.bf16.gmra.mxu0 %v181
  %v223 = vpop.f32.mrf.mxu0
  %v224 = vadd.f32 0.0, %v223
  %v225 = vpop.f32.mrf.mxu0
  %v226 = vadd.f32 0.0, %v225
  %227 = vmatmul.bf16.gmra.mxu0 %v184
  %v228 = vpop.f32.mrf.mxu0
  %v229 = vadd.f32 0.0, %v228
  %v230 = vpop.f32.mrf.mxu0
  %v231 = vadd.f32 0.0, %v230
  %232 = vmatmul.bf16.gmra.mxu0 %v187
  %v233 = vpop.f32.mrf.mxu0
  %v234 = vadd.f32 0.0, %v233
  %v235 = vpop.f32.mrf.mxu0
  %v236 = vadd.f32 0.0, %v235
  %237 = vdwg.mxu0
  %238 = vmatpush.bf16.msra.mxu0 0
  %239 = vmatpush.bf16.msra.mxu0 0
  %240 = vmatpush.bf16.msra.mxu0 0
  %241 = vmatpush.bf16.msra.mxu0 0
  %242 = vmatpush.bf16.msra.mxu0 %v145
  %243 = vmatpush.bf16.msra.mxu0 %v141
  %244 = vmatpush.bf16.msra.mxu0 %v137
  %245 = vmatpush.bf16.msra.mxu0 %v133
  %246 = vmatmul.bf16.gmra.mxu0 %v166
  %v247 = vpop.f32.mrf.mxu0
  %v248 = vadd.f32 0.0, %v247
  %v249 = vpop.f32.mrf.mxu0
  %v250 = vadd.f32 0.0, %v249
  %251 = vmatmul.bf16.gmra.mxu0 %v169
  %v252 = vpop.f32.mrf.mxu0
  %v253 = vadd.f32 0.0, %v252
  %v254 = vpop.f32.mrf.mxu0
  %v255 = vadd.f32 0.0, %v254
  %256 = vmatmul.bf16.gmra.mxu0 %v172
  %v257 = vpop.f32.mrf.mxu0
  %v258 = vadd.f32 0.0, %v257
  %v259 = vpop.f32.mrf.mxu0
  %v260 = vadd.f32 0.0, %v259
  %261 = vmatmul.bf16.gmra.mxu0 %v175
  %v262 = vpop.f32.mrf.mxu0
  %v263 = vadd.f32 0.0, %v262
  %v264 = vpop.f32.mrf.mxu0
  %v265 = vadd.f32 0.0, %v264
  %266 = vmatmul.bf16.gmra.mxu0 %v178
  %v267 = vpop.f32.mrf.mxu0
  %v268 = vadd.f32 0.0, %v267
  %v269 = vpop.f32.mrf.mxu0
  %v270 = vadd.f32 0.0, %v269
  %271 = vmatmul.bf16.gmra.mxu0 %v181
  %v272 = vpop.f32.mrf.mxu0
  %v273 = vadd.f32 0.0, %v272
  %v274 = vpop.f32.mrf.mxu0
  %v275 = vadd.f32 0.0, %v274
  %276 = vmatmul.bf16.gmra.mxu0 %v184
  %v277 = vpop.f32.mrf.mxu0
  %v278 = vadd.f32 0.0, %v277
  %v279 = vpop.f32.mrf.mxu0
  %v280 = vadd.f32 0.0, %v279
  %281 = vmatmul.bf16.gmra.mxu0 %v187
  %v282 = vpop.f32.mrf.mxu0
  %v283 = vadd.f32 0.0, %v282
  %v284 = vpop.f32.mrf.mxu0
  %v285 = vadd.f32 0.0, %v284
  %286 = vdwg.mxu0
  %287 = vmatpush.bf16.msra.mxu0 0
  %288 = vmatpush.bf16.msra.mxu0 0
  %289 = vmatpush.bf16.msra.mxu0 0
  %290 = vmatpush.bf16.msra.mxu0 0
  %291 = vmatpush.bf16.msra.mxu0 %v146
  %292 = vmatpush.bf16.msra.mxu0 %v142
  %293 = vmatpush.bf16.msra.mxu0 %v138
  %294 = vmatpush.bf16.msra.mxu0 %v134
  %295 = vmatmul.bf16.gmra.mxu0 %v166
  %v296 = vpop.f32.mrf.mxu0
  %v297 = vadd.f32 0.0, %v296
  %v298 = vpop.f32.mrf.mxu0
  %v299 = vadd.f32 0.0, %v298
  %300 = vmatmul.bf16.gmra.mxu0 %v169
  %v301 = vpop.f32.mrf.mxu0
  %v302 = vadd.f32 0.0, %v301
  %v303 = vpop.f32.mrf.mxu0
  %v304 = vadd.f32 0.0, %v303
  %305 = vmatmul.bf16.gmra.mxu0 %v172
  %v306 = vpop.f32.mrf.mxu0
  %v307 = vadd.f32 0.0, %v306
  %v308 = vpop.f32.mrf.mxu0
  %v309 = vadd.f32 0.0, %v308
  %310 = vmatmul.bf16.gmra.mxu0 %v175
  %v311 = vpop.f32.mrf.mxu0
  %v312 = vadd.f32 0.0, %v311
  %v313 = vpop.f32.mrf.mxu0
  %v314 = vadd.f32 0.0, %v313
  %315 = vmatmul.bf16.gmra.mxu0 %v178
  %v316 = vpop.f32.mrf.mxu0
  %v317 = vadd.f32 0.0, %v316
  %v318 = vpop.f32.mrf.mxu0
  %v319 = vadd.f32 0.0, %v318
  %320 = vmatmul.bf16.gmra.mxu0 %v181
  %v321 = vpop.f32.mrf.mxu0
  %v322 = vadd.f32 0.0, %v321
  %v323 = vpop.f32.mrf.mxu0
  %v324 = vadd.f32 0.0, %v323
  %325 = vmatmul.bf16.gmra.mxu0 %v184
  %v326 = vpop.f32.mrf.mxu0
  %v327 = vadd.f32 0.0, %v326
  %v328 = vpop.f32.mrf.mxu0
  %v329 = vadd.f32 0.0, %v328
  %330 = vmatmul.bf16.gmra.mxu0 %v187
  %v331 = vpop.f32.mrf.mxu0
  %v332 = vadd.f32 0.0, %v331
  %v333 = vpop.f32.mrf.mxu0
  %v334 = vadd.f32 0.0, %v333
  %335 = vdwg.mxu0
  %336 = vmatpush.bf16.msra.mxu0 0
  %337 = vmatpush.bf16.msra.mxu0 0
  %338 = vmatpush.bf16.msra.mxu0 0
  %339 = vmatpush.bf16.msra.mxu0 0
  %340 = vmatpush.bf16.msra.mxu0 %v147
  %341 = vmatpush.bf16.msra.mxu0 %v143
  %342 = vmatpush.bf16.msra.mxu0 %v139
  %343 = vmatpush.bf16.msra.mxu0 %v135
  %344 = vmatmul.bf16.gmra.mxu0 %v166
  %v345 = vpop.f32.mrf.mxu0
  %v346 = vadd.f32 0.0, %v345
  %v347 = vpop.f32.mrf.mxu0
  %v348 = vadd.f32 0.0, %v347
  %349 = vmatmul.bf16.gmra.mxu0 %v169
  %v350 = vpop.f32.mrf.mxu0
  %v351 = vadd.f32 0.0, %v350
  %v352 = vpop.f32.mrf.mxu0
  %v353 = vadd.f32 0.0, %v352
  %354 = vmatmul.bf16.gmra.mxu0 %v172
  %v355 = vpop.f32.mrf.mxu0
  %v356 = vadd.f32 0.0, %v355
  %v357 = vpop.f32.mrf.mxu0
  %v358 = vadd.f32 0.0, %v357
  %359 = vmatmul.bf16.gmra.mxu0 %v175
  %v360 = vpop.f32.mrf.mxu0
  %v361 = vadd.f32 0.0, %v360
  %v362 = vpop.f32.mrf.mxu0
  %v363 = vadd.f32 0.0, %v362
  %364 = vmatmul.bf16.gmra.mxu0 %v178
  %v365 = vpop.f32.mrf.mxu0
  %v366 = vadd.f32 0.0, %v365
  %v367 = vpop.f32.mrf.mxu0
  %v368 = vadd.f32 0.0, %v367
  %369 = vmatmul.bf16.gmra.mxu0 %v181
  %v370 = vpop.f32.mrf.mxu0
  %v371 = vadd.f32 0.0, %v370
  %v372 = vpop.f32.mrf.mxu0
  %v373 = vadd.f32 0.0, %v372
  %374 = vmatmul.bf16.gmra.mxu0 %v184
  %v375 = vpop.f32.mrf.mxu0
  %v376 = vadd.f32 0.0, %v375
  %v377 = vpop.f32.mrf.mxu0
  %v378 = vadd.f32 0.0, %v377
  %379 = vmatmul.bf16.gmra.mxu0 %v187
  %v380 = vpop.f32.mrf.mxu0
  %v381 = vadd.f32 0.0, %v380
  %v382 = vpop.f32.mrf.mxu0
  %v383 = vadd.f32 0.0, %v382
  %384 = vdwg.mxu0
  %v385 = vpack.c.bf16 %v248, %v199
  %v386 = vpack.c.bf16 %v346, %v297
  %v387 = vpack.c.bf16 %v250, %v201
  %v388 = vpack.c.bf16 %v348, %v299
  %v389 = vpack.c.bf16 %v253, %v204
  %v390 = vpack.c.bf16 %v351, %v302
  %v391 = vpack.c.bf16 %v255, %v206
  %v392 = vpack.c.bf16 %v353, %v304
  %v393 = vpack.c.bf16 %v258, %v209
  %v394 = vpack.c.bf16 %v356, %v307
  %v395 = vpack.c.bf16 %v260, %v211
  %v396 = vpack.c.bf16 %v358, %v309
  %v397 = vpack.c.bf16 %v263, %v214
  %v398 = vpack.c.bf16 %v361, %v312
  %v399 = vpack.c.bf16 %v265, %v216
  %v400 = vpack.c.bf16 %v363, %v314
  %v401 = vpack.c.bf16 %v268, %v219
  %v402 = vpack.c.bf16 %v366, %v317
  %v403 = vpack.c.bf16 %v270, %v221
  %v404 = vpack.c.bf16 %v368, %v319
  %v405 = vpack.c.bf16 %v273, %v224
  %v406 = vpack.c.bf16 %v371, %v322
  %v407 = vpack.c.bf16 %v275, %v226
  %v408 = vpack.c.bf16 %v373, %v324
  %v409 = vpack.c.bf16 %v278, %v229
  %v410 = vpack.c.bf16 %v376, %v327
  %v411 = vpack.c.bf16 %v280, %v231
  %v412 = vpack.c.bf16 %v378, %v329
  %v413 = vpack.c.bf16 %v283, %v234
  %v414 = vpack.c.bf16 %v381, %v332
  %v415 = vpack.c.bf16 %v285, %v236
  %v416 = vpack.c.bf16 %v383, %v334
  %417 = vst [vmem:[%s2] sm:$0xff] %v385
  %418 = vst [vmem:[%s2 + $0x8] sm:$0xff] %v386
  %419 = vst [vmem:[%s2 + $0x10] sm:$0xff] %v387
  %420 = vst [vmem:[%s2 + $0x18] sm:$0xff] %v388
  %421 = vst [vmem:[%s2 + $0x20] sm:$0xff] %v389
  %422 = vst [vmem:[%s2 + $0x28] sm:$0xff] %v390
  %423 = vst [vmem:[%s2 + $0x30] sm:$0xff] %v391
  %424 = vst [vmem:[%s2 + $0x38] sm:$0xff] %v392
  %425 = vst [vmem:[%s2 + $0x40] sm:$0xff] %v393
  %426 = vst [vmem:[%s2 + $0x48] sm:$0xff] %v394
  %427 = vst [vmem:[%s2 + $0x50] sm:$0xff] %v395
  %428 = vst [vmem:[%s2 + $0x58] sm:$0xff] %v396
  %429 = vst [vmem:[%s2 + $0x60] sm:$0xff] %v397
  %430 = vst [vmem:[%s2 + $0x68] sm:$0xff] %v398
  %431 = vst [vmem:[%s2 + $0x70] sm:$0xff] %v399
  %432 = vst [vmem:[%s2 + $0x78] sm:$0xff] %v400
  %433 = vst [vmem:[%s2 + $0x80] sm:$0xff] %v401
  %434 = vst [vmem:[%s2 + $0x88] sm:$0xff] %v402
  %435 = vst [vmem:[%s2 + $0x90] sm:$0xff] %v403
  %436 = vst [vmem:[%s2 + $0x98] sm:$0xff] %v404
  %437 = vst [vmem:[%s2 + $0xa0] sm:$0xff] %v405
  %438 = vst [vmem:[%s2 + $0xa8] sm:$0xff] %v406
  %439 = vst [vmem:[%s2 + $0xb0] sm:$0xff] %v407
  %440 = vst [vmem:[%s2 + $0xb8] sm:$0xff] %v408
  %441 = vst [vmem:[%s2 + $0xc0] sm:$0xff] %v409
  %442 = vst [vmem:[%s2 + $0xc8] sm:$0xff] %v410
  %443 = vst [vmem:[%s2 + $0xd0] sm:$0xff] %v411
  %444 = vst [vmem:[%s2 + $0xd8] sm:$0xff] %v412
  %445 = vst [vmem:[%s2 + $0xe0] sm:$0xff] %v413
  %446 = vst [vmem:[%s2 + $0xe8] sm:$0xff] %v414
  %447 = vst [vmem:[%s2 + $0xf0] sm:$0xff] %v415
  %448 = vst [vmem:[%s2 + $0xf8] sm:$0xff] %v416
  // Predicated region
  $region10: #{generator_forward.20} parent=0 // pred_check
    _
  $region11: #{generator_forward.20} parent=0 // pred_check_branch
    %450 = sbr.rel (0) target = $region13
  $region12: #{generator_forward.20} parent=0 // pred_region
    _
  $region13: #{generator_forward.20} parent=0 // pred_fallthru
    _
  // Predicated region
  $region14: #{generator_forward.20} parent=0 // pred_check
    _
  $region15: #{generator_forward.20} parent=0 // pred_check_branch
    %452 = sbr.rel (0) target = $region17
  $region16: #{generator_forward.20} parent=0 // pred_region
    _
  $region17: #{generator_forward.20} parent=0 // pred_fallthru
    _

// kernel: generator_forward.19
$region0: #{generator_forward.19}
  #allocation0 [shape = 'u32[]', space=smem, size = 0x4, offset = 0x4, fixed_abs, tag = 'smem constant byte address 0x4 - core index']
  #allocation1 [shape = 'u32[72,128]{1,0:T(1,128)}', space=vmem, size = 0x9000, scoped, tag = 'internal scratch']
  %s0 = inlined_call_operand.vmem [shape: f32[16,512], index: 0, kind: input, shape index: {}]
  %s1 = inlined_call_operand.vmem [shape: f32[1,512], index: 1, kind: input, shape index: {}]
  %s2 = inlined_call_operand.vmem [shape: f32[1,512], index: 2, kind: input, shape index: {}]
  %s3 = inlined_call_operand.vmem [shape: bf16[16,512], index: 3, kind: output, shape index: {}]
  %s4 = sld [smem:[#allocation0]]
  $region22: #{generator_forward.19} parent=0
    _
  %s6 = ssub.s32 1, %s4
  %s7 = scalar_select 0, %s6, %s4
  // Predicated region
  $region2: #{generator_forward.19} parent=0 // pred_check
    _
  $region3: #{generator_forward.19} parent=0 // pred_check_branch
    %9 = sbr.rel (0) target = $region5
  $region4: #{generator_forward.19} parent=0 // pred_region
    _
  $region5: #{generator_forward.19} parent=0 // pred_fallthru
    _
  // Predicated region
  $region6: #{generator_forward.19} parent=0 // pred_check
    _
  $region7: #{generator_forward.19} parent=0 // pred_check_branch
    %11 = sbr.rel (0) target = $region9
  $region8: #{generator_forward.19} parent=0 // pred_region
    _
  $region9: #{generator_forward.19} parent=0 // pred_fallthru
    _
  // Predicated region
  $region10: #{generator_forward.19} parent=0 // pred_check
    _
  $region11: #{generator_forward.19} parent=0 // pred_check_branch
    %13 = sbr.rel (0) target = $region13
  $region12: #{generator_forward.19} parent=0 // pred_region
    _
  $region13: #{generator_forward.19} parent=0 // pred_fallthru
    _
  %v14 = vld [vmem:[%s0] sm:$0xff]
  %v15 = vld [vmem:[%s0 + $0x8] sm:$0xff]
  %v16 = vld [vmem:[%s0 + $0x10] sm:$0xff]
  %v17 = vld [vmem:[%s0 + $0x18] sm:$0xff]
  %v18 = vld [vmem:[%s0 + $0x20] sm:$0xff]
  %v19 = vld [vmem:[%s0 + $0x28] sm:$0xff]
  %v20 = vld [vmem:[%s0 + $0x30] sm:$0xff]
  %v21 = vld [vmem:[%s0 + $0x38] sm:$0xff]
  %v22 = vld [vmem:[%s1] sm:$0xf]
  %v24 = vperm.slane %v22, 0
  %v25 = vperm.slane %v22, 1
  %v26 = vperm.slane %v22, 2
  %v27 = vperm.slane %v22, 3
  %v32 = vmul.f32 %v14, %v24
  %v33 = vmul.f32 %v15, %v25
  %v34 = vmul.f32 %v16, %v26
  %v35 = vmul.f32 %v17, %v27
  %v36 = vmul.f32 %v18, %v24
  %v37 = vmul.f32 %v19, %v25
  %v38 = vmul.f32 %v20, %v26
  %v39 = vmul.f32 %v21, %v27
  %v40 = vld [vmem:[%s2] sm:$0xf]
  %v42 = vperm.slane %v40, 0
  %v43 = vperm.slane %v40, 1
  %v44 = vperm.slane %v40, 2
  %v45 = vperm.slane %v40, 3
  %v50 = vadd.f32 %v32, %v42
  %v51 = vadd.f32 %v33, %v43
  %v52 = vadd.f32 %v34, %v44
  %v53 = vadd.f32 %v35, %v45
  %v54 = vadd.f32 %v36, %v42
  %v55 = vadd.f32 %v37, %v43
  %v56 = vadd.f32 %v38, %v44
  %v57 = vadd.f32 %v39, %v45
  %v58 = vmax.f32 %v50, 0.0
  %v59 = vmax.f32 %v51, 0.0
  %v60 = vmax.f32 %v52, 0.0
  %v61 = vmax.f32 %v53, 0.0
  %v62 = vmax.f32 %v54, 0.0
  %v63 = vmax.f32 %v55, 0.0
  %v64 = vmax.f32 %v56, 0.0
  %v65 = vmax.f32 %v57, 0.0
  %v66 = vpack.c.bf16 %v59, %v58
  %v67 = vpack.c.bf16 %v61, %v60
  %v68 = vpack.c.bf16 %v63, %v62
  %v69 = vpack.c.bf16 %v65, %v64
  %70 = vst [vmem:[%s3] sm:$0xff] %v66
  %71 = vst [vmem:[%s3 + $0x8] sm:$0xff] %v67
  %72 = vst [vmem:[%s3 + $0x10] sm:$0xff] %v68
  %73 = vst [vmem:[%s3 + $0x18] sm:$0xff] %v69
  // Predicated region
  $region14: #{generator_forward.19} parent=0 // pred_check
    _
  $region15: #{generator_forward.19} parent=0 // pred_check_branch
    %75 = sbr.rel (0) target = $region17
  $region16: #{generator_forward.19} parent=0 // pred_region
    _
  $region17: #{generator_forward.19} parent=0 // pred_fallthru
    _
  // Predicated region
  $region18: #{generator_forward.19} parent=0 // pred_check
    _
  $region19: #{generator_forward.19} parent=0 // pred_check_branch
    %77 = sbr.rel (0) target = $region21
  $region20: #{generator_forward.19} parent=0 // pred_region
    _
  $region21: #{generator_forward.19} parent=0 // pred_fallthru
    _

// kernel: tile.68
$region0: #{tile.68}
  #allocation0 [shape = 's32[1]{0}', space=sflag, size = 0x4, scoped, tag = 'scoped memory for tile.68']
  %s0 = inlined_call_operand.vmem [shape: f32[32], index: 0, kind: input, shape index: {}]
  %s1 = inlined_call_operand.vmem [shape: f32[16,32], index: 1, kind: output, shape index: {}]
  // Predicated region
  $region2: #{tile.68} parent=0 // pred_check
    _
  $region3: #{tile.68} parent=0 // pred_check_branch
    %3 = sbr.rel (0) target = $region5
  $region4: #{tile.68} parent=0 // pred_region
    _
  $region5: #{tile.68} parent=0 // pred_fallthru
    _
  %v4 = vld [vmem:[%s0] ss:$0 sm:$0xff]
  %5 = vst [vmem:[%s1] sm:$0xff] %v4
  %s6 = scalar_lea.vmem %s1, 8
  %7 = vst [vmem:[%s6] sm:$0xff] %v4

// kernel: tile.69
$region0: #{tile.69}
  %s0 = inlined_call_operand.vmem [shape: f32[16,32], index: 0, kind: input, shape index: {}]
  %s1 = inlined_call_operand.vmem [shape: f32[1,512], index: 1, kind: output, shape index: {}]
  $region1: #{tile.69} parent=0
    #allocation0 [shape = 'u8[16384]{0}', space=vmem, size = 0x4000, scoped, tag = 'scoped mem for output reshape']
    %v2 = vld [vmem:[%s0] ss:$4 sm:$0xf]
    %vm3 = vcmask 261120
    %4 = vst.msk [vmem:[#allocation0] ss:$8 sm:$0xf] %vm3, %v2
    %s5 = scalar_lea.vmem %s0, 3
    %v6 = vld [vmem:[%s5] ss:$4 sm:$0xf]
    %7 = vrot.lane.b32.xlu0 %v6, 96
    %v8 = vpop.permute.xlu0 %7
    %vm9 = vcmask 1048320
    %10 = vst.msk [vmem:[#allocation0] ss:$8 sm:$0xf] %vm9, %v8
    %s11 = scalar_lea.vmem %s0, 2
    %v12 = vld [vmem:[%s11] ss:$4 sm:$0xf]
    %13 = vrot.lane.b32.xlu0 %v12, 64
    %v14 = vpop.permute.xlu0 %13
    %vm15 = vcmask 785920
    %16 = vst.msk [vmem:[#allocation0] ss:$8 sm:$0xf] %vm15, %v14
    %s17 = scalar_lea.vmem %s0, 1
    %v18 = vld [vmem:[%s17] ss:$4 sm:$0xf]
    %19 = vrot.lane.b32.xlu0 %v18, 32
    %v20 = vpop.permute.xlu0 %19
    %vm21 = vcmask 523520
    %22 = vst.msk [vmem:[#allocation0] ss:$8 sm:$0xf] %vm21, %v20
    %s24 = ssub.s32 2, 1
    %v25 = vld [vmem:[#allocation0] sm:%s24]
    %s27 = ssub.s32 2, 1
    %28 = vst [vmem:[%s1] sm:%s27] %v25
    %s29 = scalar_lea.vmem [#allocation0], 8
    %v30 = vld [vmem:[%s29] sm:%s24]
    %s32 = ssub.s32 2, 1
    %s33 = scalar_lea.vmem %s1, 1
    %34 = vst [vmem:[%s33] sm:%s32] %v30
    %s35 = scalar_lea.vmem [#allocation0], 16
    %v36 = vld [vmem:[%s35] sm:%s24]
    %s38 = ssub.s32 2, 1
    %s39 = scalar_lea.vmem %s1, 2
    %40 = vst [vmem:[%s39] sm:%s38] %v36
    %s41 = scalar_lea.vmem [#allocation0], 24
    %v42 = vld [vmem:[%s41] sm:%s24]
    %s44 = ssub.s32 2, 1
    %s45 = scalar_lea.vmem %s1, 3
    %46 = vst [vmem:[%s45] sm:%s44] %v42

// kernel: generator_forward.21
$region0: #{generator_forward.21}
  #allocation0 [shape = 'u32[]', space=smem, size = 0x4, offset = 0x4, fixed_abs, tag = 'smem constant byte address 0x4 - core index']
  #allocation1 [shape = 'u32[72,128]{1,0:T(1,128)}', space=vmem, size = 0x9000, scoped, tag = 'internal scratch']
  %s0 = inlined_call_operand.vmem [shape: f32[32,512], index: 0, kind: input, shape index: {}]
  %s1 = inlined_call_operand.vmem [shape: f32[1,1,512], index: 1, kind: output, shape index: {0}]
  %s2 = inlined_call_operand.vmem [shape: f32[1,1,512], index: 2, kind: output, shape index: {1}]
  %3 = xla_tuple %s1, %s2
  %s4 = sld [smem:[#allocation0]]
  $region22: #{generator_forward.21} parent=0
    _
  %s6 = ssub.s32 1, %s4
  %s7 = scalar_select 0, %s6, %s4
  // Predicated region
  $region2: #{generator_forward.21} parent=0 // pred_check
    _
  $region3: #{generator_forward.21} parent=0 // pred_check_branch
    %9 = sbr.rel (0) target = $region5
  $region4: #{generator_forward.21} parent=0 // pred_region
    _
  $region5: #{generator_forward.21} parent=0 // pred_fallthru
    _
  %v10 = vld [vmem:[%s0] sm:$0xff]
  %v11 = vld [vmem:[%s0 + $0x8] sm:$0xff]
  %v12 = vld [vmem:[%s0 + $0x10] sm:$0xff]
  %v13 = vld [vmem:[%s0 + $0x18] sm:$0xff]
  %v14 = vld [vmem:[%s0 + $0x20] sm:$0xff]
  %v15 = vld [vmem:[%s0 + $0x28] sm:$0xff]
  %v16 = vld [vmem:[%s0 + $0x30] sm:$0xff]
  %v17 = vld [vmem:[%s0 + $0x38] sm:$0xff]
  %v18 = vld [vmem:[%s0 + $0x40] sm:$0xff]
  %v19 = vld [vmem:[%s0 + $0x48] sm:$0xff]
  %v20 = vld [vmem:[%s0 + $0x50] sm:$0xff]
  %v21 = vld [vmem:[%s0 + $0x58] sm:$0xff]
  %v22 = vld [vmem:[%s0 + $0x60] sm:$0xff]
  %v23 = vld [vmem:[%s0 + $0x68] sm:$0xff]
  %v24 = vld [vmem:[%s0 + $0x70] sm:$0xff]
  %v25 = vld [vmem:[%s0 + $0x78] sm:$0xff]
  %v26 = vadd.f32 %v10, %v14
  %v27 = vadd.f32 %v26, %v18
  %v28 = vadd.f32 %v27, %v22
  %v29 = vrot.slane %v28, 4
  %v30 = vadd.f32 %v28, %v29
  %v31 = vrot.slane %v30, 2
  %v32 = vadd.f32 %v30, %v31
  %v33 = vrot.slane %v32, 1
  %v34 = vadd.f32 %v32, %v33
  %v35 = vadd.f32 %v11, %v15
  %v36 = vadd.f32 %v35, %v19
  %v37 = vadd.f32 %v36, %v23
  %v38 = vrot.slane %v37, 4
  %v39 = vadd.f32 %v37, %v38
  %v40 = vrot.slane %v39, 2
  %v41 = vadd.f32 %v39, %v40
  %v42 = vrot.slane %v41, 1
  %v43 = vadd.f32 %v41, %v42
  %v44 = vadd.f32 %v12, %v16
  %v45 = vadd.f32 %v44, %v20
  %v46 = vadd.f32 %v45, %v24
  %v47 = vrot.slane %v46, 4
  %v48 = vadd.f32 %v46, %v47
  %v49 = vrot.slane %v48, 2
  %v50 = vadd.f32 %v48, %v49
  %v51 = vrot.slane %v50, 1
  %v52 = vadd.f32 %v50, %v51
  %v53 = vadd.f32 %v13, %v17
  %v54 = vadd.f32 %v53, %v21
  %v55 = vadd.f32 %v54, %v25
  %v56 = vrot.slane %v55, 4
  %v57 = vadd.f32 %v55, %v56
  %v58 = vrot.slane %v57, 2
  %v59 = vadd.f32 %v57, %v58
  %v60 = vrot.slane %v59, 1
  %v61 = vadd.f32 %v59, %v60
  %v66 = vrot.slane %v43, 7
  %v67 = vrot.slane %v52, 6
  %v68 = vrot.slane %v61, 5
  %vm69 = vcmask 1040384
  %v70 = vsel %vm69, %v34, %v66
  %vm71 = vcmask 1042434
  %v72 = vsel %vm71, %v67, %v68
  %vm73 = vcmask 1041408
  %v74 = vsel %vm73, %v70, %v72
  %v76 = vlaneseq
  %vm77 = vcmp.ge.s32.totalorder %v76, 0
  %vm78 = vcmp.lt.s32.totalorder %v76, 512
  %vm79 = vmand %vm77, %vm78
  %80 = vst.msk [vmem:[%s1] sm:$0xf] %vm79, %v74
  %v81 = vmul.f32 %v10, %v10
  %v82 = vmul.f32 %v11, %v11
  %v83 = vmul.f32 %v12, %v12
  %v84 = vmul.f32 %v13, %v13
  %v85 = vmul.f32 %v14, %v14
  %v86 = vmul.f32 %v15, %v15
  %v87 = vmul.f32 %v16, %v16
  %v88 = vmul.f32 %v17, %v17
  %v89 = vmul.f32 %v18, %v18
  %v90 = vmul.f32 %v19, %v19
  %v91 = vmul.f32 %v20, %v20
  %v92 = vmul.f32 %v21, %v21
  %v93 = vmul.f32 %v22, %v22
  %v94 = vmul.f32 %v23, %v23
  %v95 = vmul.f32 %v24, %v24
  %v96 = vmul.f32 %v25, %v25
  %v97 = vadd.f32 %v81, %v85
  %v98 = vadd.f32 %v97, %v89
  %v99 = vadd.f32 %v98, %v93
  %v100 = vrot.slane %v99, 4
  %v101 = vadd.f32 %v99, %v100
  %v102 = vrot.slane %v101, 2
  %v103 = vadd.f32 %v101, %v102
  %v104 = vrot.slane %v103, 1
  %v105 = vadd.f32 %v103, %v104
  %v106 = vadd.f32 %v82, %v86
  %v107 = vadd.f32 %v106, %v90
  %v108 = vadd.f32 %v107, %v94
  %v109 = vrot.slane %v108, 4
  %v110 = vadd.f32 %v108, %v109
  %v111 = vrot.slane %v110, 2
  %v112 = vadd.f32 %v110, %v111
  %v113 = vrot.slane %v112, 1
  %v114 = vadd.f32 %v112, %v113
  %v115 = vadd.f32 %v83, %v87
  %v116 = vadd.f32 %v115, %v91
  %v117 = vadd.f32 %v116, %v95
  %v118 = vrot.slane %v117, 4
  %v119 = vadd.f32 %v117, %v118
  %v120 = vrot.slane %v119, 2
  %v121 = vadd.f32 %v119, %v120
  %v122 = vrot.slane %v121, 1
  %v123 = vadd.f32 %v121, %v122
  %v124 = vadd.f32 %v84, %v88
  %v125 = vadd.f32 %v124, %v92
  %v126 = vadd.f32 %v125, %v96
  %v127 = vrot.slane %v126, 4
  %v128 = vadd.f32 %v126, %v127
  %v129 = vrot.slane %v128, 2
  %v130 = vadd.f32 %v128, %v129
  %v131 = vrot.slane %v130, 1
  %v132 = vadd.f32 %v130, %v131
  %v137 = vrot.slane %v114, 7
  %v138 = vrot.slane %v123, 6
  %v139 = vrot.slane %v132, 5
  %v140 = vsel %vm69, %v105, %v137
  %v141 = vsel %vm71, %v138, %v139
  %v142 = vsel %vm73, %v140, %v141
  %144 = vst.msk [vmem:[%s2] sm:$0xf] %vm79, %v142
  // Predicated region
  $region6: #{generator_forward.21} parent=0 // pred_check
    _
  $region7: #{generator_forward.21} parent=0 // pred_check_branch
    %146 = sbr.rel (0) target = $region9
  $region8: #{generator_forward.21} parent=0 // pred_region
    _
  $region9: #{generator_forward.21} parent=0 // pred_fallthru
    _
  // Predicated region
  $region10: #{generator_forward.21} parent=0 // pred_check
    _
  $region11: #{generator_forward.21} parent=0 // pred_check_branch
    %148 = sbr.rel (0) target = $region13
  $region12: #{generator_forward.21} parent=0 // pred_region
    _
  $region13: #{generator_forward.21} parent=0 // pred_fallthru
    _
  // Predicated region
  $region14: #{generator_forward.21} parent=0 // pred_check
    _
  $region15: #{generator_forward.21} parent=0 // pred_check_branch
    %150 = sbr.rel (0) target = $region17
  $region16: #{generator_forward.21} parent=0 // pred_region
    _
  $region17: #{generator_forward.21} parent=0 // pred_fallthru
    _
  // Predicated region
  $region18: #{generator_forward.21} parent=0 // pred_check
    _
  $region19: #{generator_forward.21} parent=0 // pred_check_branch
    %152 = sbr.rel (0) target = $region21
  $region20: #{generator_forward.21} parent=0 // pred_region
    _
  $region21: #{generator_forward.21} parent=0 // pred_fallthru
    _

// kernel: generator_forward.22
$region0: #{generator_forward.22}
  #allocation0 [shape = 'u32[]', space=smem, size = 0x4, offset = 0x4, fixed_abs, tag = 'smem constant byte address 0x4 - core index']
  #allocation1 [shape = 'u32[72,128]{1,0:T(1,128)}', space=vmem, size = 0x9000, scoped, tag = 'internal scratch']
  %s0 = inlined_call_operand.vmem [shape: f32[32,512], index: 0, kind: input, shape index: {}]
  %s1 = inlined_call_operand.vmem [shape: f32[1,512], index: 1, kind: input, shape index: {}]
  %s2 = inlined_call_operand.vmem [shape: f32[1,512], index: 2, kind: input, shape index: {}]
  %s3 = inlined_call_operand.vmem [shape: bf16[32,512], index: 3, kind: output, shape index: {}]
  %s4 = sld [smem:[#allocation0]]
  $region22: #{generator_forward.22} parent=0
    _
  %s6 = ssub.s32 1, %s4
  %s7 = scalar_select 0, %s6, %s4
  // Predicated region
  $region2: #{generator_forward.22} parent=0 // pred_check
    _
  $region3: #{generator_forward.22} parent=0 // pred_check_branch
    %9 = sbr.rel (0) target = $region5
  $region4: #{generator_forward.22} parent=0 // pred_region
    _
  $region5: #{generator_forward.22} parent=0 // pred_fallthru
    _
  // Predicated region
  $region6: #{generator_forward.22} parent=0 // pred_check
    _
  $region7: #{generator_forward.22} parent=0 // pred_check_branch
    %11 = sbr.rel (0) target = $region9
  $region8: #{generator_forward.22} parent=0 // pred_region
    _
  $region9: #{generator_forward.22} parent=0 // pred_fallthru
    _
  // Predicated region
  $region10: #{generator_forward.22} parent=0 // pred_check
    _
  $region11: #{generator_forward.22} parent=0 // pred_check_branch
    %13 = sbr.rel (0) target = $region13
  $region12: #{generator_forward.22} parent=0 // pred_region
    _
  $region13: #{generator_forward.22} parent=0 // pred_fallthru
    _
  %v14 = vld [vmem:[%s0] sm:$0xff]
  %v15 = vld [vmem:[%s0 + $0x8] sm:$0xff]
  %v16 = vld [vmem:[%s0 + $0x10] sm:$0xff]
  %v17 = vld [vmem:[%s0 + $0x18] sm:$0xff]
  %v18 = vld [vmem:[%s0 + $0x20] sm:$0xff]
  %v19 = vld [vmem:[%s0 + $0x28] sm:$0xff]
  %v20 = vld [vmem:[%s0 + $0x30] sm:$0xff]
  %v21 = vld [vmem:[%s0 + $0x38] sm:$0xff]
  %v22 = vld [vmem:[%s0 + $0x40] sm:$0xff]
  %v23 = vld [vmem:[%s0 + $0x48] sm:$0xff]
  %v24 = vld [vmem:[%s0 + $0x50] sm:$0xff]
  %v25 = vld [vmem:[%s0 + $0x58] sm:$0xff]
  %v26 = vld [vmem:[%s0 + $0x60] sm:$0xff]
  %v27 = vld [vmem:[%s0 + $0x68] sm:$0xff]
  %v28 = vld [vmem:[%s0 + $0x70] sm:$0xff]
  %v29 = vld [vmem:[%s0 + $0x78] sm:$0xff]
  %v30 = vld [vmem:[%s1] sm:$0xf]
  %v32 = vperm.slane %v30, 0
  %v33 = vperm.slane %v30, 1
  %v34 = vperm.slane %v30, 2
  %v35 = vperm.slane %v30, 3
  %v40 = vmul.f32 %v14, %v32
  %v41 = vmul.f32 %v15, %v33
  %v42 = vmul.f32 %v16, %v34
  %v43 = vmul.f32 %v17, %v35
  %v44 = vmul.f32 %v18, %v32
  %v45 = vmul.f32 %v19, %v33
  %v46 = vmul.f32 %v20, %v34
  %v47 = vmul.f32 %v21, %v35
  %v48 = vmul.f32 %v22, %v32
  %v49 = vmul.f32 %v23, %v33
  %v50 = vmul.f32 %v24, %v34
  %v51 = vmul.f32 %v25, %v35
  %v52 = vmul.f32 %v26, %v32
  %v53 = vmul.f32 %v27, %v33
  %v54 = vmul.f32 %v28, %v34
  %v55 = vmul.f32 %v29, %v35
  %v56 = vld [vmem:[%s2] sm:$0xf]
  %v58 = vperm.slane %v56, 0
  %v59 = vperm.slane %v56, 1
  %v60 = vperm.slane %v56, 2
  %v61 = vperm.slane %v56, 3
  %v66 = vadd.f32 %v40, %v58
  %v67 = vadd.f32 %v41, %v59
  %v68 = vadd.f32 %v42, %v60
  %v69 = vadd.f32 %v43, %v61
  %v70 = vadd.f32 %v44, %v58
  %v71 = vadd.f32 %v45, %v59
  %v72 = vadd.f32 %v46, %v60
  %v73 = vadd.f32 %v47, %v61
  %v74 = vadd.f32 %v48, %v58
  %v75 = vadd.f32 %v49, %v59
  %v76 = vadd.f32 %v50, %v60
  %v77 = vadd.f32 %v51, %v61
  %v78 = vadd.f32 %v52, %v58
  %v79 = vadd.f32 %v53, %v59
  %v80 = vadd.f32 %v54, %v60
  %v81 = vadd.f32 %v55, %v61
  %v82 = vmax.f32 %v66, 0.0
  %v83 = vmax.f32 %v67, 0.0
  %v84 = vmax.f32 %v68, 0.0
  %v85 = vmax.f32 %v69, 0.0
  %v86 = vmax.f32 %v70, 0.0
  %v87 = vmax.f32 %v71, 0.0
  %v88 = vmax.f32 %v72, 0.0
  %v89 = vmax.f32 %v73, 0.0
  %v90 = vmax.f32 %v74, 0.0
  %v91 = vmax.f32 %v75, 0.0
  %v92 = vmax.f32 %v76, 0.0
  %v93 = vmax.f32 %v77, 0.0
  %v94 = vmax.f32 %v78, 0.0
  %v95 = vmax.f32 %v79, 0.0
  %v96 = vmax.f32 %v80, 0.0
  %v97 = vmax.f32 %v81, 0.0
  %v98 = vpack.c.bf16 %v83, %v82
  %v99 = vpack.c.bf16 %v85, %v84
  %v100 = vpack.c.bf16 %v87, %v86
  %v101 = vpack.c.bf16 %v89, %v88
  %v102 = vpack.c.bf16 %v91, %v90
  %v103 = vpack.c.bf16 %v93, %v92
  %v104 = vpack.c.bf16 %v95, %v94
  %v105 = vpack.c.bf16 %v97, %v96
  %106 = vst [vmem:[%s3] sm:$0xff] %v98
  %107 = vst [vmem:[%s3 + $0x8] sm:$0xff] %v99
  %108 = vst [vmem:[%s3 + $0x10] sm:$0xff] %v100
  %109 = vst [vmem:[%s3 + $0x18] sm:$0xff] %v101
  %110 = vst [vmem:[%s3 + $0x20] sm:$0xff] %v102
  %111 = vst [vmem:[%s3 + $0x28] sm:$0xff] %v103
  %112 = vst [vmem:[%s3 + $0x30] sm:$0xff] %v104
  %113 = vst [vmem:[%s3 + $0x38] sm:$0xff] %v105
  // Predicated region
  $region14: #{generator_forward.22} parent=0 // pred_check
    _
  $region15: #{generator_forward.22} parent=0 // pred_check_branch
    %115 = sbr.rel (0) target = $region17
  $region16: #{generator_forward.22} parent=0 // pred_region
    _
  $region17: #{generator_forward.22} parent=0 // pred_fallthru
    _
  // Predicated region
  $region18: #{generator_forward.22} parent=0 // pred_check
    _
  $region19: #{generator_forward.22} parent=0 // pred_check_branch
    %117 = sbr.rel (0) target = $region21
  $region20: #{generator_forward.22} parent=0 // pred_region
    _
  $region21: #{generator_forward.22} parent=0 // pred_fallthru
    _

// kernel: generator_forward.23
$region0: #{generator_forward.23}
  #allocation0 [shape = 'u32[]', space=smem, size = 0x4, offset = 0x4, fixed_abs, tag = 'smem constant byte address 0x4 - core index']
  #allocation1 [shape = 'u32[72,128]{1,0:T(1,128)}', space=vmem, size = 0x9000, scoped, tag = 'internal scratch']
  %s0 = inlined_call_operand.vmem [shape: bf16[512,32], index: 0, kind: input, shape index: {}]
  %s1 = inlined_call_operand.vmem [shape: bf16[32,256], index: 1, kind: input, shape index: {}]
  %s2 = inlined_call_operand.vmem [shape: bf16[512,256], index: 2, kind: output, shape index: {}]
  %s3 = sld [smem:[#allocation0]]
  $region18: #{generator_forward.23} parent=0
    _
  %s5 = ssub.s32 1, %s3
  %s6 = scalar_select 0, %s5, %s3
  // Predicated region
  $region2: #{generator_forward.23} parent=0 // pred_check
    _
  $region3: #{generator_forward.23} parent=0 // pred_check_branch
    %8 = sbr.rel (0) target = $region5
  $region4: #{generator_forward.23} parent=0 // pred_region
    _
  $region5: #{generator_forward.23} parent=0 // pred_fallthru
    _
  // Predicated region
  $region6: #{generator_forward.23} parent=0 // pred_check
    _
  $region7: #{generator_forward.23} parent=0 // pred_check_branch
    %10 = sbr.rel (0) target = $region9
  $region8: #{generator_forward.23} parent=0 // pred_region
    _
  $region9: #{generator_forward.23} parent=0 // pred_fallthru
    _
  %v12 = vld [vmem:[%s0] sm:$0xf]
  %v13 = vld [vmem:[%s0 + $0x4] sm:$0xf]
  %v14 = vld [vmem:[%s0 + $0x8] sm:$0xf]
  %v15 = vld [vmem:[%s0 + $0xc] sm:$0xf]
  %v16 = vld [vmem:[%s0 + $0x10] sm:$0xf]
  %v17 = vld [vmem:[%s0 + $0x14] sm:$0xf]
  %v18 = vld [vmem:[%s0 + $0x18] sm:$0xf]
  %v19 = vld [vmem:[%s0 + $0x1c] sm:$0xf]
  %v20 = vld [vmem:[%s0 + $0x20] sm:$0xf]
  %v21 = vld [vmem:[%s0 + $0x24] sm:$0xf]
  %v22 = vld [vmem:[%s0 + $0x28] sm:$0xf]
  %v23 = vld [vmem:[%s0 + $0x2c] sm:$0xf]
  %v24 = vld [vmem:[%s0 + $0x30] sm:$0xf]
  %v25 = vld [vmem:[%s0 + $0x34] sm:$0xf]
  %v26 = vld [vmem:[%s0 + $0x38] sm:$0xf]
  %v27 = vld [vmem:[%s0 + $0x3c] sm:$0xf]
  %v28 = vld [vmem:[%s0 + $0x40] sm:$0xf]
  %v29 = vld [vmem:[%s0 + $0x44] sm:$0xf]
  %v30 = vld [vmem:[%s0 + $0x48] sm:$0xf]
  %v31 = vld [vmem:[%s0 + $0x4c] sm:$0xf]
  %v32 = vld [vmem:[%s0 + $0x50] sm:$0xf]
  %v33 = vld [vmem:[%s0 + $0x54] sm:$0xf]
  %v34 = vld [vmem:[%s0 + $0x58] sm:$0xf]
  %v35 = vld [vmem:[%s0 + $0x5c] sm:$0xf]
  %v36 = vld [vmem:[%s0 + $0x60] sm:$0xf]
  %v37 = vld [vmem:[%s0 + $0x64] sm:$0xf]
  %v38 = vld [vmem:[%s0 + $0x68] sm:$0xf]
  %v39 = vld [vmem:[%s0 + $0x6c] sm:$0xf]
  %v40 = vld [vmem:[%s0 + $0x70] sm:$0xf]
  %v41 = vld [vmem:[%s0 + $0x74] sm:$0xf]
  %v42 = vld [vmem:[%s0 + $0x78] sm:$0xf]
  %v43 = vld [vmem:[%s0 + $0x7c] sm:$0xf]
  %v44 = vld [vmem:[%s0 + $0x80] sm:$0xf]
  %v45 = vld [vmem:[%s0 + $0x84] sm:$0xf]
  %v46 = vld [vmem:[%s0 + $0x88] sm:$0xf]
  %v47 = vld [vmem:[%s0 + $0x8c] sm:$0xf]
  %v48 = vld [vmem:[%s0 + $0x90] sm:$0xf]
  %v49 = vld [vmem:[%s0 + $0x94] sm:$0xf]
  %v50 = vld [vmem:[%s0 + $0x98] sm:$0xf]
  %v51 = vld [vmem:[%s0 + $0x9c] sm:$0xf]
  %v52 = vld [vmem:[%s0 + $0xa0] sm:$0xf]
  %v53 = vld [vmem:[%s0 + $0xa4] sm:$0xf]
  %v54 = vld [vmem:[%s0 + $0xa8] sm:$0xf]
  %v55 = vld [vmem:[%s0 + $0xac] sm:$0xf]
  %v56 = vld [vmem:[%s0 + $0xb0] sm:$0xf]
  %v57 = vld [vmem:[%s0 + $0xb4] sm:$0xf]
  %v58 = vld [vmem:[%s0 + $0xb8] sm:$0xf]
  %v59 = vld [vmem:[%s0 + $0xbc] sm:$0xf]
  %v60 = vld [vmem:[%s0 + $0xc0] sm:$0xf]
  %v61 = vld [vmem:[%s0 + $0xc4] sm:$0xf]
  %v62 = vld [vmem:[%s0 + $0xc8] sm:$0xf]
  %v63 = vld [vmem:[%s0 + $0xcc] sm:$0xf]
  %v64 = vld [vmem:[%s0 + $0xd0] sm:$0xf]
  %v65 = vld [vmem:[%s0 + $0xd4] sm:$0xf]
  %v66 = vld [vmem:[%s0 + $0xd8] sm:$0xf]
  %v67 = vld [vmem:[%s0 + $0xdc] sm:$0xf]
  %v68 = vld [vmem:[%s0 + $0xe0] sm:$0xf]
  %v69 = vld [vmem:[%s0 + $0xe4] sm:$0xf]
  %v70 = vld [vmem:[%s0 + $0xe8] sm:$0xf]
  %v71 = vld [vmem:[%s0 + $0xec] sm:$0xf]
  %v72 = vld [vmem:[%s0 + $0xf0] sm:$0xf]
  %v73 = vld [vmem:[%s0 + $0xf4] sm:$0xf]
  %v74 = vld [vmem:[%s0 + $0xf8] sm:$0xf]
  %v75 = vld [vmem:[%s0 + $0xfc] sm:$0xf]
  %v76 = vld [vmem:[%s1] sm:$0xff]
  %v77 = vld [vmem:[%s1 + $0x8] sm:$0xff]
  %v78 = vld [vmem:[%s1 + $0x10] sm:$0xff]
  %v79 = vld [vmem:[%s1 + $0x18] sm:$0xff]
  %v144 = vunpack.c.l.b16 %v12
  %v145 = vunpack.c.l.b16 %v13
  %v146 = vunpack.c.l.b16 %v14
  %v147 = vunpack.c.l.b16 %v15
  %v148 = vunpack.c.l.b16 %v16
  %v149 = vunpack.c.l.b16 %v17
  %v150 = vunpack.c.l.b16 %v18
  %v151 = vunpack.c.l.b16 %v19
  %v152 = vunpack.c.l.b16 %v20
  %v153 = vunpack.c.l.b16 %v21
  %v154 = vunpack.c.l.b16 %v22
  %v155 = vunpack.c.l.b16 %v23
  %v156 = vunpack.c.l.b16 %v24
  %v157 = vunpack.c.l.b16 %v25
  %v158 = vunpack.c.l.b16 %v26
  %v159 = vunpack.c.l.b16 %v27
  %v160 = vunpack.c.l.b16 %v28
  %v161 = vunpack.c.l.b16 %v29
  %v162 = vunpack.c.l.b16 %v30
  %v163 = vunpack.c.l.b16 %v31
  %v164 = vunpack.c.l.b16 %v32
  %v165 = vunpack.c.l.b16 %v33
  %v166 = vunpack.c.l.b16 %v34
  %v167 = vunpack.c.l.b16 %v35
  %v168 = vunpack.c.l.b16 %v36
  %v169 = vunpack.c.l.b16 %v37
  %v170 = vunpack.c.l.b16 %v38
  %v171 = vunpack.c.l.b16 %v39
  %v172 = vunpack.c.l.b16 %v40
  %v173 = vunpack.c.l.b16 %v41
  %v174 = vunpack.c.l.b16 %v42
  %v175 = vunpack.c.l.b16 %v43
  %v176 = vunpack.c.l.b16 %v44
  %v177 = vunpack.c.l.b16 %v45
  %v178 = vunpack.c.l.b16 %v46
  %v179 = vunpack.c.l.b16 %v47
  %v180 = vunpack.c.l.b16 %v48
  %v181 = vunpack.c.l.b16 %v49
  %v182 = vunpack.c.l.b16 %v50
  %v183 = vunpack.c.l.b16 %v51
  %v184 = vunpack.c.l.b16 %v52
  %v185 = vunpack.c.l.b16 %v53
  %v186 = vunpack.c.l.b16 %v54
  %v187 = vunpack.c.l.b16 %v55
  %v188 = vunpack.c.l.b16 %v56
  %v189 = vunpack.c.l.b16 %v57
  %v190 = vunpack.c.l.b16 %v58
  %v191 = vunpack.c.l.b16 %v59
  %v192 = vunpack.c.l.b16 %v60
  %v193 = vunpack.c.l.b16 %v61
  %v194 = vunpack.c.l.b16 %v62
  %v195 = vunpack.c.l.b16 %v63
  %v196 = vunpack.c.l.b16 %v64
  %v197 = vunpack.c.l.b16 %v65
  %v198 = vunpack.c.l.b16 %v66
  %v199 = vunpack.c.l.b16 %v67
  %v200 = vunpack.c.l.b16 %v68
  %v201 = vunpack.c.l.b16 %v69
  %v202 = vunpack.c.l.b16 %v70
  %v203 = vunpack.c.l.b16 %v71
  %v204 = vunpack.c.l.b16 %v72
  %v205 = vunpack.c.l.b16 %v73
  %v206 = vunpack.c.l.b16 %v74
  %v207 = vunpack.c.l.b16 %v75
  %v208 = vpack.c.b16 %v145, %v144
  %v209 = vpack.c.b16 %v147, %v146
  %v210 = vpack.c.b16 %v149, %v148
  %v211 = vpack.c.b16 %v151, %v150
  %v212 = vpack.c.b16 %v153, %v152
  %v213 = vpack.c.b16 %v155, %v154
  %v214 = vpack.c.b16 %v157, %v156
  %v215 = vpack.c.b16 %v159, %v158
  %v216 = vpack.c.b16 %v161, %v160
  %v217 = vpack.c.b16 %v163, %v162
  %v218 = vpack.c.b16 %v165, %v164
  %v219 = vpack.c.b16 %v167, %v166
  %v220 = vpack.c.b16 %v169, %v168
  %v221 = vpack.c.b16 %v171, %v170
  %v222 = vpack.c.b16 %v173, %v172
  %v223 = vpack.c.b16 %v175, %v174
  %v224 = vpack.c.b16 %v177, %v176
  %v225 = vpack.c.b16 %v179, %v178
  %v226 = vpack.c.b16 %v181, %v180
  %v227 = vpack.c.b16 %v183, %v182
  %v228 = vpack.c.b16 %v185, %v184
  %v229 = vpack.c.b16 %v187, %v186
  %v230 = vpack.c.b16 %v189, %v188
  %v231 = vpack.c.b16 %v191, %v190
  %v232 = vpack.c.b16 %v193, %v192
  %v233 = vpack.c.b16 %v195, %v194
  %v234 = vpack.c.b16 %v197, %v196
  %v235 = vpack.c.b16 %v199, %v198
  %v236 = vpack.c.b16 %v201, %v200
  %v237 = vpack.c.b16 %v203, %v202
  %v238 = vpack.c.b16 %v205, %v204
  %v239 = vpack.c.b16 %v207, %v206
  %v244 = vunpack.c.l.b16 %v76
  %v245 = vunpack.c.h.b16 %v76
  %v246 = vunpack.c.l.b16 %v77
  %v247 = vunpack.c.h.b16 %v77
  %v248 = vunpack.c.l.b16 %v78
  %v249 = vunpack.c.h.b16 %v78
  %v250 = vunpack.c.l.b16 %v79
  %v251 = vunpack.c.h.b16 %v79
  %v252 = vpack.c.b16 %v246, %v244
  %v253 = vpack.c.b16 %v247, %v245
  %v254 = vpack.c.b16 %v250, %v248
  %v255 = vpack.c.b16 %v251, %v249
  %vm260 = vcmask 261120
  %v262 = vsel %vm260, %v208, 0
  %v265 = vsel %vm260, %v209, 0
  %v268 = vsel %vm260, %v210, 0
  %v271 = vsel %vm260, %v211, 0
  %v274 = vsel %vm260, %v212, 0
  %v277 = vsel %vm260, %v213, 0
  %v280 = vsel %vm260, %v214, 0
  %v283 = vsel %vm260, %v215, 0
  %v286 = vsel %vm260, %v216, 0
  %v289 = vsel %vm260, %v217, 0
  %v292 = vsel %vm260, %v218, 0
  %v295 = vsel %vm260, %v219, 0
  %v298 = vsel %vm260, %v220, 0
  %v301 = vsel %vm260, %v221, 0
  %v304 = vsel %vm260, %v222, 0
  %v307 = vsel %vm260, %v223, 0
  %v310 = vsel %vm260, %v224, 0
  %v313 = vsel %vm260, %v225, 0
  %v316 = vsel %vm260, %v226, 0
  %v319 = vsel %vm260, %v227, 0
  %v322 = vsel %vm260, %v228, 0
  %v325 = vsel %vm260, %v229, 0
  %v328 = vsel %vm260, %v230, 0
  %v331 = vsel %vm260, %v231, 0
  %v334 = vsel %vm260, %v232, 0
  %v337 = vsel %vm260, %v233, 0
  %v340 = vsel %vm260, %v234, 0
  %v343 = vsel %vm260, %v235, 0
  %v346 = vsel %vm260, %v236, 0
  %v349 = vsel %vm260, %v237, 0
  %v352 = vsel %vm260, %v238, 0
  %v355 = vsel %vm260, %v239, 0
  %357 = vmatpush.bf16.msra.mxu0 0
  %358 = vmatpush.bf16.msra.mxu0 0
  %359 = vmatpush.bf16.msra.mxu0 0
  %360 = vmatpush.bf16.msra.mxu0 0
  %361 = vmatpush.bf16.msra.mxu0 0
  %362 = vmatpush.bf16.msra.mxu0 0
  %363 = vmatpush.bf16.msra.mxu0 %v254
  %364 = vmatpush.bf16.msra.mxu0 %v252
  %365 = vmatmul.bf16.gmra.mxu0 %v262
  %v366 = vpop.f32.mrf.mxu0
  %v367 = vadd.f32 0.0, %v366
  %v368 = vpop.f32.mrf.mxu0
  %v369 = vadd.f32 0.0, %v368
  %370 = vmatmul.bf16.gmra.mxu0 %v265
  %v371 = vpop.f32.mrf.mxu0
  %v372 = vadd.f32 0.0, %v371
  %v373 = vpop.f32.mrf.mxu0
  %v374 = vadd.f32 0.0, %v373
  %375 = vmatmul.bf16.gmra.mxu0 %v268
  %v376 = vpop.f32.mrf.mxu0
  %v377 = vadd.f32 0.0, %v376
  %v378 = vpop.f32.mrf.mxu0
  %v379 = vadd.f32 0.0, %v378
  %380 = vmatmul.bf16.gmra.mxu0 %v271
  %v381 = vpop.f32.mrf.mxu0
  %v382 = vadd.f32 0.0, %v381
  %v383 = vpop.f32.mrf.mxu0
  %v384 = vadd.f32 0.0, %v383
  %385 = vmatmul.bf16.gmra.mxu0 %v274
  %v386 = vpop.f32.mrf.mxu0
  %v387 = vadd.f32 0.0, %v386
  %v388 = vpop.f32.mrf.mxu0
  %v389 = vadd.f32 0.0, %v388
  %390 = vmatmul.bf16.gmra.mxu0 %v277
  %v391 = vpop.f32.mrf.mxu0
  %v392 = vadd.f32 0.0, %v391
  %v393 = vpop.f32.mrf.mxu0
  %v394 = vadd.f32 0.0, %v393
  %395 = vmatmul.bf16.gmra.mxu0 %v280
  %v396 = vpop.f32.mrf.mxu0
  %v397 = vadd.f32 0.0, %v396
  %v398 = vpop.f32.mrf.mxu0
  %v399 = vadd.f32 0.0, %v398
  %400 = vmatmul.bf16.gmra.mxu0 %v283
  %v401 = vpop.f32.mrf.mxu0
  %v402 = vadd.f32 0.0, %v401
  %v403 = vpop.f32.mrf.mxu0
  %v404 = vadd.f32 0.0, %v403
  %405 = vmatmul.bf16.gmra.mxu0 %v286
  %v406 = vpop.f32.mrf.mxu0
  %v407 = vadd.f32 0.0, %v406
  %v408 = vpop.f32.mrf.mxu0
  %v409 = vadd.f32 0.0, %v408
  %410 = vmatmul.bf16.gmra.mxu0 %v289
  %v411 = vpop.f32.mrf.mxu0
  %v412 = vadd.f32 0.0, %v411
  %v413 = vpop.f32.mrf.mxu0
  %v414 = vadd.f32 0.0, %v413
  %415 = vmatmul.bf16.gmra.mxu0 %v292
  %v416 = vpop.f32.mrf.mxu0
  %v417 = vadd.f32 0.0, %v416
  %v418 = vpop.f32.mrf.mxu0
  %v419 = vadd.f32 0.0, %v418
  %420 = vmatmul.bf16.gmra.mxu0 %v295
  %v421 = vpop.f32.mrf.mxu0
  %v422 = vadd.f32 0.0, %v421
  %v423 = vpop.f32.mrf.mxu0
  %v424 = vadd.f32 0.0, %v423
  %425 = vmatmul.bf16.gmra.mxu0 %v298
  %v426 = vpop.f32.mrf.mxu0
  %v427 = vadd.f32 0.0, %v426
  %v428 = vpop.f32.mrf.mxu0
  %v429 = vadd.f32 0.0, %v428
  %430 = vmatmul.bf16.gmra.mxu0 %v301
  %v431 = vpop.f32.mrf.mxu0
  %v432 = vadd.f32 0.0, %v431
  %v433 = vpop.f32.mrf.mxu0
  %v434 = vadd.f32 0.0, %v433
  %435 = vmatmul.bf16.gmra.mxu0 %v304
  %v436 = vpop.f32.mrf.mxu0
  %v437 = vadd.f32 0.0, %v436
  %v438 = vpop.f32.mrf.mxu0
  %v439 = vadd.f32 0.0, %v438
  %440 = vmatmul.bf16.gmra.mxu0 %v307
  %v441 = vpop.f32.mrf.mxu0
  %v442 = vadd.f32 0.0, %v441
  %v443 = vpop.f32.mrf.mxu0
  %v444 = vadd.f32 0.0, %v443
  %445 = vmatmul.bf16.gmra.mxu0 %v310
  %v446 = vpop.f32.mrf.mxu0
  %v447 = vadd.f32 0.0, %v446
  %v448 = vpop.f32.mrf.mxu0
  %v449 = vadd.f32 0.0, %v448
  %450 = vmatmul.bf16.gmra.mxu0 %v313
  %v451 = vpop.f32.mrf.mxu0
  %v452 = vadd.f32 0.0, %v451
  %v453 = vpop.f32.mrf.mxu0
  %v454 = vadd.f32 0.0, %v453
  %455 = vmatmul.bf16.gmra.mxu0 %v316
  %v456 = vpop.f32.mrf.mxu0
  %v457 = vadd.f32 0.0, %v456
  %v458 = vpop.f32.mrf.mxu0
  %v459 = vadd.f32 0.0, %v458
  %460 = vmatmul.bf16.gmra.mxu0 %v319
  %v461 = vpop.f32.mrf.mxu0
  %v462 = vadd.f32 0.0, %v461
  %v463 = vpop.f32.mrf.mxu0
  %v464 = vadd.f32 0.0, %v463
  %465 = vmatmul.bf16.gmra.mxu0 %v322
  %v466 = vpop.f32.mrf.mxu0
  %v467 = vadd.f32 0.0, %v466
  %v468 = vpop.f32.mrf.mxu0
  %v469 = vadd.f32 0.0, %v468
  %470 = vmatmul.bf16.gmra.mxu0 %v325
  %v471 = vpop.f32.mrf.mxu0
  %v472 = vadd.f32 0.0, %v471
  %v473 = vpop.f32.mrf.mxu0
  %v474 = vadd.f32 0.0, %v473
  %475 = vmatmul.bf16.gmra.mxu0 %v328
  %v476 = vpop.f32.mrf.mxu0
  %v477 = vadd.f32 0.0, %v476
  %v478 = vpop.f32.mrf.mxu0
  %v479 = vadd.f32 0.0, %v478
  %480 = vmatmul.bf16.gmra.mxu0 %v331
  %v481 = vpop.f32.mrf.mxu0
  %v482 = vadd.f32 0.0, %v481
  %v483 = vpop.f32.mrf.mxu0
  %v484 = vadd.f32 0.0, %v483
  %485 = vmatmul.bf16.gmra.mxu0 %v334
  %v486 = vpop.f32.mrf.mxu0
  %v487 = vadd.f32 0.0, %v486
  %v488 = vpop.f32.mrf.mxu0
  %v489 = vadd.f32 0.0, %v488
  %490 = vmatmul.bf16.gmra.mxu0 %v337
  %v491 = vpop.f32.mrf.mxu0
  %v492 = vadd.f32 0.0, %v491
  %v493 = vpop.f32.mrf.mxu0
  %v494 = vadd.f32 0.0, %v493
  %495 = vmatmul.bf16.gmra.mxu0 %v340
  %v496 = vpop.f32.mrf.mxu0
  %v497 = vadd.f32 0.0, %v496
  %v498 = vpop.f32.mrf.mxu0
  %v499 = vadd.f32 0.0, %v498
  %500 = vmatmul.bf16.gmra.mxu0 %v343
  %v501 = vpop.f32.mrf.mxu0
  %v502 = vadd.f32 0.0, %v501
  %v503 = vpop.f32.mrf.mxu0
  %v504 = vadd.f32 0.0, %v503
  %505 = vmatmul.bf16.gmra.mxu0 %v346
  %v506 = vpop.f32.mrf.mxu0
  %v507 = vadd.f32 0.0, %v506
  %v508 = vpop.f32.mrf.mxu0
  %v509 = vadd.f32 0.0, %v508
  %510 = vmatmul.bf16.gmra.mxu0 %v349
  %v511 = vpop.f32.mrf.mxu0
  %v512 = vadd.f32 0.0, %v511
  %v513 = vpop.f32.mrf.mxu0
  %v514 = vadd.f32 0.0, %v513
  %515 = vmatmul.bf16.gmra.mxu0 %v352
  %v516 = vpop.f32.mrf.mxu0
  %v517 = vadd.f32 0.0, %v516
  %v518 = vpop.f32.mrf.mxu0
  %v519 = vadd.f32 0.0, %v518
  %520 = vmatmul.bf16.gmra.mxu0 %v355
  %v521 = vpop.f32.mrf.mxu0
  %v522 = vadd.f32 0.0, %v521
  %v523 = vpop.f32.mrf.mxu0
  %v524 = vadd.f32 0.0, %v523
  %525 = vdwg.mxu0
  %526 = vmatpush.bf16.msra.mxu0 0
  %527 = vmatpush.bf16.msra.mxu0 0
  %528 = vmatpush.bf16.msra.mxu0 0
  %529 = vmatpush.bf16.msra.mxu0 0
  %530 = vmatpush.bf16.msra.mxu0 0
  %531 = vmatpush.bf16.msra.mxu0 0
  %532 = vmatpush.bf16.msra.mxu0 %v255
  %533 = vmatpush.bf16.msra.mxu0 %v253
  %534 = vmatmul.bf16.gmra.mxu0 %v262
  %v535 = vpop.f32.mrf.mxu0
  %v536 = vadd.f32 0.0, %v535
  %v537 = vpop.f32.mrf.mxu0
  %v538 = vadd.f32 0.0, %v537
  %539 = vmatmul.bf16.gmra.mxu0 %v265
  %v540 = vpop.f32.mrf.mxu0
  %v541 = vadd.f32 0.0, %v540
  %v542 = vpop.f32.mrf.mxu0
  %v543 = vadd.f32 0.0, %v542
  %544 = vmatmul.bf16.gmra.mxu0 %v268
  %v545 = vpop.f32.mrf.mxu0
  %v546 = vadd.f32 0.0, %v545
  %v547 = vpop.f32.mrf.mxu0
  %v548 = vadd.f32 0.0, %v547
  %549 = vmatmul.bf16.gmra.mxu0 %v271
  %v550 = vpop.f32.mrf.mxu0
  %v551 = vadd.f32 0.0, %v550
  %v552 = vpop.f32.mrf.mxu0
  %v553 = vadd.f32 0.0, %v552
  %554 = vmatmul.bf16.gmra.mxu0 %v274
  %v555 = vpop.f32.mrf.mxu0
  %v556 = vadd.f32 0.0, %v555
  %v557 = vpop.f32.mrf.mxu0
  %v558 = vadd.f32 0.0, %v557
  %559 = vmatmul.bf16.gmra.mxu0 %v277
  %v560 = vpop.f32.mrf.mxu0
  %v561 = vadd.f32 0.0, %v560
  %v562 = vpop.f32.mrf.mxu0
  %v563 = vadd.f32 0.0, %v562
  %564 = vmatmul.bf16.gmra.mxu0 %v280
  %v565 = vpop.f32.mrf.mxu0
  %v566 = vadd.f32 0.0, %v565
  %v567 = vpop.f32.mrf.mxu0
  %v568 = vadd.f32 0.0, %v567
  %569 = vmatmul.bf16.gmra.mxu0 %v283
  %v570 = vpop.f32.mrf.mxu0
  %v571 = vadd.f32 0.0, %v570
  %v572 = vpop.f32.mrf.mxu0
  %v573 = vadd.f32 0.0, %v572
  %574 = vmatmul.bf16.gmra.mxu0 %v286
  %v575 = vpop.f32.mrf.mxu0
  %v576 = vadd.f32 0.0, %v575
  %v577 = vpop.f32.mrf.mxu0
  %v578 = vadd.f32 0.0, %v577
  %579 = vmatmul.bf16.gmra.mxu0 %v289
  %v580 = vpop.f32.mrf.mxu0
  %v581 = vadd.f32 0.0, %v580
  %v582 = vpop.f32.mrf.mxu0
  %v583 = vadd.f32 0.0, %v582
  %584 = vmatmul.bf16.gmra.mxu0 %v292
  %v585 = vpop.f32.mrf.mxu0
  %v586 = vadd.f32 0.0, %v585
  %v587 = vpop.f32.mrf.mxu0
  %v588 = vadd.f32 0.0, %v587
  %589 = vmatmul.bf16.gmra.mxu0 %v295
  %v590 = vpop.f32.mrf.mxu0
  %v591 = vadd.f32 0.0, %v590
  %v592 = vpop.f32.mrf.mxu0
  %v593 = vadd.f32 0.0, %v592
  %594 = vmatmul.bf16.gmra.mxu0 %v298
  %v595 = vpop.f32.mrf.mxu0
  %v596 = vadd.f32 0.0, %v595
  %v597 = vpop.f32.mrf.mxu0
  %v598 = vadd.f32 0.0, %v597
  %599 = vmatmul.bf16.gmra.mxu0 %v301
  %v600 = vpop.f32.mrf.mxu0
  %v601 = vadd.f32 0.0, %v600
  %v602 = vpop.f32.mrf.mxu0
  %v603 = vadd.f32 0.0, %v602
  %604 = vmatmul.bf16.gmra.mxu0 %v304
  %v605 = vpop.f32.mrf.mxu0
  %v606 = vadd.f32 0.0, %v605
  %v607 = vpop.f32.mrf.mxu0
  %v608 = vadd.f32 0.0, %v607
  %609 = vmatmul.bf16.gmra.mxu0 %v307
  %v610 = vpop.f32.mrf.mxu0
  %v611 = vadd.f32 0.0, %v610
  %v612 = vpop.f32.mrf.mxu0
  %v613 = vadd.f32 0.0, %v612
  %614 = vmatmul.bf16.gmra.mxu0 %v310
  %v615 = vpop.f32.mrf.mxu0
  %v616 = vadd.f32 0.0, %v615
  %v617 = vpop.f32.mrf.mxu0
  %v618 = vadd.f32 0.0, %v617
  %619 = vmatmul.bf16.gmra.mxu0 %v313
  %v620 = vpop.f32.mrf.mxu0
  %v621 = vadd.f32 0.0, %v620
  %v622 = vpop.f32.mrf.mxu0
  %v623 = vadd.f32 0.0, %v622
  %624 = vmatmul.bf16.gmra.mxu0 %v316
  %v625 = vpop.f32.mrf.mxu0
  %v626 = vadd.f32 0.0, %v625
  %v627 = vpop.f32.mrf.mxu0
  %v628 = vadd.f32 0.0, %v627
  %629 = vmatmul.bf16.gmra.mxu0 %v319
  %v630 = vpop.f32.mrf.mxu0
  %v631 = vadd.f32 0.0, %v630
  %v632 = vpop.f32.mrf.mxu0
  %v633 = vadd.f32 0.0, %v632
  %634 = vmatmul.bf16.gmra.mxu0 %v322
  %v635 = vpop.f32.mrf.mxu0
  %v636 = vadd.f32 0.0, %v635
  %v637 = vpop.f32.mrf.mxu0
  %v638 = vadd.f32 0.0, %v637
  %639 = vmatmul.bf16.gmra.mxu0 %v325
  %v640 = vpop.f32.mrf.mxu0
  %v641 = vadd.f32 0.0, %v640
  %v642 = vpop.f32.mrf.mxu0
  %v643 = vadd.f32 0.0, %v642
  %644 = vmatmul.bf16.gmra.mxu0 %v328
  %v645 = vpop.f32.mrf.mxu0
  %v646 = vadd.f32 0.0, %v645
  %v647 = vpop.f32.mrf.mxu0
  %v648 = vadd.f32 0.0, %v647
  %649 = vmatmul.bf16.gmra.mxu0 %v331
  %v650 = vpop.f32.mrf.mxu0
  %v651 = vadd.f32 0.0, %v650
  %v652 = vpop.f32.mrf.mxu0
  %v653 = vadd.f32 0.0, %v652
  %654 = vmatmul.bf16.gmra.mxu0 %v334
  %v655 = vpop.f32.mrf.mxu0
  %v656 = vadd.f32 0.0, %v655
  %v657 = vpop.f32.mrf.mxu0
  %v658 = vadd.f32 0.0, %v657
  %659 = vmatmul.bf16.gmra.mxu0 %v337
  %v660 = vpop.f32.mrf.mxu0
  %v661 = vadd.f32 0.0, %v660
  %v662 = vpop.f32.mrf.mxu0
  %v663 = vadd.f32 0.0, %v662
  %664 = vmatmul.bf16.gmra.mxu0 %v340
  %v665 = vpop.f32.mrf.mxu0
  %v666 = vadd.f32 0.0, %v665
  %v667 = vpop.f32.mrf.mxu0
  %v668 = vadd.f32 0.0, %v667
  %669 = vmatmul.bf16.gmra.mxu0 %v343
  %v670 = vpop.f32.mrf.mxu0
  %v671 = vadd.f32 0.0, %v670
  %v672 = vpop.f32.mrf.mxu0
  %v673 = vadd.f32 0.0, %v672
  %674 = vmatmul.bf16.gmra.mxu0 %v346
  %v675 = vpop.f32.mrf.mxu0
  %v676 = vadd.f32 0.0, %v675
  %v677 = vpop.f32.mrf.mxu0
  %v678 = vadd.f32 0.0, %v677
  %679 = vmatmul.bf16.gmra.mxu0 %v349
  %v680 = vpop.f32.mrf.mxu0
  %v681 = vadd.f32 0.0, %v680
  %v682 = vpop.f32.mrf.mxu0
  %v683 = vadd.f32 0.0, %v682
  %684 = vmatmul.bf16.gmra.mxu0 %v352
  %v685 = vpop.f32.mrf.mxu0
  %v686 = vadd.f32 0.0, %v685
  %v687 = vpop.f32.mrf.mxu0
  %v688 = vadd.f32 0.0, %v687
  %689 = vmatmul.bf16.gmra.mxu0 %v355
  %v690 = vpop.f32.mrf.mxu0
  %v691 = vadd.f32 0.0, %v690
  %v692 = vpop.f32.mrf.mxu0
  %v693 = vadd.f32 0.0, %v692
  %694 = vdwg.mxu0
  %v695 = vpack.c.bf16 %v536, %v367
  %v696 = vpack.c.bf16 %v538, %v369
  %v697 = vpack.c.bf16 %v541, %v372
  %v698 = vpack.c.bf16 %v543, %v374
  %v699 = vpack.c.bf16 %v546, %v377
  %v700 = vpack.c.bf16 %v548, %v379
  %v701 = vpack.c.bf16 %v551, %v382
  %v702 = vpack.c.bf16 %v553, %v384
  %v703 = vpack.c.bf16 %v556, %v387
  %v704 = vpack.c.bf16 %v558, %v389
  %v705 = vpack.c.bf16 %v561, %v392
  %v706 = vpack.c.bf16 %v563, %v394
  %v707 = vpack.c.bf16 %v566, %v397
  %v708 = vpack.c.bf16 %v568, %v399
  %v709 = vpack.c.bf16 %v571, %v402
  %v710 = vpack.c.bf16 %v573, %v404
  %v711 = vpack.c.bf16 %v576, %v407
  %v712 = vpack.c.bf16 %v578, %v409
  %v713 = vpack.c.bf16 %v581, %v412
  %v714 = vpack.c.bf16 %v583, %v414
  %v715 = vpack.c.bf16 %v586, %v417
  %v716 = vpack.c.bf16 %v588, %v419
  %v717 = vpack.c.bf16 %v591, %v422
  %v718 = vpack.c.bf16 %v593, %v424
  %v719 = vpack.c.bf16 %v596, %v427
  %v720 = vpack.c.bf16 %v598, %v429
  %v721 = vpack.c.bf16 %v601, %v432
  %v722 = vpack.c.bf16 %v603, %v434
  %v723 = vpack.c.bf16 %v606, %v437
  %v724 = vpack.c.bf16 %v608, %v439
  %v725 = vpack.c.bf16 %v611, %v442
  %v726 = vpack.c.bf16 %v613, %v444
  %v727 = vpack.c.bf16 %v616, %v447
  %v728 = vpack.c.bf16 %v618, %v449
  %v729 = vpack.c.bf16 %v621, %v452
  %v730 = vpack.c.bf16 %v623, %v454
  %v731 = vpack.c.bf16 %v626, %v457
  %v732 = vpack.c.bf16 %v628, %v459
  %v733 = vpack.c.bf16 %v631, %v462
  %v734 = vpack.c.bf16 %v633, %v464
  %v735 = vpack.c.bf16 %v636, %v467
  %v736 = vpack.c.bf16 %v638, %v469
  %v737 = vpack.c.bf16 %v641, %v472
  %v738 = vpack.c.bf16 %v643, %v474
  %v739 = vpack.c.bf16 %v646, %v477
  %v740 = vpack.c.bf16 %v648, %v479
  %v741 = vpack.c.bf16 %v651, %v482
  %v742 = vpack.c.bf16 %v653, %v484
  %v743 = vpack.c.bf16 %v656, %v487
  %v744 = vpack.c.bf16 %v658, %v489
  %v745 = vpack.c.bf16 %v661, %v492
  %v746 = vpack.c.bf16 %v663, %v494
  %v747 = vpack.c.bf16 %v666, %v497
  %v748 = vpack.c.bf16 %v668, %v499
  %v749 = vpack.c.bf16 %v671, %v502
  %v750 = vpack.c.bf16 %v673, %v504
  %v751 = vpack.c.bf16 %v676, %v507
  %v752 = vpack.c.bf16 %v678, %v509
  %v753 = vpack.c.bf16 %v681, %v512
  %v754 = vpack.c.bf16 %v683, %v514
  %v755 = vpack.c.bf16 %v686, %v517
  %v756 = vpack.c.bf16 %v688, %v519
  %v757 = vpack.c.bf16 %v691, %v522
  %v758 = vpack.c.bf16 %v693, %v524
  %759 = vst [vmem:[%s2] sm:$0xff] %v695
  %760 = vst [vmem:[%s2 + $0x8] sm:$0xff] %v696
  %761 = vst [vmem:[%s2 + $0x10] sm:$0xff] %v697
  %762 = vst [vmem:[%s2 + $0x18] sm:$0xff] %v698
  %763 = vst [vmem:[%s2 + $0x20] sm:$0xff] %v699
  %764 = vst [vmem:[%s2 + $0x28] sm:$0xff] %v700
  %765 = vst [vmem:[%s2 + $0x30] sm:$0xff] %v701
  %766 = vst [vmem:[%s2 + $0x38] sm:$0xff] %v702
  %767 = vst [vmem:[%s2 + $0x40] sm:$0xff] %v703
  %768 = vst [vmem:[%s2 + $0x48] sm:$0xff] %v704
  %769 = vst [vmem:[%s2 + $0x50] sm:$0xff] %v705
  %770 = vst [vmem:[%s2 + $0x58] sm:$0xff] %v706
  %771 = vst [vmem:[%s2 + $0x60] sm:$0xff] %v707
  %772 = vst [vmem:[%s2 + $0x68] sm:$0xff] %v708
  %773 = vst [vmem:[%s2 + $0x70] sm:$0xff] %v709
  %774 = vst [vmem:[%s2 + $0x78] sm:$0xff] %v710
  %775 = vst [vmem:[%s2 + $0x80] sm:$0xff] %v711
  %776 = vst [vmem:[%s2 + $0x88] sm:$0xff] %v712
  %777 = vst [vmem:[%s2 + $0x90] sm:$0xff] %v713
  %778 = vst [vmem:[%s2 + $0x98] sm:$0xff] %v714
  %779 = vst [vmem:[%s2 + $0xa0] sm:$0xff] %v715
  %780 = vst [vmem:[%s2 + $0xa8] sm:$0xff] %v716
  %781 = vst [vmem:[%s2 + $0xb0] sm:$0xff] %v717
  %782 = vst [vmem:[%s2 + $0xb8] sm:$0xff] %v718
  %783 = vst [vmem:[%s2 + $0xc0] sm:$0xff] %v719
  %784 = vst [vmem:[%s2 + $0xc8] sm:$0xff] %v720
  %785 = vst [vmem:[%s2 + $0xd0] sm:$0xff] %v721
  %786 = vst [vmem:[%s2 + $0xd8] sm:$0xff] %v722
  %787 = vst [vmem:[%s2 + $0xe0] sm:$0xff] %v723
  %788 = vst [vmem:[%s2 + $0xe8] sm:$0xff] %v724
  %789 = vst [vmem:[%s2 + $0xf0] sm:$0xff] %v725
  %790 = vst [vmem:[%s2 + $0xf8] sm:$0xff] %v726
  %791 = vst [vmem:[%s2 + $0x100] sm:$0xff] %v727
  %792 = vst [vmem:[%s2 + $0x108] sm:$0xff] %v728
  %793 = vst [vmem:[%s2 + $0x110] sm:$0xff] %v729
  %794 = vst [vmem:[%s2 + $0x118] sm:$0xff] %v730
  %795 = vst [vmem:[%s2 + $0x120] sm:$0xff] %v731
  %796 = vst [vmem:[%s2 + $0x128] sm:$0xff] %v732
  %797 = vst [vmem:[%s2 + $0x130] sm:$0xff] %v733
  %798 = vst [vmem:[%s2 + $0x138] sm:$0xff] %v734
  %799 = vst [vmem:[%s2 + $0x140] sm:$0xff] %v735
  %800 = vst [vmem:[%s2 + $0x148] sm:$0xff] %v736
  %801 = vst [vmem:[%s2 + $0x150] sm:$0xff] %v737
  %802 = vst [vmem:[%s2 + $0x158] sm:$0xff] %v738
  %803 = vst [vmem:[%s2 + $0x160] sm:$0xff] %v739
  %804 = vst [vmem:[%s2 + $0x168] sm:$0xff] %v740
  %805 = vst [vmem:[%s2 + $0x170] sm:$0xff] %v741
  %806 = vst [vmem:[%s2 + $0x178] sm:$0xff] %v742
  %807 = vst [vmem:[%s2 + $0x180] sm:$0xff] %v743
  %808 = vst [vmem:[%s2 + $0x188] sm:$0xff] %v744
  %809 = vst [vmem:[%s2 + $0x190] sm:$0xff] %v745
  %810 = vst [vmem:[%s2 + $0x198] sm:$0xff] %v746
  %811 = vst [vmem:[%s2 + $0x1a0] sm:$0xff] %v747
  %812 = vst [vmem:[%s2 + $0x1a8] sm:$0xff] %v748
  %813 = vst [vmem:[%s2 + $0x1b0] sm:$0xff] %v749
  %814 = vst [vmem:[%s2 + $0x1b8] sm:$0xff] %v750
  %815 = vst [vmem:[%s2 + $0x1c0] sm:$0xff] %v751
  %816 = vst [vmem:[%s2 + $0x1c8] sm:$0xff] %v752
  %817 = vst [vmem:[%s2 + $0x1d0] sm:$0xff] %v753
  %818 = vst [vmem:[%s2 + $0x1d8] sm:$0xff] %v754
  %819 = vst [vmem:[%s2 + $0x1e0] sm:$0xff] %v755
  %820 = vst [vmem:[%s2 + $0x1e8] sm:$0xff] %v756
  %821 = vst [vmem:[%s2 + $0x1f0] sm:$0xff] %v757
  %822 = vst [vmem:[%s2 + $0x1f8] sm:$0xff] %v758
  // Predicated region
  $region10: #{generator_forward.23} parent=0 // pred_check
    _
  $region11: #{generator_forward.23} parent=0 // pred_check_branch
    %824 = sbr.rel (0) target = $region13
  $region12: #{generator_forward.23} parent=0 // pred_region
    _
  $region13: #{generator_forward.23} parent=0 // pred_fallthru
    _
  // Predicated region
  $region14: #{generator_forward.23} parent=0 // pred_check
    _
  $region15: #{generator_forward.23} parent=0 // pred_check_branch
    %826 = sbr.rel (0) target = $region17
  $region16: #{generator_forward.23} parent=0 // pred_region
    _
  $region17: #{generator_forward.23} parent=0 // pred_fallthru
    _

// kernel: tile.78
$region0: #{tile.78}
  #allocation0 [shape = 's32[1]{0}', space=sflag, size = 0x4, scoped, tag = 'scoped memory for tile.78']
  %s0 = inlined_call_operand.vmem [shape: f32[16], index: 0, kind: input, shape index: {}]
  %s1 = inlined_call_operand.vmem [shape: f32[32,16], index: 1, kind: output, shape index: {}]
  // Predicated region
  $region2: #{tile.78} parent=0 // pred_check
    _
  $region3: #{tile.78} parent=0 // pred_check_branch
    %3 = sbr.rel (0) target = $region5
  $region4: #{tile.78} parent=0 // pred_region
    _
  $region5: #{tile.78} parent=0 // pred_fallthru
    _
  %v4 = vld [vmem:[%s0] ss:$0 sm:$0xff]
  %5 = vst [vmem:[%s1] sm:$0xff] %v4
  %s6 = scalar_lea.vmem %s1, 8
  %7 = vst [vmem:[%s6] sm:$0xff] %v4
  %s8 = scalar_lea.vmem %s1, 16
  %9 = vst [vmem:[%s8] sm:$0xff] %v4
  %s10 = scalar_lea.vmem %s1, 24
  %11 = vst [vmem:[%s10] sm:$0xff] %v4

// kernel: tile.79
$region0: #{tile.79}
  %s0 = inlined_call_operand.vmem [shape: f32[32,16], index: 0, kind: input, shape index: {}]
  %s1 = inlined_call_operand.vmem [shape: f32[1,512], index: 1, kind: output, shape index: {}]
  $region1: #{tile.79} parent=0
    #allocation0 [shape = 'u8[16384]{0}', space=vmem, size = 0x4000, scoped, tag = 'scoped mem for output reshape']
    %v2 = vld [vmem:[%s0] ss:$8 sm:$0xf]
    %vm3 = vcmask 130048
    %4 = vst.msk [vmem:[#allocation0] ss:$8 sm:$0xf] %vm3, %v2
    %s5 = scalar_lea.vmem %s0, 7
    %v6 = vld [vmem:[%s5] ss:$8 sm:$0xf]
    %7 = vrot.lane.b32.xlu0 %v6, 112
    %v8 = vpop.permute.xlu0 %7
    %vm9 = vcmask 1048448
    %10 = vst.msk [vmem:[#allocation0] ss:$8 sm:$0xf] %vm9, %v8
    %s11 = scalar_lea.vmem %s0, 6
    %v12 = vld [vmem:[%s11] ss:$8 sm:$0xf]
    %13 = vrot.lane.b32.xlu0 %v12, 96
    %v14 = vpop.permute.xlu0 %13
    %vm15 = vcmask 917248
    %16 = vst.msk [vmem:[#allocation0] ss:$8 sm:$0xf] %vm15, %v14
    %s17 = scalar_lea.vmem %s0, 5
    %v18 = vld [vmem:[%s17] ss:$8 sm:$0xf]
    %19 = vrot.lane.b32.xlu0 %v18, 80
    %v20 = vpop.permute.xlu0 %19
    %vm21 = vcmask 786048
    %22 = vst.msk [vmem:[#allocation0] ss:$8 sm:$0xf] %vm21, %v20
    %s23 = scalar_lea.vmem %s0, 4
    %v24 = vld [vmem:[%s23] ss:$8 sm:$0xf]
    %25 = vrot.lane.b32.xlu0 %v24, 64
    %v26 = vpop.permute.xlu0 %25
    %vm27 = vcmask 654848
    %28 = vst.msk [vmem:[#allocation0] ss:$8 sm:$0xf] %vm27, %v26
    %s29 = scalar_lea.vmem %s0, 3
    %v30 = vld [vmem:[%s29] ss:$8 sm:$0xf]
    %31 = vrot.lane.b32.xlu0 %v30, 48
    %v32 = vpop.permute.xlu0 %31
    %vm33 = vcmask 523648
    %34 = vst.msk [vmem:[#allocation0] ss:$8 sm:$0xf] %vm33, %v32
    %s35 = scalar_lea.vmem %s0, 2
    %v36 = vld [vmem:[%s35] ss:$8 sm:$0xf]
    %37 = vrot.lane.b32.xlu0 %v36, 32
    %v38 = vpop.permute.xlu0 %37
    %vm39 = vcmask 392448
    %40 = vst.msk [vmem:[#allocation0] ss:$8 sm:$0xf] %vm39, %v38
    %s41 = scalar_lea.vmem %s0, 1
    %v42 = vld [vmem:[%s41] ss:$8 sm:$0xf]
    %43 = vrot.lane.b32.xlu0 %v42, 16
    %v44 = vpop.permute.xlu0 %43
    %vm45 = vcmask 261248
    %46 = vst.msk [vmem:[#allocation0] ss:$8 sm:$0xf] %vm45, %v44
    %s48 = ssub.s32 2, 1
    %v49 = vld [vmem:[#allocation0] sm:%s48]
    %s51 = ssub.s32 2, 1
    %52 = vst [vmem:[%s1] sm:%s51] %v49
    %s53 = scalar_lea.vmem [#allocation0], 8
    %v54 = vld [vmem:[%s53] sm:%s48]
    %s56 = ssub.s32 2, 1
    %s57 = scalar_lea.vmem %s1, 1
    %58 = vst [vmem:[%s57] sm:%s56] %v54
    %s59 = scalar_lea.vmem [#allocation0], 16
    %v60 = vld [vmem:[%s59] sm:%s48]
    %s62 = ssub.s32 2, 1
    %s63 = scalar_lea.vmem %s1, 2
    %64 = vst [vmem:[%s63] sm:%s62] %v60
    %s65 = scalar_lea.vmem [#allocation0], 24
    %v66 = vld [vmem:[%s65] sm:%s48]
    %s68 = ssub.s32 2, 1
    %s69 = scalar_lea.vmem %s1, 3
    %70 = vst [vmem:[%s69] sm:%s68] %v66

// kernel: generator_forward.24
$region0: #{generator_forward.24}
  #allocation0 [shape = 'u32[]', space=smem, size = 0x4, offset = 0x4, fixed_abs, tag = 'smem constant byte address 0x4 - core index']
  #allocation1 [shape = 'u32[72,128]{1,0:T(1,128)}', space=vmem, size = 0x9000, scoped, tag = 'internal scratch']
  %s0 = inlined_call_operand.vmem [shape: f32[64,512], index: 0, kind: input, shape index: {}]
  %s1 = inlined_call_operand.vmem [shape: f32[1,1,512], index: 1, kind: output, shape index: {0}]
  %s2 = inlined_call_operand.vmem [shape: f32[1,1,512], index: 2, kind: output, shape index: {1}]
  %3 = xla_tuple %s1, %s2
  %s4 = sld [smem:[#allocation0]]
  $region22: #{generator_forward.24} parent=0
    _
  %s6 = ssub.s32 1, %s4
  %s7 = scalar_select 0, %s6, %s4
  // Predicated region
  $region2: #{generator_forward.24} parent=0 // pred_check
    _
  $region3: #{generator_forward.24} parent=0 // pred_check_branch
    %9 = sbr.rel (0) target = $region5
  $region4: #{generator_forward.24} parent=0 // pred_region
    _
  $region5: #{generator_forward.24} parent=0 // pred_fallthru
    _
  %v10 = vld [vmem:[%s0] sm:$0xff]
  %v11 = vld [vmem:[%s0 + $0x8] sm:$0xff]
  %v12 = vld [vmem:[%s0 + $0x10] sm:$0xff]
  %v13 = vld [vmem:[%s0 + $0x18] sm:$0xff]
  %v14 = vld [vmem:[%s0 + $0x20] sm:$0xff]
  %v15 = vld [vmem:[%s0 + $0x28] sm:$0xff]
  %v16 = vld [vmem:[%s0 + $0x30] sm:$0xff]
  %v17 = vld [vmem:[%s0 + $0x38] sm:$0xff]
  %v18 = vld [vmem:[%s0 + $0x40] sm:$0xff]
  %v19 = vld [vmem:[%s0 + $0x48] sm:$0xff]
  %v20 = vld [vmem:[%s0 + $0x50] sm:$0xff]
  %v21 = vld [vmem:[%s0 + $0x58] sm:$0xff]
  %v22 = vld [vmem:[%s0 + $0x60] sm:$0xff]
  %v23 = vld [vmem:[%s0 + $0x68] sm:$0xff]
  %v24 = vld [vmem:[%s0 + $0x70] sm:$0xff]
  %v25 = vld [vmem:[%s0 + $0x78] sm:$0xff]
  %v26 = vld [vmem:[%s0 + $0x80] sm:$0xff]
  %v27 = vld [vmem:[%s0 + $0x88] sm:$0xff]
  %v28 = vld [vmem:[%s0 + $0x90] sm:$0xff]
  %v29 = vld [vmem:[%s0 + $0x98] sm:$0xff]
  %v30 = vld [vmem:[%s0 + $0xa0] sm:$0xff]
  %v31 = vld [vmem:[%s0 + $0xa8] sm:$0xff]
  %v32 = vld [vmem:[%s0 + $0xb0] sm:$0xff]
  %v33 = vld [vmem:[%s0 + $0xb8] sm:$0xff]
  %v34 = vld [vmem:[%s0 + $0xc0] sm:$0xff]
  %v35 = vld [vmem:[%s0 + $0xc8] sm:$0xff]
  %v36 = vld [vmem:[%s0 + $0xd0] sm:$0xff]
  %v37 = vld [vmem:[%s0 + $0xd8] sm:$0xff]
  %v38 = vld [vmem:[%s0 + $0xe0] sm:$0xff]
  %v39 = vld [vmem:[%s0 + $0xe8] sm:$0xff]
  %v40 = vld [vmem:[%s0 + $0xf0] sm:$0xff]
  %v41 = vld [vmem:[%s0 + $0xf8] sm:$0xff]
  %v42 = vadd.f32 %v10, %v14
  %v43 = vadd.f32 %v42, %v18
  %v44 = vadd.f32 %v43, %v22
  %v45 = vadd.f32 %v44, %v26
  %v46 = vadd.f32 %v45, %v30
  %v47 = vadd.f32 %v46, %v34
  %v48 = vadd.f32 %v47, %v38
  %v49 = vrot.slane %v48, 4
  %v50 = vadd.f32 %v48, %v49
  %v51 = vrot.slane %v50, 2
  %v52 = vadd.f32 %v50, %v51
  %v53 = vrot.slane %v52, 1
  %v54 = vadd.f32 %v52, %v53
  %v55 = vadd.f32 %v11, %v15
  %v56 = vadd.f32 %v55, %v19
  %v57 = vadd.f32 %v56, %v23
  %v58 = vadd.f32 %v57, %v27
  %v59 = vadd.f32 %v58, %v31
  %v60 = vadd.f32 %v59, %v35
  %v61 = vadd.f32 %v60, %v39
  %v62 = vrot.slane %v61, 4
  %v63 = vadd.f32 %v61, %v62
  %v64 = vrot.slane %v63, 2
  %v65 = vadd.f32 %v63, %v64
  %v66 = vrot.slane %v65, 1
  %v67 = vadd.f32 %v65, %v66
  %v68 = vadd.f32 %v12, %v16
  %v69 = vadd.f32 %v68, %v20
  %v70 = vadd.f32 %v69, %v24
  %v71 = vadd.f32 %v70, %v28
  %v72 = vadd.f32 %v71, %v32
  %v73 = vadd.f32 %v72, %v36
  %v74 = vadd.f32 %v73, %v40
  %v75 = vrot.slane %v74, 4
  %v76 = vadd.f32 %v74, %v75
  %v77 = vrot.slane %v76, 2
  %v78 = vadd.f32 %v76, %v77
  %v79 = vrot.slane %v78, 1
  %v80 = vadd.f32 %v78, %v79
  %v81 = vadd.f32 %v13, %v17
  %v82 = vadd.f32 %v81, %v21
  %v83 = vadd.f32 %v82, %v25
  %v84 = vadd.f32 %v83, %v29
  %v85 = vadd.f32 %v84, %v33
  %v86 = vadd.f32 %v85, %v37
  %v87 = vadd.f32 %v86, %v41
  %v88 = vrot.slane %v87, 4
  %v89 = vadd.f32 %v87, %v88
  %v90 = vrot.slane %v89, 2
  %v91 = vadd.f32 %v89, %v90
  %v92 = vrot.slane %v91, 1
  %v93 = vadd.f32 %v91, %v92
  %v98 = vrot.slane %v67, 7
  %v99 = vrot.slane %v80, 6
  %v100 = vrot.slane %v93, 5
  %vm101 = vcmask 1040384
  %v102 = vsel %vm101, %v54, %v98
  %vm103 = vcmask 1042434
  %v104 = vsel %vm103, %v99, %v100
  %vm105 = vcmask 1041408
  %v106 = vsel %vm105, %v102, %v104
  %v108 = vlaneseq
  %vm109 = vcmp.ge.s32.totalorder %v108, 0
  %vm110 = vcmp.lt.s32.totalorder %v108, 512
  %vm111 = vmand %vm109, %vm110
  %112 = vst.msk [vmem:[%s1] sm:$0xf] %vm111, %v106
  %v113 = vmul.f32 %v10, %v10
  %v114 = vmul.f32 %v11, %v11
  %v115 = vmul.f32 %v12, %v12
  %v116 = vmul.f32 %v13, %v13
  %v117 = vmul.f32 %v14, %v14
  %v118 = vmul.f32 %v15, %v15
  %v119 = vmul.f32 %v16, %v16
  %v120 = vmul.f32 %v17, %v17
  %v121 = vmul.f32 %v18, %v18
  %v122 = vmul.f32 %v19, %v19
  %v123 = vmul.f32 %v20, %v20
  %v124 = vmul.f32 %v21, %v21
  %v125 = vmul.f32 %v22, %v22
  %v126 = vmul.f32 %v23, %v23
  %v127 = vmul.f32 %v24, %v24
  %v128 = vmul.f32 %v25, %v25
  %v129 = vmul.f32 %v26, %v26
  %v130 = vmul.f32 %v27, %v27
  %v131 = vmul.f32 %v28, %v28
  %v132 = vmul.f32 %v29, %v29
  %v133 = vmul.f32 %v30, %v30
  %v134 = vmul.f32 %v31, %v31
  %v135 = vmul.f32 %v32, %v32
  %v136 = vmul.f32 %v33, %v33
  %v137 = vmul.f32 %v34, %v34
  %v138 = vmul.f32 %v35, %v35
  %v139 = vmul.f32 %v36, %v36
  %v140 = vmul.f32 %v37, %v37
  %v141 = vmul.f32 %v38, %v38
  %v142 = vmul.f32 %v39, %v39
  %v143 = vmul.f32 %v40, %v40
  %v144 = vmul.f32 %v41, %v41
  %v145 = vadd.f32 %v113, %v117
  %v146 = vadd.f32 %v145, %v121
  %v147 = vadd.f32 %v146, %v125
  %v148 = vadd.f32 %v147, %v129
  %v149 = vadd.f32 %v148, %v133
  %v150 = vadd.f32 %v149, %v137
  %v151 = vadd.f32 %v150, %v141
  %v152 = vrot.slane %v151, 4
  %v153 = vadd.f32 %v151, %v152
  %v154 = vrot.slane %v153, 2
  %v155 = vadd.f32 %v153, %v154
  %v156 = vrot.slane %v155, 1
  %v157 = vadd.f32 %v155, %v156
  %v158 = vadd.f32 %v114, %v118
  %v159 = vadd.f32 %v158, %v122
  %v160 = vadd.f32 %v159, %v126
  %v161 = vadd.f32 %v160, %v130
  %v162 = vadd.f32 %v161, %v134
  %v163 = vadd.f32 %v162, %v138
  %v164 = vadd.f32 %v163, %v142
  %v165 = vrot.slane %v164, 4
  %v166 = vadd.f32 %v164, %v165
  %v167 = vrot.slane %v166, 2
  %v168 = vadd.f32 %v166, %v167
  %v169 = vrot.slane %v168, 1
  %v170 = vadd.f32 %v168, %v169
  %v171 = vadd.f32 %v115, %v119
  %v172 = vadd.f32 %v171, %v123
  %v173 = vadd.f32 %v172, %v127
  %v174 = vadd.f32 %v173, %v131
  %v175 = vadd.f32 %v174, %v135
  %v176 = vadd.f32 %v175, %v139
  %v177 = vadd.f32 %v176, %v143
  %v178 = vrot.slane %v177, 4
  %v179 = vadd.f32 %v177, %v178
  %v180 = vrot.slane %v179, 2
  %v181 = vadd.f32 %v179, %v180
  %v182 = vrot.slane %v181, 1
  %v183 = vadd.f32 %v181, %v182
  %v184 = vadd.f32 %v116, %v120
  %v185 = vadd.f32 %v184, %v124
  %v186 = vadd.f32 %v185, %v128
  %v187 = vadd.f32 %v186, %v132
  %v188 = vadd.f32 %v187, %v136
  %v189 = vadd.f32 %v188, %v140
  %v190 = vadd.f32 %v189, %v144
  %v191 = vrot.slane %v190, 4
  %v192 = vadd.f32 %v190, %v191
  %v193 = vrot.slane %v192, 2
  %v194 = vadd.f32 %v192, %v193
  %v195 = vrot.slane %v194, 1
  %v196 = vadd.f32 %v194, %v195
  %v201 = vrot.slane %v170, 7
  %v202 = vrot.slane %v183, 6
  %v203 = vrot.slane %v196, 5
  %v204 = vsel %vm101, %v157, %v201
  %v205 = vsel %vm103, %v202, %v203
  %v206 = vsel %vm105, %v204, %v205
  %208 = vst.msk [vmem:[%s2] sm:$0xf] %vm111, %v206
  // Predicated region
  $region6: #{generator_forward.24} parent=0 // pred_check
    _
  $region7: #{generator_forward.24} parent=0 // pred_check_branch
    %210 = sbr.rel (0) target = $region9
  $region8: #{generator_forward.24} parent=0 // pred_region
    _
  $region9: #{generator_forward.24} parent=0 // pred_fallthru
    _
  // Predicated region
  $region10: #{generator_forward.24} parent=0 // pred_check
    _
  $region11: #{generator_forward.24} parent=0 // pred_check_branch
    %212 = sbr.rel (0) target = $region13
  $region12: #{generator_forward.24} parent=0 // pred_region
    _
  $region13: #{generator_forward.24} parent=0 // pred_fallthru
    _
  // Predicated region
  $region14: #{generator_forward.24} parent=0 // pred_check
    _
  $region15: #{generator_forward.24} parent=0 // pred_check_branch
    %214 = sbr.rel (0) target = $region17
  $region16: #{generator_forward.24} parent=0 // pred_region
    _
  $region17: #{generator_forward.24} parent=0 // pred_fallthru
    _
  // Predicated region
  $region18: #{generator_forward.24} parent=0 // pred_check
    _
  $region19: #{generator_forward.24} parent=0 // pred_check_branch
    %216 = sbr.rel (0) target = $region21
  $region20: #{generator_forward.24} parent=0 // pred_region
    _
  $region21: #{generator_forward.24} parent=0 // pred_fallthru
    _

// kernel: generator_forward.25
$region0: #{generator_forward.25}
  #allocation0 [shape = 'u32[]', space=smem, size = 0x4, offset = 0x4, fixed_abs, tag = 'smem constant byte address 0x4 - core index']
  #allocation1 [shape = 'u32[72,128]{1,0:T(1,128)}', space=vmem, size = 0x9000, scoped, tag = 'internal scratch']
  %s0 = inlined_call_operand.vmem [shape: f32[64,512], index: 0, kind: input, shape index: {}]
  %s1 = inlined_call_operand.vmem [shape: f32[1,512], index: 1, kind: input, shape index: {}]
  %s2 = inlined_call_operand.vmem [shape: f32[1,512], index: 2, kind: input, shape index: {}]
  %s3 = inlined_call_operand.vmem [shape: bf16[64,512], index: 3, kind: output, shape index: {}]
  %s4 = sld [smem:[#allocation0]]
  $region22: #{generator_forward.25} parent=0
    _
  %s6 = ssub.s32 1, %s4
  %s7 = scalar_select 0, %s6, %s4
  // Predicated region
  $region2: #{generator_forward.25} parent=0 // pred_check
    _
  $region3: #{generator_forward.25} parent=0 // pred_check_branch
    %9 = sbr.rel (0) target = $region5
  $region4: #{generator_forward.25} parent=0 // pred_region
    _
  $region5: #{generator_forward.25} parent=0 // pred_fallthru
    _
  // Predicated region
  $region6: #{generator_forward.25} parent=0 // pred_check
    _
  $region7: #{generator_forward.25} parent=0 // pred_check_branch
    %11 = sbr.rel (0) target = $region9
  $region8: #{generator_forward.25} parent=0 // pred_region
    _
  $region9: #{generator_forward.25} parent=0 // pred_fallthru
    _
  // Predicated region
  $region10: #{generator_forward.25} parent=0 // pred_check
    _
  $region11: #{generator_forward.25} parent=0 // pred_check_branch
    %13 = sbr.rel (0) target = $region13
  $region12: #{generator_forward.25} parent=0 // pred_region
    _
  $region13: #{generator_forward.25} parent=0 // pred_fallthru
    _
  %v14 = vld [vmem:[%s0] sm:$0xff]
  %v15 = vld [vmem:[%s0 + $0x8] sm:$0xff]
  %v16 = vld [vmem:[%s0 + $0x10] sm:$0xff]
  %v17 = vld [vmem:[%s0 + $0x18] sm:$0xff]
  %v18 = vld [vmem:[%s0 + $0x20] sm:$0xff]
  %v19 = vld [vmem:[%s0 + $0x28] sm:$0xff]
  %v20 = vld [vmem:[%s0 + $0x30] sm:$0xff]
  %v21 = vld [vmem:[%s0 + $0x38] sm:$0xff]
  %v22 = vld [vmem:[%s0 + $0x40] sm:$0xff]
  %v23 = vld [vmem:[%s0 + $0x48] sm:$0xff]
  %v24 = vld [vmem:[%s0 + $0x50] sm:$0xff]
  %v25 = vld [vmem:[%s0 + $0x58] sm:$0xff]
  %v26 = vld [vmem:[%s0 + $0x60] sm:$0xff]
  %v27 = vld [vmem:[%s0 + $0x68] sm:$0xff]
  %v28 = vld [vmem:[%s0 + $0x70] sm:$0xff]
  %v29 = vld [vmem:[%s0 + $0x78] sm:$0xff]
  %v30 = vld [vmem:[%s0 + $0x80] sm:$0xff]
  %v31 = vld [vmem:[%s0 + $0x88] sm:$0xff]
  %v32 = vld [vmem:[%s0 + $0x90] sm:$0xff]
  %v33 = vld [vmem:[%s0 + $0x98] sm:$0xff]
  %v34 = vld [vmem:[%s0 + $0xa0] sm:$0xff]
  %v35 = vld [vmem:[%s0 + $0xa8] sm:$0xff]
  %v36 = vld [vmem:[%s0 + $0xb0] sm:$0xff]
  %v37 = vld [vmem:[%s0 + $0xb8] sm:$0xff]
  %v38 = vld [vmem:[%s0 + $0xc0] sm:$0xff]
  %v39 = vld [vmem:[%s0 + $0xc8] sm:$0xff]
  %v40 = vld [vmem:[%s0 + $0xd0] sm:$0xff]
  %v41 = vld [vmem:[%s0 + $0xd8] sm:$0xff]
  %v42 = vld [vmem:[%s0 + $0xe0] sm:$0xff]
  %v43 = vld [vmem:[%s0 + $0xe8] sm:$0xff]
  %v44 = vld [vmem:[%s0 + $0xf0] sm:$0xff]
  %v45 = vld [vmem:[%s0 + $0xf8] sm:$0xff]
  %v46 = vld [vmem:[%s1] sm:$0xf]
  %v48 = vperm.slane %v46, 0
  %v49 = vperm.slane %v46, 1
  %v50 = vperm.slane %v46, 2
  %v51 = vperm.slane %v46, 3
  %v56 = vmul.f32 %v14, %v48
  %v57 = vmul.f32 %v15, %v49
  %v58 = vmul.f32 %v16, %v50
  %v59 = vmul.f32 %v17, %v51
  %v60 = vmul.f32 %v18, %v48
  %v61 = vmul.f32 %v19, %v49
  %v62 = vmul.f32 %v20, %v50
  %v63 = vmul.f32 %v21, %v51
  %v64 = vmul.f32 %v22, %v48
  %v65 = vmul.f32 %v23, %v49
  %v66 = vmul.f32 %v24, %v50
  %v67 = vmul.f32 %v25, %v51
  %v68 = vmul.f32 %v26, %v48
  %v69 = vmul.f32 %v27, %v49
  %v70 = vmul.f32 %v28, %v50
  %v71 = vmul.f32 %v29, %v51
  %v72 = vmul.f32 %v30, %v48
  %v73 = vmul.f32 %v31, %v49
  %v74 = vmul.f32 %v32, %v50
  %v75 = vmul.f32 %v33, %v51
  %v76 = vmul.f32 %v34, %v48
  %v77 = vmul.f32 %v35, %v49
  %v78 = vmul.f32 %v36, %v50
  %v79 = vmul.f32 %v37, %v51
  %v80 = vmul.f32 %v38, %v48
  %v81 = vmul.f32 %v39, %v49
  %v82 = vmul.f32 %v40, %v50
  %v83 = vmul.f32 %v41, %v51
  %v84 = vmul.f32 %v42, %v48
  %v85 = vmul.f32 %v43, %v49
  %v86 = vmul.f32 %v44, %v50
  %v87 = vmul.f32 %v45, %v51
  %v88 = vld [vmem:[%s2] sm:$0xf]
  %v90 = vperm.slane %v88, 0
  %v91 = vperm.slane %v88, 1
  %v92 = vperm.slane %v88, 2
  %v93 = vperm.slane %v88, 3
  %v98 = vadd.f32 %v56, %v90
  %v99 = vadd.f32 %v57, %v91
  %v100 = vadd.f32 %v58, %v92
  %v101 = vadd.f32 %v59, %v93
  %v102 = vadd.f32 %v60, %v90
  %v103 = vadd.f32 %v61, %v91
  %v104 = vadd.f32 %v62, %v92
  %v105 = vadd.f32 %v63, %v93
  %v106 = vadd.f32 %v64, %v90
  %v107 = vadd.f32 %v65, %v91
  %v108 = vadd.f32 %v66, %v92
  %v109 = vadd.f32 %v67, %v93
  %v110 = vadd.f32 %v68, %v90
  %v111 = vadd.f32 %v69, %v91
  %v112 = vadd.f32 %v70, %v92
  %v113 = vadd.f32 %v71, %v93
  %v114 = vadd.f32 %v72, %v90
  %v115 = vadd.f32 %v73, %v91
  %v116 = vadd.f32 %v74, %v92
  %v117 = vadd.f32 %v75, %v93
  %v118 = vadd.f32 %v76, %v90
  %v119 = vadd.f32 %v77, %v91
  %v120 = vadd.f32 %v78, %v92
  %v121 = vadd.f32 %v79, %v93
  %v122 = vadd.f32 %v80, %v90
  %v123 = vadd.f32 %v81, %v91
  %v124 = vadd.f32 %v82, %v92
  %v125 = vadd.f32 %v83, %v93
  %v126 = vadd.f32 %v84, %v90
  %v127 = vadd.f32 %v85, %v91
  %v128 = vadd.f32 %v86, %v92
  %v129 = vadd.f32 %v87, %v93
  %v130 = vmax.f32 %v98, 0.0
  %v131 = vmax.f32 %v99, 0.0
  %v132 = vmax.f32 %v100, 0.0
  %v133 = vmax.f32 %v101, 0.0
  %v134 = vmax.f32 %v102, 0.0
  %v135 = vmax.f32 %v103, 0.0
  %v136 = vmax.f32 %v104, 0.0
  %v137 = vmax.f32 %v105, 0.0
  %v138 = vmax.f32 %v106, 0.0
  %v139 = vmax.f32 %v107, 0.0
  %v140 = vmax.f32 %v108, 0.0
  %v141 = vmax.f32 %v109, 0.0
  %v142 = vmax.f32 %v110, 0.0
  %v143 = vmax.f32 %v111, 0.0
  %v144 = vmax.f32 %v112, 0.0
  %v145 = vmax.f32 %v113, 0.0
  %v146 = vmax.f32 %v114, 0.0
  %v147 = vmax.f32 %v115, 0.0
  %v148 = vmax.f32 %v116, 0.0
  %v149 = vmax.f32 %v117, 0.0
  %v150 = vmax.f32 %v118, 0.0
  %v151 = vmax.f32 %v119, 0.0
  %v152 = vmax.f32 %v120, 0.0
  %v153 = vmax.f32 %v121, 0.0
  %v154 = vmax.f32 %v122, 0.0
  %v155 = vmax.f32 %v123, 0.0
  %v156 = vmax.f32 %v124, 0.0
  %v157 = vmax.f32 %v125, 0.0
  %v158 = vmax.f32 %v126, 0.0
  %v159 = vmax.f32 %v127, 0.0
  %v160 = vmax.f32 %v128, 0.0
  %v161 = vmax.f32 %v129, 0.0
  %v162 = vpack.c.bf16 %v131, %v130
  %v163 = vpack.c.bf16 %v133, %v132
  %v164 = vpack.c.bf16 %v135, %v134
  %v165 = vpack.c.bf16 %v137, %v136
  %v166 = vpack.c.bf16 %v139, %v138
  %v167 = vpack.c.bf16 %v141, %v140
  %v168 = vpack.c.bf16 %v143, %v142
  %v169 = vpack.c.bf16 %v145, %v144
  %v170 = vpack.c.bf16 %v147, %v146
  %v171 = vpack.c.bf16 %v149, %v148
  %v172 = vpack.c.bf16 %v151, %v150
  %v173 = vpack.c.bf16 %v153, %v152
  %v174 = vpack.c.bf16 %v155, %v154
  %v175 = vpack.c.bf16 %v157, %v156
  %v176 = vpack.c.bf16 %v159, %v158
  %v177 = vpack.c.bf16 %v161, %v160
  %178 = vst [vmem:[%s3] sm:$0xff] %v162
  %179 = vst [vmem:[%s3 + $0x8] sm:$0xff] %v163
  %180 = vst [vmem:[%s3 + $0x10] sm:$0xff] %v164
  %181 = vst [vmem:[%s3 + $0x18] sm:$0xff] %v165
  %182 = vst [vmem:[%s3 + $0x20] sm:$0xff] %v166
  %183 = vst [vmem:[%s3 + $0x28] sm:$0xff] %v167
  %184 = vst [vmem:[%s3 + $0x30] sm:$0xff] %v168
  %185 = vst [vmem:[%s3 + $0x38] sm:$0xff] %v169
  %186 = vst [vmem:[%s3 + $0x40] sm:$0xff] %v170
  %187 = vst [vmem:[%s3 + $0x48] sm:$0xff] %v171
  %188 = vst [vmem:[%s3 + $0x50] sm:$0xff] %v172
  %189 = vst [vmem:[%s3 + $0x58] sm:$0xff] %v173
  %190 = vst [vmem:[%s3 + $0x60] sm:$0xff] %v174
  %191 = vst [vmem:[%s3 + $0x68] sm:$0xff] %v175
  %192 = vst [vmem:[%s3 + $0x70] sm:$0xff] %v176
  %193 = vst [vmem:[%s3 + $0x78] sm:$0xff] %v177
  // Predicated region
  $region14: #{generator_forward.25} parent=0 // pred_check
    _
  $region15: #{generator_forward.25} parent=0 // pred_check_branch
    %195 = sbr.rel (0) target = $region17
  $region16: #{generator_forward.25} parent=0 // pred_region
    _
  $region17: #{generator_forward.25} parent=0 // pred_fallthru
    _
  // Predicated region
  $region18: #{generator_forward.25} parent=0 // pred_check
    _
  $region19: #{generator_forward.25} parent=0 // pred_check_branch
    %197 = sbr.rel (0) target = $region21
  $region20: #{generator_forward.25} parent=0 // pred_region
    _
  $region21: #{generator_forward.25} parent=0 // pred_fallthru
    _

// kernel: generator_forward.26
$region0: #{generator_forward.26}
  #allocation0 [shape = 'u32[]', space=smem, size = 0x4, offset = 0x4, fixed_abs, tag = 'smem constant byte address 0x4 - core index']
  #allocation1 [shape = 'u32[72,128]{1,0:T(1,128)}', space=vmem, size = 0x9000, scoped, tag = 'internal scratch']
  %s0 = inlined_call_operand.vmem [shape: bf16[2048,16], index: 0, kind: input, shape index: {}]
  %s1 = inlined_call_operand.vmem [shape: bf16[16,48], index: 1, kind: input, shape index: {}]
  %s2 = inlined_call_operand.vmem [shape: bf16[2048,48], index: 2, kind: output, shape index: {}]
  %s3 = sld [smem:[#allocation0]]
  $region41: #{generator_forward.26} parent=0
    _
  %s5 = ssub.s32 1, %s3
  %s6 = scalar_select 0, %s5, %s3
  loop: start=0, step=1, limit=6
  $region2: #{generator_forward.26} parent=0 // loop_pre_header
    _
  $region3: #{generator_forward.26} parent=0 // loop_header
    %s8 = sphi 0, %s12
    %p9 = scmp.ge.s32.totalorder %s8, 6
    %s15 = sphi 0, %s27
    %s16 = sphi 0, %s23
    %s17 = sphi 0, %s15
    %s18 = sphi 0, %s16
    %s19 = sphi 0, %s17
    %s20 = sphi 0, %s18
    %s30 = sphi 0, %s32
    %s33 = sphi 0, %s30
    %s34 = sphi 0, %s33
    %s50 = sphi 0, %s34
    %s56 = sphi 0, %s58
    %s59 = sphi 0, %s56
    %s60 = sphi 0, %s59
    %s76 = sphi 0, %s60
    %s84 = sphi 0, %s86
    %s87 = sphi 0, %s84
    %s88 = sphi 0, %s87
    %s104 = sphi 0, %s88
  $region4: #{generator_forward.26} parent=0 // loop_header_branch
    %11 = sbr.rel (%p9) target = $region8
  $region5: #{generator_forward.26} parent=0 // loop_body
    %s13 = ssub.s32 %s8, 1
    %s14 = ssub.s32 %s8, 2
    %s21 = sadd.s32 1, %s16
    %p22 = scmp.ge.s32.totalorder %s21, 1
    %s23 = scalar_select %p22, 0, %s21
    %s24 = sadd.s32 1, %s15
    %s25 = scalar_select %p22, %s24, %s15
    %p26 = scmp.ge.s32.totalorder %s25, 4
    %s27 = scalar_select %p26, 0, %s25
    %s28 = ssub.s32 %s15, %s27
    %p29 = scmp.eq.s32.totalorder %s28, 0
    %s31 = sadd.s32 %s30, 1
    %s32 = scalar_select %p29, %s30, %s31
    %p35 = pneg %p29
    %p36 = scmp.eq.s32.totalorder %s8, 3
    %p37 = por %p35, %p36
    %p38 = scmp.ne.s32.totalorder %s30, %s33
    %p39 = scmp.eq.s32.totalorder %s8, 0
    %p40 = por %p38, %p39
    %p41 = scmp.ne.s32.totalorder %s30, %s33
    %p42 = scmp.eq.s32.totalorder %s13, 3
    %p43 = por %p41, %p42
    %p44 = scmp.ne.s32.totalorder %s33, %s34
    %p45 = scmp.eq.s32.totalorder %s13, 0
    %p46 = por %p44, %p45
    %p47 = scmp.ne.s32.totalorder %s33, %s34
    %p48 = scmp.eq.s32.totalorder %s14, 3
    %p49 = por %p47, %p48
    %p51 = scmp.ne.s32.totalorder %s34, %s50
    %p52 = scmp.eq.s32.totalorder %s14, 0
    %p53 = por %p51, %p52
    %s54 = ssub.s32 %s16, %s23
    %p55 = scmp.eq.s32.totalorder %s54, 0
    %s57 = sadd.s32 %s56, 1
    %s58 = scalar_select %p55, %s56, %s57
    %p61 = pneg %p55
    %p62 = scmp.eq.s32.totalorder %s8, 3
    %p63 = por %p61, %p62
    %p64 = scmp.ne.s32.totalorder %s56, %s59
    %p65 = scmp.eq.s32.totalorder %s8, 0
    %p66 = por %p64, %p65
    %p67 = scmp.ne.s32.totalorder %s56, %s59
    %p68 = scmp.eq.s32.totalorder %s13, 3
    %p69 = por %p67, %p68
    %p70 = scmp.ne.s32.totalorder %s59, %s60
    %p71 = scmp.eq.s32.totalorder %s13, 0
    %p72 = por %p70, %p71
    %p73 = scmp.ne.s32.totalorder %s59, %s60
    %p74 = scmp.eq.s32.totalorder %s14, 3
    %p75 = por %p73, %p74
    %p77 = scmp.ne.s32.totalorder %s60, %s76
    %p78 = scmp.eq.s32.totalorder %s14, 0
    %p79 = por %p77, %p78
    %s80 = ssub.s32 %s15, %s27
    %s81 = ssub.s32 %s16, %s23
    %s82 = sor.u32 %s80, %s81
    %p83 = scmp.eq.s32.totalorder %s82, 0
    %s85 = sadd.s32 %s84, 1
    %s86 = scalar_select %p83, %s84, %s85
    %p89 = pneg %p83
    %p90 = scmp.eq.s32.totalorder %s8, 3
    %p91 = por %p89, %p90
    %p92 = scmp.ne.s32.totalorder %s84, %s87
    %p93 = scmp.eq.s32.totalorder %s8, 0
    %p94 = por %p92, %p93
    %p95 = scmp.ne.s32.totalorder %s84, %s87
    %p96 = scmp.eq.s32.totalorder %s13, 3
    %p97 = por %p95, %p96
    %p98 = scmp.ne.s32.totalorder %s87, %s88
    %p99 = scmp.eq.s32.totalorder %s13, 0
    %p100 = por %p98, %p99
    %p101 = scmp.ne.s32.totalorder %s87, %s88
    %p102 = scmp.eq.s32.totalorder %s14, 3
    %p103 = por %p101, %p102
    %p105 = scmp.ne.s32.totalorder %s88, %s104
    %p106 = scmp.eq.s32.totalorder %s14, 0
    %p107 = por %p105, %p106
    %p108 = scmp.le.s32.totalorder 1, %s8
    %p109 = scmp.lt.s32.totalorder %s8, 5
    %p110 = pnand %p108, %p109
    %p111 = pneg %p110
    // Predicated region
    $region9: #{generator_forward.26} parent=5 // pred_check
      _
    $region10: #{generator_forward.26} parent=5 // pred_check_branch
      %113 = sbr.rel (%p110) target = $region12
    $region11: #{generator_forward.26} parent=5 // pred_region
      %s114 = ssub.s32 %s8, 1
      // Predicated region
      $region13: #{generator_forward.26} parent=11 // pred_check
        %p115 = pneg %p72
      $region14: #{generator_forward.26} parent=11 // pred_check_branch
        %117 = sbr.rel (%p115) target = $region16
      $region15: #{generator_forward.26} parent=11 // pred_region
        %p118 = scmp.lt.s32.totalorder %s18, 0
        %s119 = scalar_select %p118, %s18, 0
        %s120 = smul.addr %s119, 4
        %s121 = scalar_lea.vmem %s1, %s120
      $region16: #{generator_forward.26} parent=11 // pred_fallthru
        _
    $region12: #{generator_forward.26} parent=5 // pred_fallthru
      _
    %p122 = scmp.lt.s32.totalorder %s8, 4
    // Predicated region
    $region17: #{generator_forward.26} parent=5 // pred_check
      %p123 = pneg %p122
    $region18: #{generator_forward.26} parent=5 // pred_check_branch
      %125 = sbr.rel (%p123) target = $region20
    $region19: #{generator_forward.26} parent=5 // pred_region
      // Predicated region
      $region21: #{generator_forward.26} parent=19 // pred_check
        %p126 = pneg %p40
      $region22: #{generator_forward.26} parent=19 // pred_check_branch
        %128 = sbr.rel (%p126) target = $region24
      $region23: #{generator_forward.26} parent=19 // pred_region
        %s129 = smul.u32 64, %s15
        %p130 = scmp.lt.s32.totalorder %s129, 255
        %s131 = scalar_select %p130, %s129, 255
        %s132 = smul.addr %s131, 4
        %s133 = scalar_lea.vmem %s0, %s132
        %s134 = smul.u32 64, %s15
      $region24: #{generator_forward.26} parent=19 // pred_fallthru
        _
    $region20: #{generator_forward.26} parent=5 // pred_fallthru
      _
    %p135 = scmp.le.s32.totalorder 1, %s8
    %p136 = scmp.lt.s32.totalorder %s8, 5
    %p137 = pnand %p135, %p136
    %p138 = pneg %p137
    // Predicated region
    $region25: #{generator_forward.26} parent=5 // pred_check
      _
    $region26: #{generator_forward.26} parent=5 // pred_check_branch
      %140 = sbr.rel (%p137) target = $region28
    $region27: #{generator_forward.26} parent=5 // pred_region
      %s141 = ssub.s32 %s8, 1
      %s142 = smul.u32 64, %s17
      %p143 = scmp.lt.s32.totalorder %s142, 255
      %s144 = scalar_select %p143, %s142, 255
      %s145 = smul.addr %s144, 4
      %s146 = scalar_lea.vmem %s0, %s145
      %p147 = pneg %p46
      %p148 = pneg %p43
      %p149 = scmp.lt.s32.totalorder %s18, 0
      %s150 = scalar_select %p149, %s18, 0
      %s151 = smul.addr %s150, 4
      %s152 = scalar_lea.vmem %s1, %s151
      %p153 = pneg %p72
      %p154 = pneg %p69
      %p155 = pneg %p100
      %p156 = pneg %p97
      %s157 = smul.u32 64, %s17
      %p158 = scmp.lt.s32.totalorder %s157, 255
      %s159 = scalar_select %p158, %s157, 255
      %p160 = scmp.lt.s32.totalorder %s18, 0
      %s161 = scalar_select %p160, %s18, 0
      %s162 = sadd.s32 %s161, %s159
      %s163 = smul.addr %s162, 4
      %s164 = scalar_lea.vmem %s2, %s163
      %s165 = smul.u32 64, %s17
      %p166 = scmp.lt.s32.totalorder %s165, 255
      %s167 = scalar_select %p166, %s165, 255
      %s168 = smul.addr %s167, 4
      %s169 = scalar_lea.vmem %s0, %s168
      %s170 = smul.u32 64, %s17
      %p171 = scmp.lt.s32.totalorder %s18, 0
      %s172 = scalar_select %p171, %s18, 0
      %s173 = smul.addr %s172, 4
      %s174 = scalar_lea.vmem %s1, %s173
      %s175 = smul.u32 64, %s17
      %p176 = scmp.lt.s32.totalorder %s175, 255
      %s177 = scalar_select %p176, %s175, 255
      %p178 = scmp.lt.s32.totalorder %s18, 0
      %s179 = scalar_select %p178, %s18, 0
      %s180 = sadd.s32 %s179, %s177
      %s181 = smul.addr %s180, 4
      %s182 = scalar_lea.vmem %s2, %s181
      %s183 = smul.u32 64, %s17
      %v185 = vld [vmem:[%s169] sm:$0xf]
      %v186 = vld [vmem:[%s169 + $0x4] sm:$0xf]
      %v187 = vld [vmem:[%s169 + $0x8] sm:$0xf]
      %v188 = vld [vmem:[%s169 + $0xc] sm:$0xf]
      %v189 = vld [vmem:[%s169 + $0x10] sm:$0xf]
      %v190 = vld [vmem:[%s169 + $0x14] sm:$0xf]
      %v191 = vld [vmem:[%s169 + $0x18] sm:$0xf]
      %v192 = vld [vmem:[%s169 + $0x1c] sm:$0xf]
      %v193 = vld [vmem:[%s169 + $0x20] sm:$0xf]
      %v194 = vld [vmem:[%s169 + $0x24] sm:$0xf]
      %v195 = vld [vmem:[%s169 + $0x28] sm:$0xf]
      %v196 = vld [vmem:[%s169 + $0x2c] sm:$0xf]
      %v197 = vld [vmem:[%s169 + $0x30] sm:$0xf]
      %v198 = vld [vmem:[%s169 + $0x34] sm:$0xf]
      %v199 = vld [vmem:[%s169 + $0x38] sm:$0xf]
      %v200 = vld [vmem:[%s169 + $0x3c] sm:$0xf]
      %v201 = vld [vmem:[%s169 + $0x40] sm:$0xf]
      %v202 = vld [vmem:[%s169 + $0x44] sm:$0xf]
      %v203 = vld [vmem:[%s169 + $0x48] sm:$0xf]
      %v204 = vld [vmem:[%s169 + $0x4c] sm:$0xf]
      %v205 = vld [vmem:[%s169 + $0x50] sm:$0xf]
      %v206 = vld [vmem:[%s169 + $0x54] sm:$0xf]
      %v207 = vld [vmem:[%s169 + $0x58] sm:$0xf]
      %v208 = vld [vmem:[%s169 + $0x5c] sm:$0xf]
      %v209 = vld [vmem:[%s169 + $0x60] sm:$0xf]
      %v210 = vld [vmem:[%s169 + $0x64] sm:$0xf]
      %v211 = vld [vmem:[%s169 + $0x68] sm:$0xf]
      %v212 = vld [vmem:[%s169 + $0x6c] sm:$0xf]
      %v213 = vld [vmem:[%s169 + $0x70] sm:$0xf]
      %v214 = vld [vmem:[%s169 + $0x74] sm:$0xf]
      %v215 = vld [vmem:[%s169 + $0x78] sm:$0xf]
      %v216 = vld [vmem:[%s169 + $0x7c] sm:$0xf]
      %v217 = vld [vmem:[%s169 + $0x80] sm:$0xf]
      %v218 = vld [vmem:[%s169 + $0x84] sm:$0xf]
      %v219 = vld [vmem:[%s169 + $0x88] sm:$0xf]
      %v220 = vld [vmem:[%s169 + $0x8c] sm:$0xf]
      %v221 = vld [vmem:[%s169 + $0x90] sm:$0xf]
      %v222 = vld [vmem:[%s169 + $0x94] sm:$0xf]
      %v223 = vld [vmem:[%s169 + $0x98] sm:$0xf]
      %v224 = vld [vmem:[%s169 + $0x9c] sm:$0xf]
      %v225 = vld [vmem:[%s169 + $0xa0] sm:$0xf]
      %v226 = vld [vmem:[%s169 + $0xa4] sm:$0xf]
      %v227 = vld [vmem:[%s169 + $0xa8] sm:$0xf]
      %v228 = vld [vmem:[%s169 + $0xac] sm:$0xf]
      %v229 = vld [vmem:[%s169 + $0xb0] sm:$0xf]
      %v230 = vld [vmem:[%s169 + $0xb4] sm:$0xf]
      %v231 = vld [vmem:[%s169 + $0xb8] sm:$0xf]
      %v232 = vld [vmem:[%s169 + $0xbc] sm:$0xf]
      %v233 = vld [vmem:[%s169 + $0xc0] sm:$0xf]
      %v234 = vld [vmem:[%s169 + $0xc4] sm:$0xf]
      %v235 = vld [vmem:[%s169 + $0xc8] sm:$0xf]
      %v236 = vld [vmem:[%s169 + $0xcc] sm:$0xf]
      %v237 = vld [vmem:[%s169 + $0xd0] sm:$0xf]
      %v238 = vld [vmem:[%s169 + $0xd4] sm:$0xf]
      %v239 = vld [vmem:[%s169 + $0xd8] sm:$0xf]
      %v240 = vld [vmem:[%s169 + $0xdc] sm:$0xf]
      %v241 = vld [vmem:[%s169 + $0xe0] sm:$0xf]
      %v242 = vld [vmem:[%s169 + $0xe4] sm:$0xf]
      %v243 = vld [vmem:[%s169 + $0xe8] sm:$0xf]
      %v244 = vld [vmem:[%s169 + $0xec] sm:$0xf]
      %v245 = vld [vmem:[%s169 + $0xf0] sm:$0xf]
      %v246 = vld [vmem:[%s169 + $0xf4] sm:$0xf]
      %v247 = vld [vmem:[%s169 + $0xf8] sm:$0xf]
      %v248 = vld [vmem:[%s169 + $0xfc] sm:$0xf]
      %v249 = vld [vmem:[%s174] sm:$0xf]
      %v250 = vld [vmem:[%s174 + $0x4] sm:$0xf]
      %v315 = vunpack.c.l.b16 %v185
      %v316 = vunpack.c.l.b16 %v186
      %v317 = vunpack.c.l.b16 %v187
      %v318 = vunpack.c.l.b16 %v188
      %v319 = vunpack.c.l.b16 %v189
      %v320 = vunpack.c.l.b16 %v190
      %v321 = vunpack.c.l.b16 %v191
      %v322 = vunpack.c.l.b16 %v192
      %v323 = vunpack.c.l.b16 %v193
      %v324 = vunpack.c.l.b16 %v194
      %v325 = vunpack.c.l.b16 %v195
      %v326 = vunpack.c.l.b16 %v196
      %v327 = vunpack.c.l.b16 %v197
      %v328 = vunpack.c.l.b16 %v198
      %v329 = vunpack.c.l.b16 %v199
      %v330 = vunpack.c.l.b16 %v200
      %v331 = vunpack.c.l.b16 %v201
      %v332 = vunpack.c.l.b16 %v202
      %v333 = vunpack.c.l.b16 %v203
      %v334 = vunpack.c.l.b16 %v204
      %v335 = vunpack.c.l.b16 %v205
      %v336 = vunpack.c.l.b16 %v206
      %v337 = vunpack.c.l.b16 %v207
      %v338 = vunpack.c.l.b16 %v208
      %v339 = vunpack.c.l.b16 %v209
      %v340 = vunpack.c.l.b16 %v210
      %v341 = vunpack.c.l.b16 %v211
      %v342 = vunpack.c.l.b16 %v212
      %v343 = vunpack.c.l.b16 %v213
      %v344 = vunpack.c.l.b16 %v214
      %v345 = vunpack.c.l.b16 %v215
      %v346 = vunpack.c.l.b16 %v216
      %v347 = vunpack.c.l.b16 %v217
      %v348 = vunpack.c.l.b16 %v218
      %v349 = vunpack.c.l.b16 %v219
      %v350 = vunpack.c.l.b16 %v220
      %v351 = vunpack.c.l.b16 %v221
      %v352 = vunpack.c.l.b16 %v222
      %v353 = vunpack.c.l.b16 %v223
      %v354 = vunpack.c.l.b16 %v224
      %v355 = vunpack.c.l.b16 %v225
      %v356 = vunpack.c.l.b16 %v226
      %v357 = vunpack.c.l.b16 %v227
      %v358 = vunpack.c.l.b16 %v228
      %v359 = vunpack.c.l.b16 %v229
      %v360 = vunpack.c.l.b16 %v230
      %v361 = vunpack.c.l.b16 %v231
      %v362 = vunpack.c.l.b16 %v232
      %v363 = vunpack.c.l.b16 %v233
      %v364 = vunpack.c.l.b16 %v234
      %v365 = vunpack.c.l.b16 %v235
      %v366 = vunpack.c.l.b16 %v236
      %v367 = vunpack.c.l.b16 %v237
      %v368 = vunpack.c.l.b16 %v238
      %v369 = vunpack.c.l.b16 %v239
      %v370 = vunpack.c.l.b16 %v240
      %v371 = vunpack.c.l.b16 %v241
      %v372 = vunpack.c.l.b16 %v242
      %v373 = vunpack.c.l.b16 %v243
      %v374 = vunpack.c.l.b16 %v244
      %v375 = vunpack.c.l.b16 %v245
      %v376 = vunpack.c.l.b16 %v246
      %v377 = vunpack.c.l.b16 %v247
      %v378 = vunpack.c.l.b16 %v248
      %v379 = vpack.c.b16 %v316, %v315
      %v380 = vpack.c.b16 %v318, %v317
      %v381 = vpack.c.b16 %v320, %v319
      %v382 = vpack.c.b16 %v322, %v321
      %v383 = vpack.c.b16 %v324, %v323
      %v384 = vpack.c.b16 %v326, %v325
      %v385 = vpack.c.b16 %v328, %v327
      %v386 = vpack.c.b16 %v330, %v329
      %v387 = vpack.c.b16 %v332, %v331
      %v388 = vpack.c.b16 %v334, %v333
      %v389 = vpack.c.b16 %v336, %v335
      %v390 = vpack.c.b16 %v338, %v337
      %v391 = vpack.c.b16 %v340, %v339
      %v392 = vpack.c.b16 %v342, %v341
      %v393 = vpack.c.b16 %v344, %v343
      %v394 = vpack.c.b16 %v346, %v345
      %v395 = vpack.c.b16 %v348, %v347
      %v396 = vpack.c.b16 %v350, %v349
      %v397 = vpack.c.b16 %v352, %v351
      %v398 = vpack.c.b16 %v354, %v353
      %v399 = vpack.c.b16 %v356, %v355
      %v400 = vpack.c.b16 %v358, %v357
      %v401 = vpack.c.b16 %v360, %v359
      %v402 = vpack.c.b16 %v362, %v361
      %v403 = vpack.c.b16 %v364, %v363
      %v404 = vpack.c.b16 %v366, %v365
      %v405 = vpack.c.b16 %v368, %v367
      %v406 = vpack.c.b16 %v370, %v369
      %v407 = vpack.c.b16 %v372, %v371
      %v408 = vpack.c.b16 %v374, %v373
      %v409 = vpack.c.b16 %v376, %v375
      %v410 = vpack.c.b16 %v378, %v377
      %v413 = vunpack.c.l.b16 %v249
      %v414 = vunpack.c.l.b16 %v250
      %v415 = vpack.c.b16 %v414, %v413
      %vm417 = vcmask 130048
      %v419 = vsel %vm417, %v379, 0
      %v422 = vsel %vm417, %v380, 0
      %v425 = vsel %vm417, %v381, 0
      %v428 = vsel %vm417, %v382, 0
      %v431 = vsel %vm417, %v383, 0
      %v434 = vsel %vm417, %v384, 0
      %v437 = vsel %vm417, %v385, 0
      %v440 = vsel %vm417, %v386, 0
      %v443 = vsel %vm417, %v387, 0
      %v446 = vsel %vm417, %v388, 0
      %v449 = vsel %vm417, %v389, 0
      %v452 = vsel %vm417, %v390, 0
      %v455 = vsel %vm417, %v391, 0
      %v458 = vsel %vm417, %v392, 0
      %v461 = vsel %vm417, %v393, 0
      %v464 = vsel %vm417, %v394, 0
      %v467 = vsel %vm417, %v395, 0
      %v470 = vsel %vm417, %v396, 0
      %v473 = vsel %vm417, %v397, 0
      %v476 = vsel %vm417, %v398, 0
      %v479 = vsel %vm417, %v399, 0
      %v482 = vsel %vm417, %v400, 0
      %v485 = vsel %vm417, %v401, 0
      %v488 = vsel %vm417, %v402, 0
      %v491 = vsel %vm417, %v403, 0
      %v494 = vsel %vm417, %v404, 0
      %v497 = vsel %vm417, %v405, 0
      %v500 = vsel %vm417, %v406, 0
      %v503 = vsel %vm417, %v407, 0
      %v506 = vsel %vm417, %v408, 0
      %v509 = vsel %vm417, %v409, 0
      %v512 = vsel %vm417, %v410, 0
      %514 = vmatpush.bf16.msra.mxu0 0
      %515 = vmatpush.bf16.msra.mxu0 0
      %516 = vmatpush.bf16.msra.mxu0 0
      %517 = vmatpush.bf16.msra.mxu0 0
      %518 = vmatpush.bf16.msra.mxu0 0
      %519 = vmatpush.bf16.msra.mxu0 0
      %520 = vmatpush.bf16.msra.mxu0 0
      %521 = vmatpush.bf16.msra.mxu0 %v415
      %522 = vmatmul.bf16.gmra.mxu0 %v419
      %v523 = vpop.f32.mrf.mxu0
      %v524 = vadd.f32 0.0, %v523
      %v525 = vpop.f32.mrf.mxu0
      %v526 = vadd.f32 0.0, %v525
      %527 = vmatmul.bf16.gmra.mxu0 %v422
      %v528 = vpop.f32.mrf.mxu0
      %v529 = vadd.f32 0.0, %v528
      %v530 = vpop.f32.mrf.mxu0
      %v531 = vadd.f32 0.0, %v530
      %532 = vmatmul.bf16.gmra.mxu0 %v425
      %v533 = vpop.f32.mrf.mxu0
      %v534 = vadd.f32 0.0, %v533
      %v535 = vpop.f32.mrf.mxu0
      %v536 = vadd.f32 0.0, %v535
      %537 = vmatmul.bf16.gmra.mxu0 %v428
      %v538 = vpop.f32.mrf.mxu0
      %v539 = vadd.f32 0.0, %v538
      %v540 = vpop.f32.mrf.mxu0
      %v541 = vadd.f32 0.0, %v540
      %542 = vmatmul.bf16.gmra.mxu0 %v431
      %v543 = vpop.f32.mrf.mxu0
      %v544 = vadd.f32 0.0, %v543
      %v545 = vpop.f32.mrf.mxu0
      %v546 = vadd.f32 0.0, %v545
      %547 = vmatmul.bf16.gmra.mxu0 %v434
      %v548 = vpop.f32.mrf.mxu0
      %v549 = vadd.f32 0.0, %v548
      %v550 = vpop.f32.mrf.mxu0
      %v551 = vadd.f32 0.0, %v550
      %552 = vmatmul.bf16.gmra.mxu0 %v437
      %v553 = vpop.f32.mrf.mxu0
      %v554 = vadd.f32 0.0, %v553
      %v555 = vpop.f32.mrf.mxu0
      %v556 = vadd.f32 0.0, %v555
      %557 = vmatmul.bf16.gmra.mxu0 %v440
      %v558 = vpop.f32.mrf.mxu0
      %v559 = vadd.f32 0.0, %v558
      %v560 = vpop.f32.mrf.mxu0
      %v561 = vadd.f32 0.0, %v560
      %562 = vmatmul.bf16.gmra.mxu0 %v443
      %v563 = vpop.f32.mrf.mxu0
      %v564 = vadd.f32 0.0, %v563
      %v565 = vpop.f32.mrf.mxu0
      %v566 = vadd.f32 0.0, %v565
      %567 = vmatmul.bf16.gmra.mxu0 %v446
      %v568 = vpop.f32.mrf.mxu0
      %v569 = vadd.f32 0.0, %v568
      %v570 = vpop.f32.mrf.mxu0
      %v571 = vadd.f32 0.0, %v570
      %572 = vmatmul.bf16.gmra.mxu0 %v449
      %v573 = vpop.f32.mrf.mxu0
      %v574 = vadd.f32 0.0, %v573
      %v575 = vpop.f32.mrf.mxu0
      %v576 = vadd.f32 0.0, %v575
      %577 = vmatmul.bf16.gmra.mxu0 %v452
      %v578 = vpop.f32.mrf.mxu0
      %v579 = vadd.f32 0.0, %v578
      %v580 = vpop.f32.mrf.mxu0
      %v581 = vadd.f32 0.0, %v580
      %582 = vmatmul.bf16.gmra.mxu0 %v455
      %v583 = vpop.f32.mrf.mxu0
      %v584 = vadd.f32 0.0, %v583
      %v585 = vpop.f32.mrf.mxu0
      %v586 = vadd.f32 0.0, %v585
      %587 = vmatmul.bf16.gmra.mxu0 %v458
      %v588 = vpop.f32.mrf.mxu0
      %v589 = vadd.f32 0.0, %v588
      %v590 = vpop.f32.mrf.mxu0
      %v591 = vadd.f32 0.0, %v590
      %592 = vmatmul.bf16.gmra.mxu0 %v461
      %v593 = vpop.f32.mrf.mxu0
      %v594 = vadd.f32 0.0, %v593
      %v595 = vpop.f32.mrf.mxu0
      %v596 = vadd.f32 0.0, %v595
      %597 = vmatmul.bf16.gmra.mxu0 %v464
      %v598 = vpop.f32.mrf.mxu0
      %v599 = vadd.f32 0.0, %v598
      %v600 = vpop.f32.mrf.mxu0
      %v601 = vadd.f32 0.0, %v600
      %602 = vmatmul.bf16.gmra.mxu0 %v467
      %v603 = vpop.f32.mrf.mxu0
      %v604 = vadd.f32 0.0, %v603
      %v605 = vpop.f32.mrf.mxu0
      %v606 = vadd.f32 0.0, %v605
      %607 = vmatmul.bf16.gmra.mxu0 %v470
      %v608 = vpop.f32.mrf.mxu0
      %v609 = vadd.f32 0.0, %v608
      %v610 = vpop.f32.mrf.mxu0
      %v611 = vadd.f32 0.0, %v610
      %612 = vmatmul.bf16.gmra.mxu0 %v473
      %v613 = vpop.f32.mrf.mxu0
      %v614 = vadd.f32 0.0, %v613
      %v615 = vpop.f32.mrf.mxu0
      %v616 = vadd.f32 0.0, %v615
      %617 = vmatmul.bf16.gmra.mxu0 %v476
      %v618 = vpop.f32.mrf.mxu0
      %v619 = vadd.f32 0.0, %v618
      %v620 = vpop.f32.mrf.mxu0
      %v621 = vadd.f32 0.0, %v620
      %622 = vmatmul.bf16.gmra.mxu0 %v479
      %v623 = vpop.f32.mrf.mxu0
      %v624 = vadd.f32 0.0, %v623
      %v625 = vpop.f32.mrf.mxu0
      %v626 = vadd.f32 0.0, %v625
      %627 = vmatmul.bf16.gmra.mxu0 %v482
      %v628 = vpop.f32.mrf.mxu0
      %v629 = vadd.f32 0.0, %v628
      %v630 = vpop.f32.mrf.mxu0
      %v631 = vadd.f32 0.0, %v630
      %632 = vmatmul.bf16.gmra.mxu0 %v485
      %v633 = vpop.f32.mrf.mxu0
      %v634 = vadd.f32 0.0, %v633
      %v635 = vpop.f32.mrf.mxu0
      %v636 = vadd.f32 0.0, %v635
      %637 = vmatmul.bf16.gmra.mxu0 %v488
      %v638 = vpop.f32.mrf.mxu0
      %v639 = vadd.f32 0.0, %v638
      %v640 = vpop.f32.mrf.mxu0
      %v641 = vadd.f32 0.0, %v640
      %642 = vmatmul.bf16.gmra.mxu0 %v491
      %v643 = vpop.f32.mrf.mxu0
      %v644 = vadd.f32 0.0, %v643
      %v645 = vpop.f32.mrf.mxu0
      %v646 = vadd.f32 0.0, %v645
      %647 = vmatmul.bf16.gmra.mxu0 %v494
      %v648 = vpop.f32.mrf.mxu0
      %v649 = vadd.f32 0.0, %v648
      %v650 = vpop.f32.mrf.mxu0
      %v651 = vadd.f32 0.0, %v650
      %652 = vmatmul.bf16.gmra.mxu0 %v497
      %v653 = vpop.f32.mrf.mxu0
      %v654 = vadd.f32 0.0, %v653
      %v655 = vpop.f32.mrf.mxu0
      %v656 = vadd.f32 0.0, %v655
      %657 = vmatmul.bf16.gmra.mxu0 %v500
      %v658 = vpop.f32.mrf.mxu0
      %v659 = vadd.f32 0.0, %v658
      %v660 = vpop.f32.mrf.mxu0
      %v661 = vadd.f32 0.0, %v660
      %662 = vmatmul.bf16.gmra.mxu0 %v503
      %v663 = vpop.f32.mrf.mxu0
      %v664 = vadd.f32 0.0, %v663
      %v665 = vpop.f32.mrf.mxu0
      %v666 = vadd.f32 0.0, %v665
      %667 = vmatmul.bf16.gmra.mxu0 %v506
      %v668 = vpop.f32.mrf.mxu0
      %v669 = vadd.f32 0.0, %v668
      %v670 = vpop.f32.mrf.mxu0
      %v671 = vadd.f32 0.0, %v670
      %672 = vmatmul.bf16.gmra.mxu0 %v509
      %v673 = vpop.f32.mrf.mxu0
      %v674 = vadd.f32 0.0, %v673
      %v675 = vpop.f32.mrf.mxu0
      %v676 = vadd.f32 0.0, %v675
      %677 = vmatmul.bf16.gmra.mxu0 %v512
      %v678 = vpop.f32.mrf.mxu0
      %v679 = vadd.f32 0.0, %v678
      %v680 = vpop.f32.mrf.mxu0
      %v681 = vadd.f32 0.0, %v680
      %682 = vdwg.mxu0
      %v683 = vpack.c.bf16 %v524, %v524
      %v684 = vpack.c.bf16 %v526, %v526
      %v685 = vpack.c.bf16 %v529, %v529
      %v686 = vpack.c.bf16 %v531, %v531
      %v687 = vpack.c.bf16 %v534, %v534
      %v688 = vpack.c.bf16 %v536, %v536
      %v689 = vpack.c.bf16 %v539, %v539
      %v690 = vpack.c.bf16 %v541, %v541
      %v691 = vpack.c.bf16 %v544, %v544
      %v692 = vpack.c.bf16 %v546, %v546
      %v693 = vpack.c.bf16 %v549, %v549
      %v694 = vpack.c.bf16 %v551, %v551
      %v695 = vpack.c.bf16 %v554, %v554
      %v696 = vpack.c.bf16 %v556, %v556
      %v697 = vpack.c.bf16 %v559, %v559
      %v698 = vpack.c.bf16 %v561, %v561
      %v699 = vpack.c.bf16 %v564, %v564
      %v700 = vpack.c.bf16 %v566, %v566
      %v701 = vpack.c.bf16 %v569, %v569
      %v702 = vpack.c.bf16 %v571, %v571
      %v703 = vpack.c.bf16 %v574, %v574
      %v704 = vpack.c.bf16 %v576, %v576
      %v705 = vpack.c.bf16 %v579, %v579
      %v706 = vpack.c.bf16 %v581, %v581
      %v707 = vpack.c.bf16 %v584, %v584
      %v708 = vpack.c.bf16 %v586, %v586
      %v709 = vpack.c.bf16 %v589, %v589
      %v710 = vpack.c.bf16 %v591, %v591
      %v711 = vpack.c.bf16 %v594, %v594
      %v712 = vpack.c.bf16 %v596, %v596
      %v713 = vpack.c.bf16 %v599, %v599
      %v714 = vpack.c.bf16 %v601, %v601
      %v715 = vpack.c.bf16 %v604, %v604
      %v716 = vpack.c.bf16 %v606, %v606
      %v717 = vpack.c.bf16 %v609, %v609
      %v718 = vpack.c.bf16 %v611, %v611
      %v719 = vpack.c.bf16 %v614, %v614
      %v720 = vpack.c.bf16 %v616, %v616
      %v721 = vpack.c.bf16 %v619, %v619
      %v722 = vpack.c.bf16 %v621, %v621
      %v723 = vpack.c.bf16 %v624, %v624
      %v724 = vpack.c.bf16 %v626, %v626
      %v725 = vpack.c.bf16 %v629, %v629
      %v726 = vpack.c.bf16 %v631, %v631
      %v727 = vpack.c.bf16 %v634, %v634
      %v728 = vpack.c.bf16 %v636, %v636
      %v729 = vpack.c.bf16 %v639, %v639
      %v730 = vpack.c.bf16 %v641, %v641
      %v731 = vpack.c.bf16 %v644, %v644
      %v732 = vpack.c.bf16 %v646, %v646
      %v733 = vpack.c.bf16 %v649, %v649
      %v734 = vpack.c.bf16 %v651, %v651
      %v735 = vpack.c.bf16 %v654, %v654
      %v736 = vpack.c.bf16 %v656, %v656
      %v737 = vpack.c.bf16 %v659, %v659
      %v738 = vpack.c.bf16 %v661, %v661
      %v739 = vpack.c.bf16 %v664, %v664
      %v740 = vpack.c.bf16 %v666, %v666
      %v741 = vpack.c.bf16 %v669, %v669
      %v742 = vpack.c.bf16 %v671, %v671
      %v743 = vpack.c.bf16 %v674, %v674
      %v744 = vpack.c.bf16 %v676, %v676
      %v745 = vpack.c.bf16 %v679, %v679
      %v746 = vpack.c.bf16 %v681, %v681
      %vm747 = vcmask 388096
      %748 = vst.msk [vmem:[%s182] sm:$0xf] %vm747, %v683
      %749 = vst.msk [vmem:[%s182 + $0x4] sm:$0xf] %vm747, %v684
      %750 = vst.msk [vmem:[%s182 + $0x8] sm:$0xf] %vm747, %v685
      %751 = vst.msk [vmem:[%s182 + $0xc] sm:$0xf] %vm747, %v686
      %752 = vst.msk [vmem:[%s182 + $0x10] sm:$0xf] %vm747, %v687
      %753 = vst.msk [vmem:[%s182 + $0x14] sm:$0xf] %vm747, %v688
      %754 = vst.msk [vmem:[%s182 + $0x18] sm:$0xf] %vm747, %v689
      %755 = vst.msk [vmem:[%s182 + $0x1c] sm:$0xf] %vm747, %v690
      %756 = vst.msk [vmem:[%s182 + $0x20] sm:$0xf] %vm747, %v691
      %757 = vst.msk [vmem:[%s182 + $0x24] sm:$0xf] %vm747, %v692
      %758 = vst.msk [vmem:[%s182 + $0x28] sm:$0xf] %vm747, %v693
      %759 = vst.msk [vmem:[%s182 + $0x2c] sm:$0xf] %vm747, %v694
      %760 = vst.msk [vmem:[%s182 + $0x30] sm:$0xf] %vm747, %v695
      %761 = vst.msk [vmem:[%s182 + $0x34] sm:$0xf] %vm747, %v696
      %762 = vst.msk [vmem:[%s182 + $0x38] sm:$0xf] %vm747, %v697
      %763 = vst.msk [vmem:[%s182 + $0x3c] sm:$0xf] %vm747, %v698
      %764 = vst.msk [vmem:[%s182 + $0x40] sm:$0xf] %vm747, %v699
      %765 = vst.msk [vmem:[%s182 + $0x44] sm:$0xf] %vm747, %v700
      %766 = vst.msk [vmem:[%s182 + $0x48] sm:$0xf] %vm747, %v701
      %767 = vst.msk [vmem:[%s182 + $0x4c] sm:$0xf] %vm747, %v702
      %768 = vst.msk [vmem:[%s182 + $0x50] sm:$0xf] %vm747, %v703
      %769 = vst.msk [vmem:[%s182 + $0x54] sm:$0xf] %vm747, %v704
      %770 = vst.msk [vmem:[%s182 + $0x58] sm:$0xf] %vm747, %v705
      %771 = vst.msk [vmem:[%s182 + $0x5c] sm:$0xf] %vm747, %v706
      %772 = vst.msk [vmem:[%s182 + $0x60] sm:$0xf] %vm747, %v707
      %773 = vst.msk [vmem:[%s182 + $0x64] sm:$0xf] %vm747, %v708
      %774 = vst.msk [vmem:[%s182 + $0x68] sm:$0xf] %vm747, %v709
      %775 = vst.msk [vmem:[%s182 + $0x6c] sm:$0xf] %vm747, %v710
      %776 = vst.msk [vmem:[%s182 + $0x70] sm:$0xf] %vm747, %v711
      %777 = vst.msk [vmem:[%s182 + $0x74] sm:$0xf] %vm747, %v712
      %778 = vst.msk [vmem:[%s182 + $0x78] sm:$0xf] %vm747, %v713
      %779 = vst.msk [vmem:[%s182 + $0x7c] sm:$0xf] %vm747, %v714
      %780 = vst.msk [vmem:[%s182 + $0x80] sm:$0xf] %vm747, %v715
      %781 = vst.msk [vmem:[%s182 + $0x84] sm:$0xf] %vm747, %v716
      %782 = vst.msk [vmem:[%s182 + $0x88] sm:$0xf] %vm747, %v717
      %783 = vst.msk [vmem:[%s182 + $0x8c] sm:$0xf] %vm747, %v718
      %784 = vst.msk [vmem:[%s182 + $0x90] sm:$0xf] %vm747, %v719
      %785 = vst.msk [vmem:[%s182 + $0x94] sm:$0xf] %vm747, %v720
      %786 = vst.msk [vmem:[%s182 + $0x98] sm:$0xf] %vm747, %v721
      %787 = vst.msk [vmem:[%s182 + $0x9c] sm:$0xf] %vm747, %v722
      %788 = vst.msk [vmem:[%s182 + $0xa0] sm:$0xf] %vm747, %v723
      %789 = vst.msk [vmem:[%s182 + $0xa4] sm:$0xf] %vm747, %v724
      %790 = vst.msk [vmem:[%s182 + $0xa8] sm:$0xf] %vm747, %v725
      %791 = vst.msk [vmem:[%s182 + $0xac] sm:$0xf] %vm747, %v726
      %792 = vst.msk [vmem:[%s182 + $0xb0] sm:$0xf] %vm747, %v727
      %793 = vst.msk [vmem:[%s182 + $0xb4] sm:$0xf] %vm747, %v728
      %794 = vst.msk [vmem:[%s182 + $0xb8] sm:$0xf] %vm747, %v729
      %795 = vst.msk [vmem:[%s182 + $0xbc] sm:$0xf] %vm747, %v730
      %796 = vst.msk [vmem:[%s182 + $0xc0] sm:$0xf] %vm747, %v731
      %797 = vst.msk [vmem:[%s182 + $0xc4] sm:$0xf] %vm747, %v732
      %798 = vst.msk [vmem:[%s182 + $0xc8] sm:$0xf] %vm747, %v733
      %799 = vst.msk [vmem:[%s182 + $0xcc] sm:$0xf] %vm747, %v734
      %800 = vst.msk [vmem:[%s182 + $0xd0] sm:$0xf] %vm747, %v735
      %801 = vst.msk [vmem:[%s182 + $0xd4] sm:$0xf] %vm747, %v736
      %802 = vst.msk [vmem:[%s182 + $0xd8] sm:$0xf] %vm747, %v737
      %803 = vst.msk [vmem:[%s182 + $0xdc] sm:$0xf] %vm747, %v738
      %804 = vst.msk [vmem:[%s182 + $0xe0] sm:$0xf] %vm747, %v739
      %805 = vst.msk [vmem:[%s182 + $0xe4] sm:$0xf] %vm747, %v740
      %806 = vst.msk [vmem:[%s182 + $0xe8] sm:$0xf] %vm747, %v741
      %807 = vst.msk [vmem:[%s182 + $0xec] sm:$0xf] %vm747, %v742
      %808 = vst.msk [vmem:[%s182 + $0xf0] sm:$0xf] %vm747, %v743
      %809 = vst.msk [vmem:[%s182 + $0xf4] sm:$0xf] %vm747, %v744
      %810 = vst.msk [vmem:[%s182 + $0xf8] sm:$0xf] %vm747, %v745
      %811 = vst.msk [vmem:[%s182 + $0xfc] sm:$0xf] %vm747, %v746
      %s812 = smul.u32 64, %s17
      %p813 = scmp.lt.s32.totalorder %s812, 255
      %s814 = scalar_select %p813, %s812, 255
      %p815 = scmp.lt.s32.totalorder %s18, 0
      %s816 = scalar_select %p815, %s18, 0
      %s817 = sadd.s32 %s816, %s814
      %s818 = smul.addr %s817, 4
      %s819 = scalar_lea.vmem %s2, %s818
      // Predicated region
      $region29: #{generator_forward.26} parent=27 // pred_check
        %p820 = pneg %p97
      $region30: #{generator_forward.26} parent=27 // pred_check_branch
        %822 = sbr.rel (%p820) target = $region32
      $region31: #{generator_forward.26} parent=27 // pred_region
        %s823 = smul.u32 64, %s17
      $region32: #{generator_forward.26} parent=27 // pred_fallthru
        _
    $region28: #{generator_forward.26} parent=5 // pred_fallthru
      _
    %p824 = scmp.le.s32.totalorder 2, %s8
    // Predicated region
    $region33: #{generator_forward.26} parent=5 // pred_check
      %p825 = pneg %p824
    $region34: #{generator_forward.26} parent=5 // pred_check_branch
      %827 = sbr.rel (%p825) target = $region36
    $region35: #{generator_forward.26} parent=5 // pred_region
      %s828 = ssub.s32 %s8, 2
      // Predicated region
      $region37: #{generator_forward.26} parent=35 // pred_check
        %p829 = pneg %p103
      $region38: #{generator_forward.26} parent=35 // pred_check_branch
        %831 = sbr.rel (%p829) target = $region40
      $region39: #{generator_forward.26} parent=35 // pred_region
        %s832 = smul.u32 64, %s19
        %p833 = scmp.lt.s32.totalorder %s832, 255
        %s834 = scalar_select %p833, %s832, 255
        %p835 = scmp.lt.s32.totalorder %s20, 0
        %s836 = scalar_select %p835, %s20, 0
        %s837 = sadd.s32 %s836, %s834
        %s838 = smul.addr %s837, 4
        %s839 = scalar_lea.vmem %s2, %s838
      $region40: #{generator_forward.26} parent=35 // pred_fallthru
        _
    $region36: #{generator_forward.26} parent=5 // pred_fallthru
      _
  $region6: #{generator_forward.26} parent=0 // loop_footer
    %s12 = sadd.s32 1, %s8
  $region7: #{generator_forward.26} parent=0 // loop_footer_branch
    %7 = sbr.rel target = $region3
  $region8: #{generator_forward.26} parent=0 // loop_exit
    _

// kernel: tile.88
$region0: #{tile.88}
  #allocation0 [shape = 's32[1]{0}', space=sflag, size = 0x4, scoped, tag = 'scoped memory for tile.88']
  %s0 = inlined_call_operand.vmem [shape: f32[3], index: 0, kind: input, shape index: {}]
  %s1 = inlined_call_operand.vmem [shape: f32[64,3], index: 1, kind: output, shape index: {}]
  // Predicated region
  $region2: #{tile.88} parent=0 // pred_check
    _
  $region3: #{tile.88} parent=0 // pred_check_branch
    %3 = sbr.rel (0) target = $region5
  $region4: #{tile.88} parent=0 // pred_region
    _
  $region5: #{tile.88} parent=0 // pred_fallthru
    _
  %v4 = vld [vmem:[%s0] ss:$0 sm:$0xff]
  %5 = vst [vmem:[%s1] sm:$0xff] %v4
  %s6 = scalar_lea.vmem %s1, 8
  %7 = vst [vmem:[%s6] sm:$0xff] %v4
  %s8 = scalar_lea.vmem %s1, 16
  %9 = vst [vmem:[%s8] sm:$0xff] %v4
  %s10 = scalar_lea.vmem %s1, 24
  %11 = vst [vmem:[%s10] sm:$0xff] %v4
  %s12 = scalar_lea.vmem %s1, 32
  %13 = vst [vmem:[%s12] sm:$0xff] %v4
  %s14 = scalar_lea.vmem %s1, 40
  %15 = vst [vmem:[%s14] sm:$0xff] %v4
  %s16 = scalar_lea.vmem %s1, 48
  %17 = vst [vmem:[%s16] sm:$0xff] %v4
  %s18 = scalar_lea.vmem %s1, 56
  %19 = vst [vmem:[%s18] sm:$0xff] %v4

// kernel: tile.89
$region0: #{tile.89}
  %s0 = inlined_call_operand.vmem [shape: f32[64,3], index: 0, kind: input, shape index: {}]
  %s1 = inlined_call_operand.vmem [shape: f32[1,192], index: 1, kind: output, shape index: {}]
  $region1: #{tile.89} parent=0
    #allocation0 [shape = 'u8[8192]{0}', space=vmem, size = 0x2000, scoped, tag = 'scoped mem for output reshape']
    %v2 = vld [vmem:[%s0] sm:$0x1]
    %vm3 = vcmask 23552
    %4 = vst.msk [vmem:[#allocation0] sm:$0x1] %vm3, %v2
    %s5 = scalar_lea.vmem %s0, 42
    %v6 = vld [vmem:[%s5] sm:$0x1]
    %s7 = scalar_lea.vmem %s0, 42
    %v8 = vld [vmem:[%s7] sm:$0x1]
    %vm9 = vcmask 15360
    %v10 = vsel %vm9, %v8, %v6
    %11 = vrot.lane.b32.xlu0 %v10, 126
    %v12 = vpop.permute.xlu0 %11
    %vm13 = vcmask 7168
    %s14 = scalar_lea.vmem [#allocation0], 8
    %15 = vst.msk [vmem:[%s14] sm:$0x1] %vm13, %v12
    %vm16 = vcmask 1048560
    %17 = vst.msk [vmem:[#allocation0] sm:$0x1] %vm16, %v12
    %s18 = scalar_lea.vmem %s0, 41
    %v19 = vld [vmem:[%s18] sm:$0x1]
    %20 = vrot.lane.b32.xlu0 %v19, 123
    %v21 = vpop.permute.xlu0 %20
    %vm22 = vcmask 1032152
    %23 = vst.msk [vmem:[#allocation0] sm:$0x1] %vm22, %v21
    %s24 = scalar_lea.vmem %s0, 40
    %v25 = vld [vmem:[%s24] sm:$0x1]
    %26 = vrot.lane.b32.xlu0 %v25, 120
    %v27 = vpop.permute.xlu0 %26
    %vm28 = vcmask 1007552
    %29 = vst.msk [vmem:[#allocation0] sm:$0x1] %vm28, %v27
    %s30 = scalar_lea.vmem %s0, 39
    %v31 = vld [vmem:[%s30] sm:$0x1]
    %32 = vrot.lane.b32.xlu0 %v31, 117
    %v33 = vpop.permute.xlu0 %32
    %vm34 = vcmask 982952
    %35 = vst.msk [vmem:[#allocation0] sm:$0x1] %vm34, %v33
    %s36 = scalar_lea.vmem %s0, 38
    %v37 = vld [vmem:[%s36] sm:$0x1]
    %38 = vrot.lane.b32.xlu0 %v37, 114
    %v39 = vpop.permute.xlu0 %38
    %vm40 = vcmask 958352
    %41 = vst.msk [vmem:[#allocation0] sm:$0x1] %vm40, %v39
    %s42 = scalar_lea.vmem %s0, 37
    %v43 = vld [vmem:[%s42] sm:$0x1]
    %44 = vrot.lane.b32.xlu0 %v43, 111
    %v45 = vpop.permute.xlu0 %44
    %vm46 = vcmask 933752
    %47 = vst.msk [vmem:[#allocation0] sm:$0x1] %vm46, %v45
    %s48 = scalar_lea.vmem %s0, 36
    %v49 = vld [vmem:[%s48] sm:$0x1]
    %50 = vrot.lane.b32.xlu0 %v49, 108
    %v51 = vpop.permute.xlu0 %50
    %vm52 = vcmask 909152
    %53 = vst.msk [vmem:[#allocation0] sm:$0x1] %vm52, %v51
    %s54 = scalar_lea.vmem %s0, 35
    %v55 = vld [vmem:[%s54] sm:$0x1]
    %56 = vrot.lane.b32.xlu0 %v55, 105
    %v57 = vpop.permute.xlu0 %56
    %vm58 = vcmask 884552
    %59 = vst.msk [vmem:[#allocation0] sm:$0x1] %vm58, %v57
    %s60 = scalar_lea.vmem %s0, 34
    %v61 = vld [vmem:[%s60] sm:$0x1]
    %62 = vrot.lane.b32.xlu0 %v61, 102
    %v63 = vpop.permute.xlu0 %62
    %vm64 = vcmask 859952
    %65 = vst.msk [vmem:[#allocation0] sm:$0x1] %vm64, %v63
    %s66 = scalar_lea.vmem %s0, 33
    %v67 = vld [vmem:[%s66] sm:$0x1]
    %68 = vrot.lane.b32.xlu0 %v67, 99
    %v69 = vpop.permute.xlu0 %68
    %vm70 = vcmask 835352
    %71 = vst.msk [vmem:[#allocation0] sm:$0x1] %vm70, %v69
    %s72 = scalar_lea.vmem %s0, 32
    %v73 = vld [vmem:[%s72] sm:$0x1]
    %74 = vrot.lane.b32.xlu0 %v73, 96
    %v75 = vpop.permute.xlu0 %74
    %vm76 = vcmask 810752
    %77 = vst.msk [vmem:[#allocation0] sm:$0x1] %vm76, %v75
    %s78 = scalar_lea.vmem %s0, 31
    %v79 = vld [vmem:[%s78] sm:$0x1]
    %80 = vrot.lane.b32.xlu0 %v79, 93
    %v81 = vpop.permute.xlu0 %80
    %vm82 = vcmask 786152
    %83 = vst.msk [vmem:[#allocation0] sm:$0x1] %vm82, %v81
    %s84 = scalar_lea.vmem %s0, 30
    %v85 = vld [vmem:[%s84] sm:$0x1]
    %86 = vrot.lane.b32.xlu0 %v85, 90
    %v87 = vpop.permute.xlu0 %86
    %vm88 = vcmask 761552
    %89 = vst.msk [vmem:[#allocation0] sm:$0x1] %vm88, %v87
    %s90 = scalar_lea.vmem %s0, 29
    %v91 = vld [vmem:[%s90] sm:$0x1]
    %92 = vrot.lane.b32.xlu0 %v91, 87
    %v93 = vpop.permute.xlu0 %92
    %vm94 = vcmask 736952
    %95 = vst.msk [vmem:[#allocation0] sm:$0x1] %vm94, %v93
    %s96 = scalar_lea.vmem %s0, 28
    %v97 = vld [vmem:[%s96] sm:$0x1]
    %98 = vrot.lane.b32.xlu0 %v97, 84
    %v99 = vpop.permute.xlu0 %98
    %vm100 = vcmask 712352
    %101 = vst.msk [vmem:[#allocation0] sm:$0x1] %vm100, %v99
    %s102 = scalar_lea.vmem %s0, 27
    %v103 = vld [vmem:[%s102] sm:$0x1]
    %104 = vrot.lane.b32.xlu0 %v103, 81
    %v105 = vpop.permute.xlu0 %104
    %vm106 = vcmask 687752
    %107 = vst.msk [vmem:[#allocation0] sm:$0x1] %vm106, %v105
    %s108 = scalar_lea.vmem %s0, 26
    %v109 = vld [vmem:[%s108] sm:$0x1]
    %110 = vrot.lane.b32.xlu0 %v109, 78
    %v111 = vpop.permute.xlu0 %110
    %vm112 = vcmask 663152
    %113 = vst.msk [vmem:[#allocation0] sm:$0x1] %vm112, %v111
    %s114 = scalar_lea.vmem %s0, 25
    %v115 = vld [vmem:[%s114] sm:$0x1]
    %116 = vrot.lane.b32.xlu0 %v115, 75
    %v117 = vpop.permute.xlu0 %116
    %vm118 = vcmask 638552
    %119 = vst.msk [vmem:[#allocation0] sm:$0x1] %vm118, %v117
    %s120 = scalar_lea.vmem %s0, 24
    %v121 = vld [vmem:[%s120] sm:$0x1]
    %122 = vrot.lane.b32.xlu0 %v121, 72
    %v123 = vpop.permute.xlu0 %122
    %vm124 = vcmask 613952
    %125 = vst.msk [vmem:[#allocation0] sm:$0x1] %vm124, %v123
    %s126 = scalar_lea.vmem %s0, 23
    %v127 = vld [vmem:[%s126] sm:$0x1]
    %128 = vrot.lane.b32.xlu0 %v127, 69
    %v129 = vpop.permute.xlu0 %128
    %vm130 = vcmask 589352
    %131 = vst.msk [vmem:[#allocation0] sm:$0x1] %vm130, %v129
    %s132 = scalar_lea.vmem %s0, 22
    %v133 = vld [vmem:[%s132] sm:$0x1]
    %134 = vrot.lane.b32.xlu0 %v133, 66
    %v135 = vpop.permute.xlu0 %134
    %vm136 = vcmask 564752
    %137 = vst.msk [vmem:[#allocation0] sm:$0x1] %vm136, %v135
    %s138 = scalar_lea.vmem %s0, 21
    %v139 = vld [vmem:[%s138] sm:$0x1]
    %140 = vrot.lane.b32.xlu0 %v139, 63
    %v141 = vpop.permute.xlu0 %140
    %vm142 = vcmask 540152
    %143 = vst.msk [vmem:[#allocation0] sm:$0x1] %vm142, %v141
    %s144 = scalar_lea.vmem %s0, 63
    %v145 = vld [vmem:[%s144] sm:$0x1]
    %146 = vrot.lane.b32.xlu0 %v145, 61
    %v147 = vpop.permute.xlu0 %146
    %vm148 = vcmask 523752
    %s149 = scalar_lea.vmem [#allocation0], 8
    %150 = vst.msk [vmem:[%s149] sm:$0x1] %vm148, %v147
    %s151 = scalar_lea.vmem %s0, 20
    %v152 = vld [vmem:[%s151] sm:$0x1]
    %153 = vrot.lane.b32.xlu0 %v152, 60
    %v154 = vpop.permute.xlu0 %153
    %vm155 = vcmask 515552
    %156 = vst.msk [vmem:[#allocation0] sm:$0x1] %vm155, %v154
    %s157 = scalar_lea.vmem %s0, 62
    %v158 = vld [vmem:[%s157] sm:$0x1]
    %159 = vrot.lane.b32.xlu0 %v158, 58
    %v160 = vpop.permute.xlu0 %159
    %vm161 = vcmask 499152
    %s162 = scalar_lea.vmem [#allocation0], 8
    %163 = vst.msk [vmem:[%s162] sm:$0x1] %vm161, %v160
    %s164 = scalar_lea.vmem %s0, 19
    %v165 = vld [vmem:[%s164] sm:$0x1]
    %166 = vrot.lane.b32.xlu0 %v165, 57
    %v167 = vpop.permute.xlu0 %166
    %vm168 = vcmask 490952
    %169 = vst.msk [vmem:[#allocation0] sm:$0x1] %vm168, %v167
    %s170 = scalar_lea.vmem %s0, 61
    %v171 = vld [vmem:[%s170] sm:$0x1]
    %172 = vrot.lane.b32.xlu0 %v171, 55
    %v173 = vpop.permute.xlu0 %172
    %vm174 = vcmask 474552
    %s175 = scalar_lea.vmem [#allocation0], 8
    %176 = vst.msk [vmem:[%s175] sm:$0x1] %vm174, %v173
    %s177 = scalar_lea.vmem %s0, 18
    %v178 = vld [vmem:[%s177] sm:$0x1]
    %179 = vrot.lane.b32.xlu0 %v178, 54
    %v180 = vpop.permute.xlu0 %179
    %vm181 = vcmask 466352
    %182 = vst.msk [vmem:[#allocation0] sm:$0x1] %vm181, %v180
    %s183 = scalar_lea.vmem %s0, 60
    %v184 = vld [vmem:[%s183] sm:$0x1]
    %185 = vrot.lane.b32.xlu0 %v184, 52
    %v186 = vpop.permute.xlu0 %185
    %vm187 = vcmask 449952
    %s188 = scalar_lea.vmem [#allocation0], 8
    %189 = vst.msk [vmem:[%s188] sm:$0x1] %vm187, %v186
    %s190 = scalar_lea.vmem %s0, 17
    %v191 = vld [vmem:[%s190] sm:$0x1]
    %192 = vrot.lane.b32.xlu0 %v191, 51
    %v193 = vpop.permute.xlu0 %192
    %vm194 = vcmask 441752
    %195 = vst.msk [vmem:[#allocation0] sm:$0x1] %vm194, %v193
    %s196 = scalar_lea.vmem %s0, 59
    %v197 = vld [vmem:[%s196] sm:$0x1]
    %198 = vrot.lane.b32.xlu0 %v197, 49
    %v199 = vpop.permute.xlu0 %198
    %vm200 = vcmask 425352
    %s201 = scalar_lea.vmem [#allocation0], 8
    %202 = vst.msk [vmem:[%s201] sm:$0x1] %vm200, %v199
    %s203 = scalar_lea.vmem %s0, 16
    %v204 = vld [vmem:[%s203] sm:$0x1]
    %205 = vrot.lane.b32.xlu0 %v204, 48
    %v206 = vpop.permute.xlu0 %205
    %vm207 = vcmask 417152
    %208 = vst.msk [vmem:[#allocation0] sm:$0x1] %vm207, %v206
    %s209 = scalar_lea.vmem %s0, 58
    %v210 = vld [vmem:[%s209] sm:$0x1]
    %211 = vrot.lane.b32.xlu0 %v210, 46
    %v212 = vpop.permute.xlu0 %211
    %vm213 = vcmask 400752
    %s214 = scalar_lea.vmem [#allocation0], 8
    %215 = vst.msk [vmem:[%s214] sm:$0x1] %vm213, %v212
    %s216 = scalar_lea.vmem %s0, 15
    %v217 = vld [vmem:[%s216] sm:$0x1]
    %218 = vrot.lane.b32.xlu0 %v217, 45
    %v219 = vpop.permute.xlu0 %218
    %vm220 = vcmask 392552
    %221 = vst.msk [vmem:[#allocation0] sm:$0x1] %vm220, %v219
    %s222 = scalar_lea.vmem %s0, 57
    %v223 = vld [vmem:[%s222] sm:$0x1]
    %224 = vrot.lane.b32.xlu0 %v223, 43
    %v225 = vpop.permute.xlu0 %224
    %vm226 = vcmask 376152
    %s227 = scalar_lea.vmem [#allocation0], 8
    %228 = vst.msk [vmem:[%s227] sm:$0x1] %vm226, %v225
    %s229 = scalar_lea.vmem %s0, 14
    %v230 = vld [vmem:[%s229] sm:$0x1]
    %231 = vrot.lane.b32.xlu0 %v230, 42
    %v232 = vpop.permute.xlu0 %231
    %vm233 = vcmask 367952
    %234 = vst.msk [vmem:[#allocation0] sm:$0x1] %vm233, %v232
    %s235 = scalar_lea.vmem %s0, 56
    %v236 = vld [vmem:[%s235] sm:$0x1]
    %237 = vrot.lane.b32.xlu0 %v236, 40
    %v238 = vpop.permute.xlu0 %237
    %vm239 = vcmask 351552
    %s240 = scalar_lea.vmem [#allocation0], 8
    %241 = vst.msk [vmem:[%s240] sm:$0x1] %vm239, %v238
    %s242 = scalar_lea.vmem %s0, 13
    %v243 = vld [vmem:[%s242] sm:$0x1]
    %244 = vrot.lane.b32.xlu0 %v243, 39
    %v245 = vpop.permute.xlu0 %244
    %vm246 = vcmask 343352
    %247 = vst.msk [vmem:[#allocation0] sm:$0x1] %vm246, %v245
    %s248 = scalar_lea.vmem %s0, 55
    %v249 = vld [vmem:[%s248] sm:$0x1]
    %250 = vrot.lane.b32.xlu0 %v249, 37
    %v251 = vpop.permute.xlu0 %250
    %vm252 = vcmask 326952
    %s253 = scalar_lea.vmem [#allocation0], 8
    %254 = vst.msk [vmem:[%s253] sm:$0x1] %vm252, %v251
    %s255 = scalar_lea.vmem %s0, 12
    %v256 = vld [vmem:[%s255] sm:$0x1]
    %257 = vrot.lane.b32.xlu0 %v256, 36
    %v258 = vpop.permute.xlu0 %257
    %vm259 = vcmask 318752
    %260 = vst.msk [vmem:[#allocation0] sm:$0x1] %vm259, %v258
    %s261 = scalar_lea.vmem %s0, 54
    %v262 = vld [vmem:[%s261] sm:$0x1]
    %263 = vrot.lane.b32.xlu0 %v262, 34
    %v264 = vpop.permute.xlu0 %263
    %vm265 = vcmask 302352
    %s266 = scalar_lea.vmem [#allocation0], 8
    %267 = vst.msk [vmem:[%s266] sm:$0x1] %vm265, %v264
    %s268 = scalar_lea.vmem %s0, 11
    %v269 = vld [vmem:[%s268] sm:$0x1]
    %270 = vrot.lane.b32.xlu0 %v269, 33
    %v271 = vpop.permute.xlu0 %270
    %vm272 = vcmask 294152
    %273 = vst.msk [vmem:[#allocation0] sm:$0x1] %vm272, %v271
    %s274 = scalar_lea.vmem %s0, 53
    %v275 = vld [vmem:[%s274] sm:$0x1]
    %276 = vrot.lane.b32.xlu0 %v275, 31
    %v277 = vpop.permute.xlu0 %276
    %vm278 = vcmask 277752
    %s279 = scalar_lea.vmem [#allocation0], 8
    %280 = vst.msk [vmem:[%s279] sm:$0x1] %vm278, %v277
    %s281 = scalar_lea.vmem %s0, 10
    %v282 = vld [vmem:[%s281] sm:$0x1]
    %283 = vrot.lane.b32.xlu0 %v282, 30
    %v284 = vpop.permute.xlu0 %283
    %vm285 = vcmask 269552
    %286 = vst.msk [vmem:[#allocation0] sm:$0x1] %vm285, %v284
    %s287 = scalar_lea.vmem %s0, 52
    %v288 = vld [vmem:[%s287] sm:$0x1]
    %289 = vrot.lane.b32.xlu0 %v288, 28
    %v290 = vpop.permute.xlu0 %289
    %vm291 = vcmask 253152
    %s292 = scalar_lea.vmem [#allocation0], 8
    %293 = vst.msk [vmem:[%s292] sm:$0x1] %vm291, %v290
    %s294 = scalar_lea.vmem %s0, 9
    %v295 = vld [vmem:[%s294] sm:$0x1]
    %296 = vrot.lane.b32.xlu0 %v295, 27
    %v297 = vpop.permute.xlu0 %296
    %vm298 = vcmask 244952
    %299 = vst.msk [vmem:[#allocation0] sm:$0x1] %vm298, %v297
    %s300 = scalar_lea.vmem %s0, 51
    %v301 = vld [vmem:[%s300] sm:$0x1]
    %302 = vrot.lane.b32.xlu0 %v301, 25
    %v303 = vpop.permute.xlu0 %302
    %vm304 = vcmask 228552
    %s305 = scalar_lea.vmem [#allocation0], 8
    %306 = vst.msk [vmem:[%s305] sm:$0x1] %vm304, %v303
    %s307 = scalar_lea.vmem %s0, 8
    %v308 = vld [vmem:[%s307] sm:$0x1]
    %309 = vrot.lane.b32.xlu0 %v308, 24
    %v310 = vpop.permute.xlu0 %309
    %vm311 = vcmask 220352
    %312 = vst.msk [vmem:[#allocation0] sm:$0x1] %vm311, %v310
    %s313 = scalar_lea.vmem %s0, 50
    %v314 = vld [vmem:[%s313] sm:$0x1]
    %315 = vrot.lane.b32.xlu0 %v314, 22
    %v316 = vpop.permute.xlu0 %315
    %vm317 = vcmask 203952
    %s318 = scalar_lea.vmem [#allocation0], 8
    %319 = vst.msk [vmem:[%s318] sm:$0x1] %vm317, %v316
    %s320 = scalar_lea.vmem %s0, 7
    %v321 = vld [vmem:[%s320] sm:$0x1]
    %322 = vrot.lane.b32.xlu0 %v321, 21
    %v323 = vpop.permute.xlu0 %322
    %vm324 = vcmask 195752
    %325 = vst.msk [vmem:[#allocation0] sm:$0x1] %vm324, %v323
    %s326 = scalar_lea.vmem %s0, 49
    %v327 = vld [vmem:[%s326] sm:$0x1]
    %328 = vrot.lane.b32.xlu0 %v327, 19
    %v329 = vpop.permute.xlu0 %328
    %vm330 = vcmask 179352
    %s331 = scalar_lea.vmem [#allocation0], 8
    %332 = vst.msk [vmem:[%s331] sm:$0x1] %vm330, %v329
    %s333 = scalar_lea.vmem %s0, 6
    %v334 = vld [vmem:[%s333] sm:$0x1]
    %335 = vrot.lane.b32.xlu0 %v334, 18
    %v336 = vpop.permute.xlu0 %335
    %vm337 = vcmask 171152
    %338 = vst.msk [vmem:[#allocation0] sm:$0x1] %vm337, %v336
    %s339 = scalar_lea.vmem %s0, 48
    %v340 = vld [vmem:[%s339] sm:$0x1]
    %341 = vrot.lane.b32.xlu0 %v340, 16
    %v342 = vpop.permute.xlu0 %341
    %vm343 = vcmask 154752
    %s344 = scalar_lea.vmem [#allocation0], 8
    %345 = vst.msk [vmem:[%s344] sm:$0x1] %vm343, %v342
    %s346 = scalar_lea.vmem %s0, 5
    %v347 = vld [vmem:[%s346] sm:$0x1]
    %348 = vrot.lane.b32.xlu0 %v347, 15
    %v349 = vpop.permute.xlu0 %348
    %vm350 = vcmask 146552
    %351 = vst.msk [vmem:[#allocation0] sm:$0x1] %vm350, %v349
    %s352 = scalar_lea.vmem %s0, 47
    %v353 = vld [vmem:[%s352] sm:$0x1]
    %354 = vrot.lane.b32.xlu0 %v353, 13
    %v355 = vpop.permute.xlu0 %354
    %vm356 = vcmask 130152
    %s357 = scalar_lea.vmem [#allocation0], 8
    %358 = vst.msk [vmem:[%s357] sm:$0x1] %vm356, %v355
    %s359 = scalar_lea.vmem %s0, 4
    %v360 = vld [vmem:[%s359] sm:$0x1]
    %361 = vrot.lane.b32.xlu0 %v360, 12
    %v362 = vpop.permute.xlu0 %361
    %vm363 = vcmask 121952
    %364 = vst.msk [vmem:[#allocation0] sm:$0x1] %vm363, %v362
    %s365 = scalar_lea.vmem %s0, 46
    %v366 = vld [vmem:[%s365] sm:$0x1]
    %367 = vrot.lane.b32.xlu0 %v366, 10
    %v368 = vpop.permute.xlu0 %367
    %vm369 = vcmask 105552
    %s370 = scalar_lea.vmem [#allocation0], 8
    %371 = vst.msk [vmem:[%s370] sm:$0x1] %vm369, %v368
    %s372 = scalar_lea.vmem %s0, 3
    %v373 = vld [vmem:[%s372] sm:$0x1]
    %374 = vrot.lane.b32.xlu0 %v373, 9
    %v375 = vpop.permute.xlu0 %374
    %vm376 = vcmask 97352
    %377 = vst.msk [vmem:[#allocation0] sm:$0x1] %vm376, %v375
    %s378 = scalar_lea.vmem %s0, 45
    %v379 = vld [vmem:[%s378] sm:$0x1]
    %380 = vrot.lane.b32.xlu0 %v379, 7
    %v381 = vpop.permute.xlu0 %380
    %vm382 = vcmask 80952
    %s383 = scalar_lea.vmem [#allocation0], 8
    %384 = vst.msk [vmem:[%s383] sm:$0x1] %vm382, %v381
    %s385 = scalar_lea.vmem %s0, 2
    %v386 = vld [vmem:[%s385] sm:$0x1]
    %387 = vrot.lane.b32.xlu0 %v386, 6
    %v388 = vpop.permute.xlu0 %387
    %vm389 = vcmask 72752
    %390 = vst.msk [vmem:[#allocation0] sm:$0x1] %vm389, %v388
    %s391 = scalar_lea.vmem %s0, 44
    %v392 = vld [vmem:[%s391] sm:$0x1]
    %393 = vrot.lane.b32.xlu0 %v392, 4
    %v394 = vpop.permute.xlu0 %393
    %vm395 = vcmask 56352
    %s396 = scalar_lea.vmem [#allocation0], 8
    %397 = vst.msk [vmem:[%s396] sm:$0x1] %vm395, %v394
    %s398 = scalar_lea.vmem %s0, 1
    %v399 = vld [vmem:[%s398] sm:$0x1]
    %400 = vrot.lane.b32.xlu0 %v399, 3
    %v401 = vpop.permute.xlu0 %400
    %vm402 = vcmask 48152
    %403 = vst.msk [vmem:[#allocation0] sm:$0x1] %vm402, %v401
    %s404 = scalar_lea.vmem %s0, 43
    %v405 = vld [vmem:[%s404] sm:$0x1]
    %406 = vrot.lane.b32.xlu0 %v405, 1
    %v407 = vpop.permute.xlu0 %406
    %vm408 = vcmask 31752
    %s409 = scalar_lea.vmem [#allocation0], 8
    %410 = vst.msk [vmem:[%s409] sm:$0x1] %vm408, %v407
    %s412 = ssub.s32 2, 1
    %v413 = vld [vmem:[#allocation0] sm:%s412]
    %s415 = ssub.s32 2, 1
    %416 = vst [vmem:[%s1] sm:%s415] %v413
    %s417 = scalar_lea.vmem [#allocation0], 8
    %v418 = vld [vmem:[%s417] sm:%s412]
    %s420 = ssub.s32 2, 1
    %s421 = scalar_lea.vmem %s1, 1
    %422 = vst [vmem:[%s421] sm:%s420] %v418

// kernel: generator_forward.27
$region0: #{generator_forward.27}
  #allocation0 [shape = 'u32[]', space=smem, size = 0x4, offset = 0x4, fixed_abs, tag = 'smem constant byte address 0x4 - core index']
  #allocation1 [shape = 'u32[72,128]{1,0:T(1,128)}', space=vmem, size = 0x9000, scoped, tag = 'internal scratch']
  %s0 = inlined_call_operand.vmem [shape: f32[128,192], index: 0, kind: input, shape index: {}]
  %s1 = inlined_call_operand.vmem [shape: f32[1,192], index: 1, kind: input, shape index: {}]
  %s2 = inlined_call_operand.vmem [shape: f32[128,192], index: 2, kind: output, shape index: {}]
  %s3 = sld [smem:[#allocation0]]
  $region18: #{generator_forward.27} parent=0
    _
  %s5 = ssub.s32 1, %s3
  %s6 = scalar_select 0, %s5, %s3
  // Predicated region
  $region2: #{generator_forward.27} parent=0 // pred_check
    _
  $region3: #{generator_forward.27} parent=0 // pred_check_branch
    %8 = sbr.rel (0) target = $region5
  $region4: #{generator_forward.27} parent=0 // pred_region
    _
  $region5: #{generator_forward.27} parent=0 // pred_fallthru
    _
  // Predicated region
  $region6: #{generator_forward.27} parent=0 // pred_check
    _
  $region7: #{generator_forward.27} parent=0 // pred_check_branch
    %10 = sbr.rel (0) target = $region9
  $region8: #{generator_forward.27} parent=0 // pred_region
    _
  $region9: #{generator_forward.27} parent=0 // pred_fallthru
    _
  %v11 = vld [vmem:[%s0] sm:$0xff]
  %v12 = vld [vmem:[%s0 + $0x8] sm:$0xff]
  %v13 = vld [vmem:[%s0 + $0x10] sm:$0xff]
  %v14 = vld [vmem:[%s0 + $0x18] sm:$0xff]
  %v15 = vld [vmem:[%s0 + $0x20] sm:$0xff]
  %v16 = vld [vmem:[%s0 + $0x28] sm:$0xff]
  %v17 = vld [vmem:[%s0 + $0x30] sm:$0xff]
  %v18 = vld [vmem:[%s0 + $0x38] sm:$0xff]
  %v19 = vld [vmem:[%s0 + $0x40] sm:$0xff]
  %v20 = vld [vmem:[%s0 + $0x48] sm:$0xff]
  %v21 = vld [vmem:[%s0 + $0x50] sm:$0xff]
  %v22 = vld [vmem:[%s0 + $0x58] sm:$0xff]
  %v23 = vld [vmem:[%s0 + $0x60] sm:$0xff]
  %v24 = vld [vmem:[%s0 + $0x68] sm:$0xff]
  %v25 = vld [vmem:[%s0 + $0x70] sm:$0xff]
  %v26 = vld [vmem:[%s0 + $0x78] sm:$0xff]
  %v27 = vld [vmem:[%s0 + $0x80] sm:$0xff]
  %v28 = vld [vmem:[%s0 + $0x88] sm:$0xff]
  %v29 = vld [vmem:[%s0 + $0x90] sm:$0xff]
  %v30 = vld [vmem:[%s0 + $0x98] sm:$0xff]
  %v31 = vld [vmem:[%s0 + $0xa0] sm:$0xff]
  %v32 = vld [vmem:[%s0 + $0xa8] sm:$0xff]
  %v33 = vld [vmem:[%s0 + $0xb0] sm:$0xff]
  %v34 = vld [vmem:[%s0 + $0xb8] sm:$0xff]
  %v35 = vld [vmem:[%s0 + $0xc0] sm:$0xff]
  %v36 = vld [vmem:[%s0 + $0xc8] sm:$0xff]
  %v37 = vld [vmem:[%s0 + $0xd0] sm:$0xff]
  %v38 = vld [vmem:[%s0 + $0xd8] sm:$0xff]
  %v39 = vld [vmem:[%s0 + $0xe0] sm:$0xff]
  %v40 = vld [vmem:[%s0 + $0xe8] sm:$0xff]
  %v41 = vld [vmem:[%s0 + $0xf0] sm:$0xff]
  %v42 = vld [vmem:[%s0 + $0xf8] sm:$0xff]
  %v43 = vld [vmem:[%s1] sm:$0x3]
  %v45 = vperm.slane %v43, 0
  %v46 = vperm.slane %v43, 1
  %v49 = vadd.f32 %v11, %v45
  %v50 = vadd.f32 %v12, %v46
  %v51 = vadd.f32 %v13, %v45
  %v52 = vadd.f32 %v14, %v46
  %v53 = vadd.f32 %v15, %v45
  %v54 = vadd.f32 %v16, %v46
  %v55 = vadd.f32 %v17, %v45
  %v56 = vadd.f32 %v18, %v46
  %v57 = vadd.f32 %v19, %v45
  %v58 = vadd.f32 %v20, %v46
  %v59 = vadd.f32 %v21, %v45
  %v60 = vadd.f32 %v22, %v46
  %v61 = vadd.f32 %v23, %v45
  %v62 = vadd.f32 %v24, %v46
  %v63 = vadd.f32 %v25, %v45
  %v64 = vadd.f32 %v26, %v46
  %v65 = vadd.f32 %v27, %v45
  %v66 = vadd.f32 %v28, %v46
  %v67 = vadd.f32 %v29, %v45
  %v68 = vadd.f32 %v30, %v46
  %v69 = vadd.f32 %v31, %v45
  %v70 = vadd.f32 %v32, %v46
  %v71 = vadd.f32 %v33, %v45
  %v72 = vadd.f32 %v34, %v46
  %v73 = vadd.f32 %v35, %v45
  %v74 = vadd.f32 %v36, %v46
  %v75 = vadd.f32 %v37, %v45
  %v76 = vadd.f32 %v38, %v46
  %v77 = vadd.f32 %v39, %v45
  %v78 = vadd.f32 %v40, %v46
  %v79 = vadd.f32 %v41, %v45
  %v80 = vadd.f32 %v42, %v46
  %v81 = vtanh.pop %v49
  %v82 = vtanh.pop %v50
  %v83 = vtanh.pop %v51
  %v84 = vtanh.pop %v52
  %v85 = vtanh.pop %v53
  %v86 = vtanh.pop %v54
  %v87 = vtanh.pop %v55
  %v88 = vtanh.pop %v56
  %v89 = vtanh.pop %v57
  %v90 = vtanh.pop %v58
  %v91 = vtanh.pop %v59
  %v92 = vtanh.pop %v60
  %v93 = vtanh.pop %v61
  %v94 = vtanh.pop %v62
  %v95 = vtanh.pop %v63
  %v96 = vtanh.pop %v64
  %v97 = vtanh.pop %v65
  %v98 = vtanh.pop %v66
  %v99 = vtanh.pop %v67
  %v100 = vtanh.pop %v68
  %v101 = vtanh.pop %v69
  %v102 = vtanh.pop %v70
  %v103 = vtanh.pop %v71
  %v104 = vtanh.pop %v72
  %v105 = vtanh.pop %v73
  %v106 = vtanh.pop %v74
  %v107 = vtanh.pop %v75
  %v108 = vtanh.pop %v76
  %v109 = vtanh.pop %v77
  %v110 = vtanh.pop %v78
  %v111 = vtanh.pop %v79
  %v112 = vtanh.pop %v80
  %113 = vst [vmem:[%s2] sm:$0xff] %v81
  %vm114 = vcmask 523264
  %115 = vst.msk [vmem:[%s2 + $0x8] sm:$0xff] %vm114, %v82
  %116 = vst [vmem:[%s2 + $0x10] sm:$0xff] %v83
  %117 = vst.msk [vmem:[%s2 + $0x18] sm:$0xff] %vm114, %v84
  %118 = vst [vmem:[%s2 + $0x20] sm:$0xff] %v85
  %119 = vst.msk [vmem:[%s2 + $0x28] sm:$0xff] %vm114, %v86
  %120 = vst [vmem:[%s2 + $0x30] sm:$0xff] %v87
  %121 = vst.msk [vmem:[%s2 + $0x38] sm:$0xff] %vm114, %v88
  %122 = vst [vmem:[%s2 + $0x40] sm:$0xff] %v89
  %123 = vst.msk [vmem:[%s2 + $0x48] sm:$0xff] %vm114, %v90
  %124 = vst [vmem:[%s2 + $0x50] sm:$0xff] %v91
  %125 = vst.msk [vmem:[%s2 + $0x58] sm:$0xff] %vm114, %v92
  %126 = vst [vmem:[%s2 + $0x60] sm:$0xff] %v93
  %127 = vst.msk [vmem:[%s2 + $0x68] sm:$0xff] %vm114, %v94
  %128 = vst [vmem:[%s2 + $0x70] sm:$0xff] %v95
  %129 = vst.msk [vmem:[%s2 + $0x78] sm:$0xff] %vm114, %v96
  %130 = vst [vmem:[%s2 + $0x80] sm:$0xff] %v97
  %131 = vst.msk [vmem:[%s2 + $0x88] sm:$0xff] %vm114, %v98
  %132 = vst [vmem:[%s2 + $0x90] sm:$0xff] %v99
  %133 = vst.msk [vmem:[%s2 + $0x98] sm:$0xff] %vm114, %v100
  %134 = vst [vmem:[%s2 + $0xa0] sm:$0xff] %v101
  %135 = vst.msk [vmem:[%s2 + $0xa8] sm:$0xff] %vm114, %v102
  %136 = vst [vmem:[%s2 + $0xb0] sm:$0xff] %v103
  %137 = vst.msk [vmem:[%s2 + $0xb8] sm:$0xff] %vm114, %v104
  %138 = vst [vmem:[%s2 + $0xc0] sm:$0xff] %v105
  %139 = vst.msk [vmem:[%s2 + $0xc8] sm:$0xff] %vm114, %v106
  %140 = vst [vmem:[%s2 + $0xd0] sm:$0xff] %v107
  %141 = vst.msk [vmem:[%s2 + $0xd8] sm:$0xff] %vm114, %v108
  %142 = vst [vmem:[%s2 + $0xe0] sm:$0xff] %v109
  %143 = vst.msk [vmem:[%s2 + $0xe8] sm:$0xff] %vm114, %v110
  %144 = vst [vmem:[%s2 + $0xf0] sm:$0xff] %v111
  %145 = vst.msk [vmem:[%s2 + $0xf8] sm:$0xff] %vm114, %v112
  // Predicated region
  $region10: #{generator_forward.27} parent=0 // pred_check
    _
  $region11: #{generator_forward.27} parent=0 // pred_check_branch
    %147 = sbr.rel (0) target = $region13
  $region12: #{generator_forward.27} parent=0 // pred_region
    _
  $region13: #{generator_forward.27} parent=0 // pred_fallthru
    _
  // Predicated region
  $region14: #{generator_forward.27} parent=0 // pred_check
    _
  $region15: #{generator_forward.27} parent=0 // pred_check_branch
    %149 = sbr.rel (0) target = $region17
  $region16: #{generator_forward.27} parent=0 // pred_region
    _
  $region17: #{generator_forward.27} parent=0 // pred_fallthru
    _

</llo_original>
